<compile_context>
chip_gen: v7x
topology: tpu7x:2x2x1
jax: 0.10.0
libtpu: 0.0.40
codegen_flags: <defaults>
</compile_context>

<pallas_src>
import functools

import jax
import jax.numpy as jnp
from jax import lax
from jax.experimental import pallas as pl
from jax.experimental.pallas import tpu as pltpu
from jax.scipy.special import gammaln


def _round_up(x, m):
    return ((x + m - 1) // m) * m


def _lp_ece_kernel(logz_ref, alpha_t_ref, yoh_ref, pbar_ref, out_ref, acc_ref,
                   *, tm, tn, p):
    i = pl.program_id(0)          # row tile ("parallel")
    j = pl.program_id(1)          # column tile (reduction axis, "arbitrary")
    nj = pl.num_programs(1)

    @pl.when(j == 0)
    def _():
        acc_ref[...] = jnp.zeros_like(acc_ref)

    # log Dirichlet kernel for this (tm, tn) tile; -log_beta is folded into the
    # contraction (last column of logz is 1, last row of alpha_t is -log_beta).
    # First matmul stays f32: log-space errors are amplified by the exp.
    log_kern = jnp.dot(logz_ref[...], alpha_t_ref[...],
                       preferred_element_type=jnp.float32)        # (tm, tn)
    kern = jnp.exp(log_kern)

    # Leave-one-out diagonal: global row == global col can only happen on
    # diagonal tiles, so the mask is correct (and cheap VPU filler) everywhere.
    row_ids = i * tm + lax.broadcasted_iota(jnp.int32, (tm, tn), 0)
    col_ids = j * tn + lax.broadcasted_iota(jnp.int32, (tm, tn), 1)
    kern = jnp.where(row_ids == col_ids, 0.0, kern)

    # yoh_ref is the (bf16) one-hot labels augmented with an all-ones column,
    # so the last accumulator column is the row-sum denominator (fused into the
    # MXU).  kern is cast to bf16 after the f32 exp -> bf16-native MXU path.
    acc_ref[...] += jnp.dot(kern.astype(jnp.bfloat16), yoh_ref[...],
                            preferred_element_type=jnp.float32)

    @pl.when(j == nj - 1)
    def _():
        acc = acc_ref[...]                               # (tm, K+1) f32
        kk = pbar_ref.shape[1]
        kern_y = acc[:, :kk]
        den = jnp.maximum(acc[:, kk:kk + 1], 1e-10)
        ratio = kern_y / den
        diff = jnp.abs(ratio - pbar_ref[...]) ** p       # (tm, K)
        # lane-dense writeback: (tm,) partial sums across the lane axis.
        out_ref[...] = jnp.sum(diff, axis=1).reshape(1, 1, tm)


def get_ece_kde_pallas(p_bar, y, bw, p, tm=None, tn=None):
    """Canonical multiclass Lp-ECE KDE estimator (K > 2) via a Pallas TPU kernel."""
    p_bar = p_bar.astype(jnp.float32)
    n, k = p_bar.shape

    # tile selection: tn lane-aligned (multiple of 128, up to 2048), tm a
    # multiple of 8 capped at 256 so larger N gets >=2 "parallel" row tiles.
    if tn is None:
        tn = min(2048, _round_up(n, 128))
    else:
        tn = _round_up(max(int(tn), 128), 128)
    if tm is None:
        tm = min(256, _round_up(n, 8))
    else:
        tm = _round_up(max(int(tm), 8), 8)

    # independent row/column padding (no lcm blow-up)
    n_rows_pad = _round_up(n, tm)
    n_cols_pad = _round_up(n, tn)
    pad_r = n_rows_pad - n
    pad_c = n_cols_pad - n

    # cheap per-sample precompute (keeps lgamma out of the kernel)
    tiny = jnp.finfo(jnp.float32).tiny
    alphas = p_bar / bw + 1.0
    log_beta = jnp.sum(gammaln(alphas), axis=1) - gammaln(jnp.sum(alphas, axis=1))  # (n,)
    logz = jnp.log(jnp.maximum(p_bar, tiny))     # clamp: never -inf -> never NaN via 0*inf

    # augmented operands: fold -log_beta into matmul 1, row-sum denom into matmul 2
    logz_aug = jnp.concatenate([logz, jnp.ones((n, 1), jnp.float32)], axis=1)       # (n, K+1)
    alpha_aug = jnp.concatenate([p_bar / bw, -log_beta[:, None]], axis=1)           # (n, K+1)
    yoh_aug = jnp.concatenate([jax.nn.one_hot(y, k, dtype=jnp.bfloat16),
                               jnp.ones((n, 1), jnp.bfloat16)], axis=1)             # (n, K+1) bf16

    # zero-pad AFTER the concat: padded *columns* are neutralized because their
    # (all-zero) rows of yoh_aug -- including the appended ones column --
    # contribute 0 to both kern_y and the denominator; padded *rows* produce
    # garbage that is sliced off below.
    logz_aug = jnp.pad(logz_aug, ((0, pad_r), (0, 0)))            # (n_rows_pad, K+1)
    alpha_aug_t = jnp.pad(alpha_aug, ((0, pad_c), (0, 0))).T      # (K+1, n_cols_pad)
    yoh_aug = jnp.pad(yoh_aug, ((0, pad_c), (0, 0)))              # (n_cols_pad, K+1) bf16
    pbar_p = jnp.pad(p_bar, ((0, pad_r), (0, 0)))                 # (n_rows_pad, K)

    grid = (n_rows_pad // tm, n_cols_pad // tn)
    row_sums = pl.pallas_call(
        functools.partial(_lp_ece_kernel, tm=tm, tn=tn, p=p),
        out_shape=jax.ShapeDtypeStruct((grid[0], 1, tm), jnp.float32),
        grid_spec=pltpu.PrefetchScalarGridSpec(
            num_scalar_prefetch=0,
            grid=grid,
            in_specs=[
                pl.BlockSpec((tm, k + 1), lambda i, j: (i, 0)),   # [log(p_bar), 1] row tile (f32)
                pl.BlockSpec((k + 1, tn), lambda i, j: (0, j)),   # [(alphas-1)^T; -log_beta] col tile (f32)
                pl.BlockSpec((tn, k + 1), lambda i, j: (j, 0)),   # [one-hot(y), 1] col tile (bf16)
                pl.BlockSpec((tm, k), lambda i, j: (i, 0)),       # p_bar row tile (f32)
            ],
            # lane-dense per-row-tile Lp partial sums
            out_specs=pl.BlockSpec((1, 1, tm), lambda i, j: (i, 0, 0)),
            scratch_shapes=[pltpu.VMEM((tm, k + 1), jnp.float32)],
        ),
        compiler_params=pltpu.CompilerParams(
            dimension_semantics=("parallel", "arbitrary"),
            vmem_limit_bytes=32 * 1024 * 1024),
    )(logz_aug, alpha_aug_t, yoh_aug, pbar_p)

    return jnp.sum(row_sums.reshape(-1)[:n]) / n


def calculate_pbar(weights_l, p_preds):
    # p_bar[n, k] = sum_m weights_l[n, m] * p_preds[n, m, k]
    return jnp.einsum("nm,nmk->nk", weights_l, p_preds)


class LpLoss:
    """Lp calibration error loss (forward only), Pallas TPU implementation."""

    def __init__(self, bw: float, p: int = 2, lambda_bce: float = 0.0):
        self.bw = bw
        self.p = p
        self.lambda_bce = lambda_bce

    def compute_reg_loss(self, p_bar, y):
        if p_bar.shape[1] > 2:
            eps = 1e-10
            logp = jnp.log(p_bar + eps)
            # NLLLoss: mean of -logp[n, y[n]]
            return -jnp.mean(jnp.take_along_axis(logp, y[:, None], axis=1))
        else:
            q = p_bar[:, 1]
            yf = y.astype(jnp.float32)
            return -jnp.mean(yf * jnp.log(q) + (1.0 - yf) * jnp.log(1.0 - q))

    def __call__(self, p_preds, weights_l, y, debug: bool = False):
        p_bar = calculate_pbar(weights_l, p_preds)
        loss_ece = get_ece_kde_pallas(p_bar, y, self.bw, self.p)
        if self.lambda_bce > 0:
            reg_loss = self.compute_reg_loss(p_bar, y)
            loss = loss_ece + self.lambda_bce * reg_loss
            if debug:
                return loss, loss_ece, reg_loss
            return loss
        return loss_ece


def _ece_kde_ref(p_bar, y, bw, p):
    """Pure-JAX reference of get_ratio_canonical (for verification)."""
    n, k = p_bar.shape
    alphas = p_bar / bw + 1.0
    log_beta = jnp.sum(gammaln(alphas), axis=1) - gammaln(jnp.sum(alphas, axis=1))
    log_kern = jnp.log(p_bar) @ (alphas - 1.0).T - log_beta[None, :]
    log_kern = log_kern + jnp.diag(jnp.full((n,), jnp.finfo(jnp.float32).min))
    kern = jnp.exp(log_kern)
    yoh = jax.nn.one_hot(y, k, dtype=jnp.float32)
    kern_y = kern @ yoh
    den = jnp.maximum(jnp.sum(kern, axis=1), 1e-10)
    ratio = kern_y / den[:, None]
    return jnp.mean(jnp.sum(jnp.abs(ratio - p_bar) ** p, axis=1))


if __name__ == "__main__":
    key = jax.random.PRNGKey(0)
    N, M, K = 200, 4, 8      # samples, ensemble members, classes (exercises padding)
    k1, k2, k3 = jax.random.split(key, 3)
    p_preds = jax.nn.softmax(jax.random.normal(k1, (N, M, K), dtype=jnp.float32), axis=-1)
    weights_l = jax.nn.softmax(jax.random.normal(k2, (N, M), dtype=jnp.float32), axis=-1)
    y = jax.random.randint(k3, (N,), 0, K, dtype=jnp.int32)

    loss_fn = LpLoss(bw=0.1, p=2, lambda_bce=0.0)
    loss = loss_fn(p_preds, weights_l, y)
    loss = jax.block_until_ready(loss)

    p_bar = calculate_pbar(weights_l, p_preds)
    ref = jax.block_until_ready(_ece_kde_ref(p_bar, y, 0.1, 2))

    assert jnp.isfinite(loss), "kernel produced non-finite loss"
    rel_err = abs(float(loss) - float(ref)) / max(abs(float(ref)), 1e-6)
    assert rel_err < 5e-2, f"mismatch vs reference: pallas={float(loss)} ref={float(ref)}"

    # also exercise the multi-tile path (several row tiles, >1 column tile,
    # diagonal/off-diagonal tiles, independently padded rows AND columns)
    loss_mt = jax.block_until_ready(get_ece_kde_pallas(p_bar, y, 0.1, 2, tm=64, tn=128))
    assert jnp.isfinite(loss_mt), "multi-tile kernel produced non-finite loss"
    rel_err_mt = abs(float(loss_mt) - float(ref)) / max(abs(float(ref)), 1e-6)
    assert rel_err_mt < 5e-2, f"multi-tile mismatch: pallas={float(loss_mt)} ref={float(ref)}"

    print("KERNEL_OK")
</pallas_src>

<mosaic_0001>
module attributes {stable_mosaic.version = 11 : i64} {
  func.func @_lp_ece_kernel(%arg0: i32, %arg1: i32, %arg2: memref<200x9xf32, #tpu.memory_space<vmem>>, %arg3: memref<9x256xf32, #tpu.memory_space<vmem>>, %arg4: memref<256x9xbf16, #tpu.memory_space<vmem>>, %arg5: memref<200x8xf32, #tpu.memory_space<vmem>>, %arg6: memref<1x1x200xf32, #tpu.memory_space<vmem>>, %arg7: memref<200x9xf32, #tpu.memory_space<vmem>>) attributes {dimension_semantics = [#tpu.dimension_semantics<parallel>, #tpu.dimension_semantics<arbitrary>], iteration_bounds = array<i64: 1, 1>, scalar_prefetch = 0 : i64, scratch_operands = 1 : i64, tpu.core_type = #tpu.core_type<tc>, window_params = [{transform_indices = @transform_0, window_bounds = array<i64: 200, 9>}, {transform_indices = @transform_1, window_bounds = array<i64: 9, 256>}, {transform_indices = @transform_2, window_bounds = array<i64: 256, 9>}, {transform_indices = @transform_3, window_bounds = array<i64: 200, 8>}, {transform_indices = @transform_4, window_bounds = array<i64: 1, 1, 200>}]} {
    %c0_i32 = arith.constant 0 : i32
    %0 = arith.cmpi eq, %arg1, %c0_i32 : i32
    %1 = arith.extui %0 : i1 to i32
    %c0_i32_0 = arith.constant 0 : i32
    %2 = arith.cmpi ne, %1, %c0_i32_0 : i32
    scf.if %2 {
      %cst_14 = arith.constant 0.000000e+00 : f32
      %27 = vector.broadcast %cst_14 : f32 to vector<200x9xf32>
      %c0_15 = arith.constant 0 : index
      %c0_16 = arith.constant 0 : index
      %28 = vector.load %arg7[%c0_15, %c0_16] : memref<200x9xf32, #tpu.memory_space<vmem>>, vector<200x9xf32>
      tpu.vector_store %arg7[%c0_15, %c0_16], %27 {strides = array<i32>} : memref<200x9xf32, #tpu.memory_space<vmem>>, vector<200x9xf32>,
    } else {
    }
    %c0 = arith.constant 0 : index
    %c0_1 = arith.constant 0 : index
    %3 = vector.load %arg2[%c0, %c0_1] : memref<200x9xf32, #tpu.memory_space<vmem>>, vector<200x9xf32>
    %c0_2 = arith.constant 0 : index
    %c0_3 = arith.constant 0 : index
    %4 = vector.load %arg3[%c0_2, %c0_3] : memref<9x256xf32, #tpu.memory_space<vmem>>, vector<9x256xf32>
    %cst = arith.constant dense<0.000000e+00> : vector<200x256xf32>
    %5 = tpu.matmul %3, %4, %cst {dimension_numbers = #tpu.dot_dimension_numbers<[1], [0], [0], [1], [0, 0, 1, 1], [], []>} : vector<200x9xf32>, vector<9x256xf32>, vector<200x256xf32> -> vector<200x256xf32>
    %6 = math.exp %5 : vector<200x256xf32>
    %c200_i32 = arith.constant 200 : i32
    %7 = arith.muli %arg0, %c200_i32 : i32
    %8 = tpu.iota {dimensions = array<i32: 0>} : vector<200x256xi32>
    %9 = vector.broadcast %7 : i32 to vector<200x256xi32>
    %10 = arith.addi %9, %8 : vector<200x256xi32>
    %c256_i32 = arith.constant 256 : i32
    %11 = arith.muli %arg1, %c256_i32 : i32
    %12 = tpu.iota {dimensions = array<i32: 1>} : vector<200x256xi32>
    %13 = vector.broadcast %11 : i32 to vector<200x256xi32>
    %14 = arith.addi %13, %12 : vector<200x256xi32>
    %15 = arith.cmpi eq, %10, %14 : vector<200x256xi32>
    %cst_4 = arith.constant 0.000000e+00 : f32
    %16 = vector.broadcast %cst_4 : f32 to vector<200x256xf32>
    %17 = arith.select %15, %16, %6 : vector<200x256xi1>, vector<200x256xf32>
    %c0_5 = arith.constant 0 : index
    %c0_6 = arith.constant 0 : index
    %18 = vector.load %arg7[%c0_5, %c0_6] : memref<200x9xf32, #tpu.memory_space<vmem>>, vector<200x9xf32>
    %19 = arith.truncf %17 : vector<200x256xf32> to vector<200x256xbf16>
    %c0_7 = arith.constant 0 : index
    %c0_8 = arith.constant 0 : index
    %20 = vector.load %arg4[%c0_7, %c0_8] : memref<256x9xbf16, #tpu.memory_space<vmem>>, vector<256x9xbf16>
    %cst_9 = arith.constant dense<0.000000e+00> : vector<200x9xf32>
    %21 = tpu.matmul %19, %20, %cst_9 {dimension_numbers = #tpu.dot_dimension_numbers<[1], [0], [0], [1], [0, 0, 1, 1], [], []>} : vector<200x256xbf16>, vector<256x9xbf16>, vector<200x9xf32> -> vector<200x9xf32>
    %22 = arith.addf %18, %21 : vector<200x9xf32>
    %c0_10 = arith.constant 0 : index
    %c0_11 = arith.constant 0 : index
    %23 = vector.load %arg7[%c0_10, %c0_11] : memref<200x9xf32, #tpu.memory_space<vmem>>, vector<200x9xf32>
    tpu.vector_store %arg7[%c0_10, %c0_11], %22 {strides = array<i32>} : memref<200x9xf32, #tpu.memory_space<vmem>>, vector<200x9xf32>,
    %c0_i32_12 = arith.constant 0 : i32
    %24 = arith.cmpi eq, %arg1, %c0_i32_12 : i32
    %25 = arith.extui %24 : i1 to i32
    %c0_i32_13 = arith.constant 0 : i32
    %26 = arith.cmpi ne, %25, %c0_i32_13 : i32
    scf.if %26 {
      %c0_14 = arith.constant 0 : index
      %c0_15 = arith.constant 0 : index
      %27 = vector.load %arg7[%c0_14, %c0_15] : memref<200x9xf32, #tpu.memory_space<vmem>>, vector<200x9xf32>
      %28 = vector.extract_strided_slice %27 {offsets = [0, 0], sizes = [200, 8], strides = [1, 1]} : vector<200x9xf32> to vector<200x8xf32>
      %29 = vector.extract_strided_slice %27 {offsets = [0, 8], sizes = [200, 1], strides = [1, 1]} : vector<200x9xf32> to vector<200x1xf32>
      %cst_16 = arith.constant 1.000000e-10 : f32
      %30 = vector.broadcast %cst_16 : f32 to vector<200x1xf32>
      %31 = arith.maximumf %29, %30 : vector<200x1xf32>
      %32 = vector.broadcast %31 : vector<200x1xf32> to vector<200x8xf32>
      %33 = arith.divf %28, %32 : vector<200x8xf32>
      %c0_17 = arith.constant 0 : index
      %c0_18 = arith.constant 0 : index
      %34 = vector.load %arg5[%c0_17, %c0_18] : memref<200x8xf32, #tpu.memory_space<vmem>>, vector<200x8xf32>
      %35 = arith.subf %33, %34 : vector<200x8xf32>
      %36 = math.absf %35 : vector<200x8xf32>
      %37 = arith.mulf %36, %36 : vector<200x8xf32>
      %cst_19 = arith.constant dense<0.000000e+00> : vector<200xf32>
      %38 = vector.multi_reduction <add>, %37, %cst_19 [1] : vector<200x8xf32> to vector<200xf32>
      %39 = vector.shape_cast %38 : vector<200xf32> to vector<1x1x200xf32>
      %c0_20 = arith.constant 0 : index
      %c0_21 = arith.constant 0 : index
      %c0_22 = arith.constant 0 : index
      %40 = vector.load %arg6[%c0_20, %c0_21, %c0_22] : memref<1x1x200xf32, #tpu.memory_space<vmem>>, vector<1x1x200xf32>
      tpu.vector_store %arg6[%c0_20, %c0_21, %c0_22], %39 {strides = array<i32>} : memref<1x1x200xf32, #tpu.memory_space<vmem>>, vector<1x1x200xf32>,
    } else {
    }
    return
  }
  func.func @transform_0(%arg0: i32, %arg1: i32) -> (i32, i32) {
    %c0_i32 = arith.constant 0 : i32
    %c0_i32_0 = arith.constant 0 : i32
    return %arg0, %c0_i32 : i32, i32
  }
  func.func @transform_1(%arg0: i32, %arg1: i32) -> (i32, i32) {
    %c0_i32 = arith.constant 0 : i32
    %c0_i32_0 = arith.constant 0 : i32
    return %c0_i32, %arg1 : i32, i32
  }
  func.func @transform_2(%arg0: i32, %arg1: i32) -> (i32, i32) {
    %c0_i32 = arith.constant 0 : i32
    %c0_i32_0 = arith.constant 0 : i32
    return %arg1, %c0_i32 : i32, i32
  }
  func.func @transform_3(%arg0: i32, %arg1: i32) -> (i32, i32) {
    %c0_i32 = arith.constant 0 : i32
    %c0_i32_0 = arith.constant 0 : i32
    return %arg0, %c0_i32 : i32, i32
  }
  func.func @transform_4(%arg0: i32, %arg1: i32) -> (i32, i32, i32) {
    %c0_i32 = arith.constant 0 : i32
    %c0_i32_0 = arith.constant 0 : i32
    %c0_i32_1 = arith.constant 0 : i32
    return %arg0, %c0_i32, %c0_i32_0 : i32, i32, i32
  }
}

</mosaic_0001>

<llo_original>
// kernel: tpu_custom_call.1
$region0: #{tpu_custom_call.1}
  #allocation0 [shape = 'u32[]', space=smem, size = 0x4, offset = 0x4, fixed_abs, tag = 'smem constant byte address 0x4 - core index']
  #allocation1 [shape = 'u32[144,128]{1,0:T(1,128)}', space=vmem, size = 0x12000, scoped, tag = 'internal scratch']
  #allocation2 [shape = 'f32[200,9]{1,0:T(8,128)}', space=vmem, size = 0x19000, scoped, tag = 'scratch operand']
  %s0 = inlined_call_operand.vmem [shape: f32[200,9], index: 0, kind: input, shape index: {}]
  %s1 = inlined_call_operand.vmem [shape: f32[9,256], index: 1, kind: input, shape index: {}]
  %s2 = inlined_call_operand.vmem [shape: bf16[256,9], index: 2, kind: input, shape index: {}]
  %s3 = inlined_call_operand.vmem [shape: f32[200,8], index: 3, kind: input, shape index: {}]
  %s4 = inlined_call_operand.hbm [shape: f32[1,1,200], index: 4, kind: output, shape index: {}]
  %s5 = sld [smem:[#allocation0]]
  $region34: #{tpu_custom_call.1} parent=0
    _
  %s7 = ssub.s32 1, %s5
  %s8 = scalar_select 0, %s7, %s5
  $region1: #{tpu_custom_call.1} parent=0
    #allocation3 [shape = 'u8[1024]{0}', space=vmem, size = 0x400, scoped, tag = 'output window, operand 0, single buffered']
    #allocation4 [shape = 's32[1]{0}', space=sflag, size = 0x4, scoped, tag = 'scoped memory for tpu_custom_call.1']
    %9 = vsyncpa [#allocation4], 0
    // Predicated region
    $region2: #{tpu_custom_call.1} parent=1 // pred_check
      _
    $region3: #{tpu_custom_call.1} parent=1 // pred_check_branch
      %11 = sbr.rel (0) target = $region5
    $region4: #{tpu_custom_call.1} parent=1 // pred_region
      _
    $region5: #{tpu_custom_call.1} parent=1 // pred_fallthru
      _
    // Predicated region
    $region6: #{tpu_custom_call.1} parent=1 // pred_check
      _
    $region7: #{tpu_custom_call.1} parent=1 // pred_check_branch
      %13 = sbr.rel (0) target = $region9
    $region8: #{tpu_custom_call.1} parent=1 // pred_region
      _
    $region9: #{tpu_custom_call.1} parent=1 // pred_fallthru
      _
    // Predicated region
    $region10: #{tpu_custom_call.1} parent=1 // pred_check
      _
    $region11: #{tpu_custom_call.1} parent=1 // pred_check_branch
      %15 = sbr.rel (0) target = $region13
    $region12: #{tpu_custom_call.1} parent=1 // pred_region
      _
    $region13: #{tpu_custom_call.1} parent=1 // pred_fallthru
      _
    // Predicated region
    $region14: #{tpu_custom_call.1} parent=1 // pred_check
      _
    $region15: #{tpu_custom_call.1} parent=1 // pred_check_branch
      %17 = sbr.rel (0) target = $region17
    $region16: #{tpu_custom_call.1} parent=1 // pred_region
      _
    $region17: #{tpu_custom_call.1} parent=1 // pred_fallthru
      _
    %p19 = scmp.eq.s32.totalorder 0, 0
    // Predicated region
    $region18: #{tpu_custom_call.1} parent=1 // pred_check
      %p20 = pneg %p19
    $region19: #{tpu_custom_call.1} parent=1 // pred_check_branch
      %22 = sbr.rel (%p20) target = $region21
    $region20: #{tpu_custom_call.1} parent=1 // pred_region
      %vm23 = vcmask 72704
      %24 = vst.msk [vmem:[#allocation2] sm:$0xff] %vm23, 0.0
      %25 = vst.msk [vmem:[#allocation2 + $0x8] sm:$0xff] %vm23, 0.0
      %26 = vst.msk [vmem:[#allocation2 + $0x10] sm:$0xff] %vm23, 0.0
      %27 = vst.msk [vmem:[#allocation2 + $0x18] sm:$0xff] %vm23, 0.0
      %28 = vst.msk [vmem:[#allocation2 + $0x20] sm:$0xff] %vm23, 0.0
      %29 = vst.msk [vmem:[#allocation2 + $0x28] sm:$0xff] %vm23, 0.0
      %30 = vst.msk [vmem:[#allocation2 + $0x30] sm:$0xff] %vm23, 0.0
      %31 = vst.msk [vmem:[#allocation2 + $0x38] sm:$0xff] %vm23, 0.0
      %32 = vst.msk [vmem:[#allocation2 + $0x40] sm:$0xff] %vm23, 0.0
      %33 = vst.msk [vmem:[#allocation2 + $0x48] sm:$0xff] %vm23, 0.0
      %34 = vst.msk [vmem:[#allocation2 + $0x50] sm:$0xff] %vm23, 0.0
      %35 = vst.msk [vmem:[#allocation2 + $0x58] sm:$0xff] %vm23, 0.0
      %36 = vst.msk [vmem:[#allocation2 + $0x60] sm:$0xff] %vm23, 0.0
      %37 = vst.msk [vmem:[#allocation2 + $0x68] sm:$0xff] %vm23, 0.0
      %38 = vst.msk [vmem:[#allocation2 + $0x70] sm:$0xff] %vm23, 0.0
      %39 = vst.msk [vmem:[#allocation2 + $0x78] sm:$0xff] %vm23, 0.0
      %40 = vst.msk [vmem:[#allocation2 + $0x80] sm:$0xff] %vm23, 0.0
      %41 = vst.msk [vmem:[#allocation2 + $0x88] sm:$0xff] %vm23, 0.0
      %42 = vst.msk [vmem:[#allocation2 + $0x90] sm:$0xff] %vm23, 0.0
      %43 = vst.msk [vmem:[#allocation2 + $0x98] sm:$0xff] %vm23, 0.0
      %44 = vst.msk [vmem:[#allocation2 + $0xa0] sm:$0xff] %vm23, 0.0
      %45 = vst.msk [vmem:[#allocation2 + $0xa8] sm:$0xff] %vm23, 0.0
      %46 = vst.msk [vmem:[#allocation2 + $0xb0] sm:$0xff] %vm23, 0.0
      %47 = vst.msk [vmem:[#allocation2 + $0xb8] sm:$0xff] %vm23, 0.0
      %48 = vst.msk [vmem:[#allocation2 + $0xc0] sm:$0xff] %vm23, 0.0
    $region21: #{tpu_custom_call.1} parent=1 // pred_fallthru
      _
    %v49 = vld [vmem:[%s0] sm:$0xff]
    %v50 = vld [vmem:[%s0 + $0x8] sm:$0xff]
    %v51 = vld [vmem:[%s0 + $0x10] sm:$0xff]
    %v52 = vld [vmem:[%s0 + $0x18] sm:$0xff]
    %v53 = vld [vmem:[%s0 + $0x20] sm:$0xff]
    %v54 = vld [vmem:[%s0 + $0x28] sm:$0xff]
    %v55 = vld [vmem:[%s0 + $0x30] sm:$0xff]
    %v56 = vld [vmem:[%s0 + $0x38] sm:$0xff]
    %v57 = vld [vmem:[%s0 + $0x40] sm:$0xff]
    %v58 = vld [vmem:[%s0 + $0x48] sm:$0xff]
    %v59 = vld [vmem:[%s0 + $0x50] sm:$0xff]
    %v60 = vld [vmem:[%s0 + $0x58] sm:$0xff]
    %v61 = vld [vmem:[%s0 + $0x60] sm:$0xff]
    %v62 = vld [vmem:[%s0 + $0x68] sm:$0xff]
    %v63 = vld [vmem:[%s0 + $0x70] sm:$0xff]
    %v64 = vld [vmem:[%s0 + $0x78] sm:$0xff]
    %v65 = vld [vmem:[%s0 + $0x80] sm:$0xff]
    %v66 = vld [vmem:[%s0 + $0x88] sm:$0xff]
    %v67 = vld [vmem:[%s0 + $0x90] sm:$0xff]
    %v68 = vld [vmem:[%s0 + $0x98] sm:$0xff]
    %v69 = vld [vmem:[%s0 + $0xa0] sm:$0xff]
    %v70 = vld [vmem:[%s0 + $0xa8] sm:$0xff]
    %v71 = vld [vmem:[%s0 + $0xb0] sm:$0xff]
    %v72 = vld [vmem:[%s0 + $0xb8] sm:$0xff]
    %v73 = vld [vmem:[%s0 + $0xc0] sm:$0xff]
    %v74 = vld [vmem:[%s1] sm:$0xff]
    %v75 = vld [vmem:[%s1 + $0x8] sm:$0xff]
    %v76 = vld [vmem:[%s1 + $0x10] sm:$0x1]
    %v77 = vld [vmem:[%s1 + $0x18] sm:$0x1]
    %vm78 = vcmask 72704
    %v80 = vsel %vm78, %v49, 0
    %v83 = vsel %vm78, %v50, 0
    %v86 = vsel %vm78, %v51, 0
    %v89 = vsel %vm78, %v52, 0
    %v92 = vsel %vm78, %v53, 0
    %v95 = vsel %vm78, %v54, 0
    %v98 = vsel %vm78, %v55, 0
    %v101 = vsel %vm78, %v56, 0
    %v104 = vsel %vm78, %v57, 0
    %v107 = vsel %vm78, %v58, 0
    %v110 = vsel %vm78, %v59, 0
    %v113 = vsel %vm78, %v60, 0
    %v116 = vsel %vm78, %v61, 0
    %v119 = vsel %vm78, %v62, 0
    %v122 = vsel %vm78, %v63, 0
    %v125 = vsel %vm78, %v64, 0
    %v128 = vsel %vm78, %v65, 0
    %v131 = vsel %vm78, %v66, 0
    %v134 = vsel %vm78, %v67, 0
    %v137 = vsel %vm78, %v68, 0
    %v140 = vsel %vm78, %v69, 0
    %v143 = vsel %vm78, %v70, 0
    %v146 = vsel %vm78, %v71, 0
    %v149 = vsel %vm78, %v72, 0
    %v152 = vsel %vm78, %v73, 0
    %vm154 = vcmask 1040384
    %v156 = vsel %vm154, %v76, 0
    %v159 = vsel %vm154, %v77, 0
    %161 = vmatprep.subr.mxu0 %v75
    %162 = vmatpush1.msra.mxu0 %v74
    %163 = vmatprep.subr.mxu0 %v159
    %164 = vmatpush1.msra.mxu0 %v156
    %165 = vmatprep.subr.mxu0 0.0
    %166 = vmatpush1.msra.mxu0 0.0
    %167 = vmatprep.subr.mxu0 0.0
    %168 = vmatpush1.msra.mxu0 0.0
    %169 = vmatprep.subr.mxu0 0.0
    %170 = vmatpush1.msra.mxu0 0.0
    %171 = vmatprep.subr.mxu0 0.0
    %172 = vmatpush1.msra.mxu0 0.0
    %173 = vmatprep.subr.mxu0 0.0
    %174 = vmatpush1.msra.mxu0 0.0
    %175 = vmatprep.subr.mxu0 0.0
    %176 = vmatpush1.msra.mxu0 0.0
    %177 = vmatprep.subr.mxu0 0.0
    %178 = vmatpush1.msra.mxu0 0.0
    %179 = vmatprep.subr.mxu0 0.0
    %180 = vmatpush1.msra.mxu0 0.0
    %181 = vmatprep.subr.mxu0 0.0
    %182 = vmatpush1.msra.mxu0 0.0
    %183 = vmatprep.subr.mxu0 0.0
    %184 = vmatpush1.msra.mxu0 0.0
    %185 = vmatprep.subr.mxu0 0.0
    %186 = vmatpush1.msra.mxu0 0.0
    %187 = vmatprep.subr.mxu0 0.0
    %188 = vmatpush1.msra.mxu0 0.0
    %189 = vmatprep.subr.mxu0 0.0
    %190 = vmatpush1.msra.mxu0 0.0
    %191 = vmatprep.subr.mxu0 0.0
    %192 = vmatpush1.msra.mxu0 0.0
    %193 = vmatprep.subr.mxu0 0.0
    %194 = vmatpush1.msra.mxu0 0.0
    %195 = vmatprep.subr.mxu0 0.0
    %196 = vmatpush1.msra.mxu0 0.0
    %197 = vmatprep.subr.mxu0 0.0
    %198 = vmatpush1.msra.mxu0 0.0
    %199 = vmatprep.subr.mxu0 0.0
    %200 = vmatpush1.msra.mxu0 0.0
    %201 = vmatprep.subr.mxu0 0.0
    %202 = vmatpush1.msra.mxu0 0.0
    %203 = vmatprep.subr.mxu0 0.0
    %204 = vmatpush1.msra.mxu0 0.0
    %205 = vmatprep.subr.mxu0 0.0
    %206 = vmatpush1.msra.mxu0 0.0
    %207 = vmatprep.subr.mxu0 0.0
    %208 = vmatpush1.msra.mxu0 0.0
    %209 = vmatprep.subr.mxu0 0.0
    %210 = vmatpush1.msra.mxu0 0.0
    %211 = vmatprep.subr.mxu0 0.0
    %212 = vmatpush1.msra.mxu0 0.0
    %213 = vmatprep.subr.mxu0 0.0
    %214 = vmatpush1.msra.mxu0 0.0
    %215 = vmatprep.subr.mxu0 0.0
    %216 = vmatpush1.msra.mxu0 0.0
    %217 = vmatprep.subr.mxu0 0.0
    %218 = vmatpush1.msra.mxu0 0.0
    %219 = vmatprep.subr.mxu0 0.0
    %220 = vmatpush1.msra.mxu0 0.0
    %221 = vmatprep.subr.mxu0 0.0
    %222 = vmatpush1.msra.mxu0 0.0
    %223 = vmatprep.subr.mxu0 0.0
    %224 = vmatpush1.msra.mxu0 0.0
    %225 = vmatprep.mubr.f32.mxu0 0.0
    %226 = vmatmul.mubr.f32.gmra.mrb[0].mxu0 %v80
    %v227 = vpop.f32.mrb[0].mxu0
    %v228 = vadd.f32 0.0, %v227
    %v229 = vpop.f32.mrb[0].mxu0
    %v230 = vadd.f32 0.0, %v229
    %231 = vmatprep.mubr.f32.mxu0 0.0
    %232 = vmatmul.mubr.f32.gmra.mrb[0].mxu0 %v83
    %v233 = vpop.f32.mrb[0].mxu0
    %v234 = vadd.f32 0.0, %v233
    %v235 = vpop.f32.mrb[0].mxu0
    %v236 = vadd.f32 0.0, %v235
    %237 = vmatprep.mubr.f32.mxu0 0.0
    %238 = vmatmul.mubr.f32.gmra.mrb[0].mxu0 %v86
    %v239 = vpop.f32.mrb[0].mxu0
    %v240 = vadd.f32 0.0, %v239
    %v241 = vpop.f32.mrb[0].mxu0
    %v242 = vadd.f32 0.0, %v241
    %243 = vmatprep.mubr.f32.mxu0 0.0
    %244 = vmatmul.mubr.f32.gmra.mrb[0].mxu0 %v89
    %v245 = vpop.f32.mrb[0].mxu0
    %v246 = vadd.f32 0.0, %v245
    %v247 = vpop.f32.mrb[0].mxu0
    %v248 = vadd.f32 0.0, %v247
    %249 = vmatprep.mubr.f32.mxu0 0.0
    %250 = vmatmul.mubr.f32.gmra.mrb[0].mxu0 %v92
    %v251 = vpop.f32.mrb[0].mxu0
    %v252 = vadd.f32 0.0, %v251
    %v253 = vpop.f32.mrb[0].mxu0
    %v254 = vadd.f32 0.0, %v253
    %255 = vmatprep.mubr.f32.mxu0 0.0
    %256 = vmatmul.mubr.f32.gmra.mrb[0].mxu0 %v95
    %v257 = vpop.f32.mrb[0].mxu0
    %v258 = vadd.f32 0.0, %v257
    %v259 = vpop.f32.mrb[0].mxu0
    %v260 = vadd.f32 0.0, %v259
    %261 = vmatprep.mubr.f32.mxu0 0.0
    %262 = vmatmul.mubr.f32.gmra.mrb[0].mxu0 %v98
    %v263 = vpop.f32.mrb[0].mxu0
    %v264 = vadd.f32 0.0, %v263
    %v265 = vpop.f32.mrb[0].mxu0
    %v266 = vadd.f32 0.0, %v265
    %267 = vmatprep.mubr.f32.mxu0 0.0
    %268 = vmatmul.mubr.f32.gmra.mrb[0].mxu0 %v101
    %v269 = vpop.f32.mrb[0].mxu0
    %v270 = vadd.f32 0.0, %v269
    %v271 = vpop.f32.mrb[0].mxu0
    %v272 = vadd.f32 0.0, %v271
    %273 = vmatprep.mubr.f32.mxu0 0.0
    %274 = vmatmul.mubr.f32.gmra.mrb[0].mxu0 %v104
    %v275 = vpop.f32.mrb[0].mxu0
    %v276 = vadd.f32 0.0, %v275
    %v277 = vpop.f32.mrb[0].mxu0
    %v278 = vadd.f32 0.0, %v277
    %279 = vmatprep.mubr.f32.mxu0 0.0
    %280 = vmatmul.mubr.f32.gmra.mrb[0].mxu0 %v107
    %v281 = vpop.f32.mrb[0].mxu0
    %v282 = vadd.f32 0.0, %v281
    %v283 = vpop.f32.mrb[0].mxu0
    %v284 = vadd.f32 0.0, %v283
    %285 = vmatprep.mubr.f32.mxu0 0.0
    %286 = vmatmul.mubr.f32.gmra.mrb[0].mxu0 %v110
    %v287 = vpop.f32.mrb[0].mxu0
    %v288 = vadd.f32 0.0, %v287
    %v289 = vpop.f32.mrb[0].mxu0
    %v290 = vadd.f32 0.0, %v289
    %291 = vmatprep.mubr.f32.mxu0 0.0
    %292 = vmatmul.mubr.f32.gmra.mrb[0].mxu0 %v113
    %v293 = vpop.f32.mrb[0].mxu0
    %v294 = vadd.f32 0.0, %v293
    %v295 = vpop.f32.mrb[0].mxu0
    %v296 = vadd.f32 0.0, %v295
    %297 = vmatprep.mubr.f32.mxu0 0.0
    %298 = vmatmul.mubr.f32.gmra.mrb[0].mxu0 %v116
    %v299 = vpop.f32.mrb[0].mxu0
    %v300 = vadd.f32 0.0, %v299
    %v301 = vpop.f32.mrb[0].mxu0
    %v302 = vadd.f32 0.0, %v301
    %303 = vmatprep.mubr.f32.mxu0 0.0
    %304 = vmatmul.mubr.f32.gmra.mrb[0].mxu0 %v119
    %v305 = vpop.f32.mrb[0].mxu0
    %v306 = vadd.f32 0.0, %v305
    %v307 = vpop.f32.mrb[0].mxu0
    %v308 = vadd.f32 0.0, %v307
    %309 = vmatprep.mubr.f32.mxu0 0.0
    %310 = vmatmul.mubr.f32.gmra.mrb[0].mxu0 %v122
    %v311 = vpop.f32.mrb[0].mxu0
    %v312 = vadd.f32 0.0, %v311
    %v313 = vpop.f32.mrb[0].mxu0
    %v314 = vadd.f32 0.0, %v313
    %315 = vmatprep.mubr.f32.mxu0 0.0
    %316 = vmatmul.mubr.f32.gmra.mrb[0].mxu0 %v125
    %v317 = vpop.f32.mrb[0].mxu0
    %v318 = vadd.f32 0.0, %v317
    %v319 = vpop.f32.mrb[0].mxu0
    %v320 = vadd.f32 0.0, %v319
    %321 = vmatprep.mubr.f32.mxu0 0.0
    %322 = vmatmul.mubr.f32.gmra.mrb[0].mxu0 %v128
    %v323 = vpop.f32.mrb[0].mxu0
    %v324 = vadd.f32 0.0, %v323
    %v325 = vpop.f32.mrb[0].mxu0
    %v326 = vadd.f32 0.0, %v325
    %327 = vmatprep.mubr.f32.mxu0 0.0
    %328 = vmatmul.mubr.f32.gmra.mrb[0].mxu0 %v131
    %v329 = vpop.f32.mrb[0].mxu0
    %v330 = vadd.f32 0.0, %v329
    %v331 = vpop.f32.mrb[0].mxu0
    %v332 = vadd.f32 0.0, %v331
    %333 = vmatprep.mubr.f32.mxu0 0.0
    %334 = vmatmul.mubr.f32.gmra.mrb[0].mxu0 %v134
    %v335 = vpop.f32.mrb[0].mxu0
    %v336 = vadd.f32 0.0, %v335
    %v337 = vpop.f32.mrb[0].mxu0
    %v338 = vadd.f32 0.0, %v337
    %339 = vmatprep.mubr.f32.mxu0 0.0
    %340 = vmatmul.mubr.f32.gmra.mrb[0].mxu0 %v137
    %v341 = vpop.f32.mrb[0].mxu0
    %v342 = vadd.f32 0.0, %v341
    %v343 = vpop.f32.mrb[0].mxu0
    %v344 = vadd.f32 0.0, %v343
    %345 = vmatprep.mubr.f32.mxu0 0.0
    %346 = vmatmul.mubr.f32.gmra.mrb[0].mxu0 %v140
    %v347 = vpop.f32.mrb[0].mxu0
    %v348 = vadd.f32 0.0, %v347
    %v349 = vpop.f32.mrb[0].mxu0
    %v350 = vadd.f32 0.0, %v349
    %351 = vmatprep.mubr.f32.mxu0 0.0
    %352 = vmatmul.mubr.f32.gmra.mrb[0].mxu0 %v143
    %v353 = vpop.f32.mrb[0].mxu0
    %v354 = vadd.f32 0.0, %v353
    %v355 = vpop.f32.mrb[0].mxu0
    %v356 = vadd.f32 0.0, %v355
    %357 = vmatprep.mubr.f32.mxu0 0.0
    %358 = vmatmul.mubr.f32.gmra.mrb[0].mxu0 %v146
    %v359 = vpop.f32.mrb[0].mxu0
    %v360 = vadd.f32 0.0, %v359
    %v361 = vpop.f32.mrb[0].mxu0
    %v362 = vadd.f32 0.0, %v361
    %363 = vmatprep.mubr.f32.mxu0 0.0
    %364 = vmatmul.mubr.f32.gmra.mrb[0].mxu0 %v149
    %v365 = vpop.f32.mrb[0].mxu0
    %v366 = vadd.f32 0.0, %v365
    %v367 = vpop.f32.mrb[0].mxu0
    %v368 = vadd.f32 0.0, %v367
    %369 = vmatprep.mubr.f32.mxu0 0.0
    %370 = vmatmul.mubr.f32.gmra.mrb[0].mxu0 %v152
    %v371 = vpop.f32.mrb[0].mxu0
    %v372 = vadd.f32 0.0, %v371
    %v373 = vpop.f32.mrb[0].mxu0
    %v374 = vadd.f32 0.0, %v373
    %375 = vdwg.mxu0
    %v376 = vmul.f32 %v228, 1.442695
    %v377 = vpow.pop %v376
    %v378 = vmul.f32 %v230, 1.442695
    %v379 = vpow.pop %v378
    %v380 = vmul.f32 %v234, 1.442695
    %v381 = vpow.pop %v380
    %v382 = vmul.f32 %v236, 1.442695
    %v383 = vpow.pop %v382
    %v384 = vmul.f32 %v240, 1.442695
    %v385 = vpow.pop %v384
    %v386 = vmul.f32 %v242, 1.442695
    %v387 = vpow.pop %v386
    %v388 = vmul.f32 %v246, 1.442695
    %v389 = vpow.pop %v388
    %v390 = vmul.f32 %v248, 1.442695
    %v391 = vpow.pop %v390
    %v392 = vmul.f32 %v252, 1.442695
    %v393 = vpow.pop %v392
    %v394 = vmul.f32 %v254, 1.442695
    %v395 = vpow.pop %v394
    %v396 = vmul.f32 %v258, 1.442695
    %v397 = vpow.pop %v396
    %v398 = vmul.f32 %v260, 1.442695
    %v399 = vpow.pop %v398
    %v400 = vmul.f32 %v264, 1.442695
    %v401 = vpow.pop %v400
    %v402 = vmul.f32 %v266, 1.442695
    %v403 = vpow.pop %v402
    %v404 = vmul.f32 %v270, 1.442695
    %v405 = vpow.pop %v404
    %v406 = vmul.f32 %v272, 1.442695
    %v407 = vpow.pop %v406
    %v408 = vmul.f32 %v276, 1.442695
    %v409 = vpow.pop %v408
    %v410 = vmul.f32 %v278, 1.442695
    %v411 = vpow.pop %v410
    %v412 = vmul.f32 %v282, 1.442695
    %v413 = vpow.pop %v412
    %v414 = vmul.f32 %v284, 1.442695
    %v415 = vpow.pop %v414
    %v416 = vmul.f32 %v288, 1.442695
    %v417 = vpow.pop %v416
    %v418 = vmul.f32 %v290, 1.442695
    %v419 = vpow.pop %v418
    %v420 = vmul.f32 %v294, 1.442695
    %v421 = vpow.pop %v420
    %v422 = vmul.f32 %v296, 1.442695
    %v423 = vpow.pop %v422
    %v424 = vmul.f32 %v300, 1.442695
    %v425 = vpow.pop %v424
    %v426 = vmul.f32 %v302, 1.442695
    %v427 = vpow.pop %v426
    %v428 = vmul.f32 %v306, 1.442695
    %v429 = vpow.pop %v428
    %v430 = vmul.f32 %v308, 1.442695
    %v431 = vpow.pop %v430
    %v432 = vmul.f32 %v312, 1.442695
    %v433 = vpow.pop %v432
    %v434 = vmul.f32 %v314, 1.442695
    %v435 = vpow.pop %v434
    %v436 = vmul.f32 %v318, 1.442695
    %v437 = vpow.pop %v436
    %v438 = vmul.f32 %v320, 1.442695
    %v439 = vpow.pop %v438
    %v440 = vmul.f32 %v324, 1.442695
    %v441 = vpow.pop %v440
    %v442 = vmul.f32 %v326, 1.442695
    %v443 = vpow.pop %v442
    %v444 = vmul.f32 %v330, 1.442695
    %v445 = vpow.pop %v444
    %v446 = vmul.f32 %v332, 1.442695
    %v447 = vpow.pop %v446
    %v448 = vmul.f32 %v336, 1.442695
    %v449 = vpow.pop %v448
    %v450 = vmul.f32 %v338, 1.442695
    %v451 = vpow.pop %v450
    %v452 = vmul.f32 %v342, 1.442695
    %v453 = vpow.pop %v452
    %v454 = vmul.f32 %v344, 1.442695
    %v455 = vpow.pop %v454
    %v456 = vmul.f32 %v348, 1.442695
    %v457 = vpow.pop %v456
    %v458 = vmul.f32 %v350, 1.442695
    %v459 = vpow.pop %v458
    %v460 = vmul.f32 %v354, 1.442695
    %v461 = vpow.pop %v460
    %v462 = vmul.f32 %v356, 1.442695
    %v463 = vpow.pop %v462
    %v464 = vmul.f32 %v360, 1.442695
    %v465 = vpow.pop %v464
    %v466 = vmul.f32 %v362, 1.442695
    %v467 = vpow.pop %v466
    %v468 = vmul.f32 %v366, 1.442695
    %v469 = vpow.pop %v468
    %v470 = vmul.f32 %v368, 1.442695
    %v471 = vpow.pop %v470
    %v472 = vmul.f32 %v372, 1.442695
    %v473 = vpow.pop %v472
    %v474 = vmul.f32 %v374, 1.442695
    %v475 = vpow.pop %v474
    %s476 = smul.u32 0, 200
    %v477 = vlaneseq
    %v478 = vshrl.u32 %v477, 7
    %v479 = vadd.s32 %v478, 8
    %v480 = vadd.s32 %v478, 16
    %v481 = vadd.s32 %v478, 24
    %v482 = vadd.s32 %v478, 32
    %v483 = vadd.s32 %v478, 40
    %v484 = vadd.s32 %v478, 48
    %v485 = vadd.s32 %v478, 56
    %v486 = vadd.s32 %v478, 64
    %v487 = vadd.s32 %v478, 72
    %v488 = vadd.s32 %v478, 80
    %v489 = vadd.s32 %v478, 88
    %v490 = vadd.s32 %v478, 96
    %v491 = vadd.s32 %v478, 104
    %v492 = vadd.s32 %v478, 112
    %v493 = vadd.s32 %v478, 120
    %v494 = vadd.s32 %v478, 128
    %v495 = vadd.s32 %v478, 136
    %v496 = vadd.s32 %v478, 144
    %v497 = vadd.s32 %v478, 152
    %v498 = vadd.s32 %v478, 160
    %v499 = vadd.s32 %v478, 168
    %v500 = vadd.s32 %v478, 176
    %v501 = vadd.s32 %v478, 184
    %v502 = vadd.s32 %v478, 192
    %v503 = vstv %s476
    %v504 = vadd.s32 %v503, %v478
    %v505 = vadd.s32 %v503, %v479
    %v506 = vadd.s32 %v503, %v480
    %v507 = vadd.s32 %v503, %v481
    %v508 = vadd.s32 %v503, %v482
    %v509 = vadd.s32 %v503, %v483
    %v510 = vadd.s32 %v503, %v484
    %v511 = vadd.s32 %v503, %v485
    %v512 = vadd.s32 %v503, %v486
    %v513 = vadd.s32 %v503, %v487
    %v514 = vadd.s32 %v503, %v488
    %v515 = vadd.s32 %v503, %v489
    %v516 = vadd.s32 %v503, %v490
    %v517 = vadd.s32 %v503, %v491
    %v518 = vadd.s32 %v503, %v492
    %v519 = vadd.s32 %v503, %v493
    %v520 = vadd.s32 %v503, %v494
    %v521 = vadd.s32 %v503, %v495
    %v522 = vadd.s32 %v503, %v496
    %v523 = vadd.s32 %v503, %v497
    %v524 = vadd.s32 %v503, %v498
    %v525 = vadd.s32 %v503, %v499
    %v526 = vadd.s32 %v503, %v500
    %v527 = vadd.s32 %v503, %v501
    %v528 = vadd.s32 %v503, %v502
    %s529 = smul.u32 0, 256
    %v530 = vlaneseq
    %v531 = vand.u32 %v530, 127
    %v532 = vadd.s32 %v531, 128
    %v533 = vstv %s529
    %v534 = vadd.s32 %v533, %v531
    %v535 = vadd.s32 %v533, %v532
    %vm536 = vcmp.eq.s32.totalorder %v504, %v534
    %vm537 = vcmp.eq.s32.totalorder %v504, %v535
    %vm538 = vcmp.eq.s32.totalorder %v505, %v534
    %vm539 = vcmp.eq.s32.totalorder %v505, %v535
    %vm540 = vcmp.eq.s32.totalorder %v506, %v534
    %vm541 = vcmp.eq.s32.totalorder %v506, %v535
    %vm542 = vcmp.eq.s32.totalorder %v507, %v534
    %vm543 = vcmp.eq.s32.totalorder %v507, %v535
    %vm544 = vcmp.eq.s32.totalorder %v508, %v534
    %vm545 = vcmp.eq.s32.totalorder %v508, %v535
    %vm546 = vcmp.eq.s32.totalorder %v509, %v534
    %vm547 = vcmp.eq.s32.totalorder %v509, %v535
    %vm548 = vcmp.eq.s32.totalorder %v510, %v534
    %vm549 = vcmp.eq.s32.totalorder %v510, %v535
    %vm550 = vcmp.eq.s32.totalorder %v511, %v534
    %vm551 = vcmp.eq.s32.totalorder %v511, %v535
    %vm552 = vcmp.eq.s32.totalorder %v512, %v534
    %vm553 = vcmp.eq.s32.totalorder %v512, %v535
    %vm554 = vcmp.eq.s32.totalorder %v513, %v534
    %vm555 = vcmp.eq.s32.totalorder %v513, %v535
    %vm556 = vcmp.eq.s32.totalorder %v514, %v534
    %vm557 = vcmp.eq.s32.totalorder %v514, %v535
    %vm558 = vcmp.eq.s32.totalorder %v515, %v534
    %vm559 = vcmp.eq.s32.totalorder %v515, %v535
    %vm560 = vcmp.eq.s32.totalorder %v516, %v534
    %vm561 = vcmp.eq.s32.totalorder %v516, %v535
    %vm562 = vcmp.eq.s32.totalorder %v517, %v534
    %vm563 = vcmp.eq.s32.totalorder %v517, %v535
    %vm564 = vcmp.eq.s32.totalorder %v518, %v534
    %vm565 = vcmp.eq.s32.totalorder %v518, %v535
    %vm566 = vcmp.eq.s32.totalorder %v519, %v534
    %vm567 = vcmp.eq.s32.totalorder %v519, %v535
    %vm568 = vcmp.eq.s32.totalorder %v520, %v534
    %vm569 = vcmp.eq.s32.totalorder %v520, %v535
    %vm570 = vcmp.eq.s32.totalorder %v521, %v534
    %vm571 = vcmp.eq.s32.totalorder %v521, %v535
    %vm572 = vcmp.eq.s32.totalorder %v522, %v534
    %vm573 = vcmp.eq.s32.totalorder %v522, %v535
    %vm574 = vcmp.eq.s32.totalorder %v523, %v534
    %vm575 = vcmp.eq.s32.totalorder %v523, %v535
    %vm576 = vcmp.eq.s32.totalorder %v524, %v534
    %vm577 = vcmp.eq.s32.totalorder %v524, %v535
    %vm578 = vcmp.eq.s32.totalorder %v525, %v534
    %vm579 = vcmp.eq.s32.totalorder %v525, %v535
    %vm580 = vcmp.eq.s32.totalorder %v526, %v534
    %vm581 = vcmp.eq.s32.totalorder %v526, %v535
    %vm582 = vcmp.eq.s32.totalorder %v527, %v534
    %vm583 = vcmp.eq.s32.totalorder %v527, %v535
    %vm584 = vcmp.eq.s32.totalorder %v528, %v534
    %vm585 = vcmp.eq.s32.totalorder %v528, %v535
    %v586 = vsel %vm536, 0.0, %v377
    %v587 = vsel %vm537, 0.0, %v379
    %v588 = vsel %vm538, 0.0, %v381
    %v589 = vsel %vm539, 0.0, %v383
    %v590 = vsel %vm540, 0.0, %v385
    %v591 = vsel %vm541, 0.0, %v387
    %v592 = vsel %vm542, 0.0, %v389
    %v593 = vsel %vm543, 0.0, %v391
    %v594 = vsel %vm544, 0.0, %v393
    %v595 = vsel %vm545, 0.0, %v395
    %v596 = vsel %vm546, 0.0, %v397
    %v597 = vsel %vm547, 0.0, %v399
    %v598 = vsel %vm548, 0.0, %v401
    %v599 = vsel %vm549, 0.0, %v403
    %v600 = vsel %vm550, 0.0, %v405
    %v601 = vsel %vm551, 0.0, %v407
    %v602 = vsel %vm552, 0.0, %v409
    %v603 = vsel %vm553, 0.0, %v411
    %v604 = vsel %vm554, 0.0, %v413
    %v605 = vsel %vm555, 0.0, %v415
    %v606 = vsel %vm556, 0.0, %v417
    %v607 = vsel %vm557, 0.0, %v419
    %v608 = vsel %vm558, 0.0, %v421
    %v609 = vsel %vm559, 0.0, %v423
    %v610 = vsel %vm560, 0.0, %v425
    %v611 = vsel %vm561, 0.0, %v427
    %v612 = vsel %vm562, 0.0, %v429
    %v613 = vsel %vm563, 0.0, %v431
    %v614 = vsel %vm564, 0.0, %v433
    %v615 = vsel %vm565, 0.0, %v435
    %v616 = vsel %vm566, 0.0, %v437
    %v617 = vsel %vm567, 0.0, %v439
    %v618 = vsel %vm568, 0.0, %v441
    %v619 = vsel %vm569, 0.0, %v443
    %v620 = vsel %vm570, 0.0, %v445
    %v621 = vsel %vm571, 0.0, %v447
    %v622 = vsel %vm572, 0.0, %v449
    %v623 = vsel %vm573, 0.0, %v451
    %v624 = vsel %vm574, 0.0, %v453
    %v625 = vsel %vm575, 0.0, %v455
    %v626 = vsel %vm576, 0.0, %v457
    %v627 = vsel %vm577, 0.0, %v459
    %v628 = vsel %vm578, 0.0, %v461
    %v629 = vsel %vm579, 0.0, %v463
    %v630 = vsel %vm580, 0.0, %v465
    %v631 = vsel %vm581, 0.0, %v467
    %v632 = vsel %vm582, 0.0, %v469
    %v633 = vsel %vm583, 0.0, %v471
    %v634 = vsel %vm584, 0.0, %v473
    %v635 = vsel %vm585, 0.0, %v475
    %v636 = vld [vmem:[#allocation2] sm:$0xff]
    %v637 = vld [vmem:[#allocation2 + $0x8] sm:$0xff]
    %v638 = vld [vmem:[#allocation2 + $0x10] sm:$0xff]
    %v639 = vld [vmem:[#allocation2 + $0x18] sm:$0xff]
    %v640 = vld [vmem:[#allocation2 + $0x20] sm:$0xff]
    %v641 = vld [vmem:[#allocation2 + $0x28] sm:$0xff]
    %v642 = vld [vmem:[#allocation2 + $0x30] sm:$0xff]
    %v643 = vld [vmem:[#allocation2 + $0x38] sm:$0xff]
    %v644 = vld [vmem:[#allocation2 + $0x40] sm:$0xff]
    %v645 = vld [vmem:[#allocation2 + $0x48] sm:$0xff]
    %v646 = vld [vmem:[#allocation2 + $0x50] sm:$0xff]
    %v647 = vld [vmem:[#allocation2 + $0x58] sm:$0xff]
    %v648 = vld [vmem:[#allocation2 + $0x60] sm:$0xff]
    %v649 = vld [vmem:[#allocation2 + $0x68] sm:$0xff]
    %v650 = vld [vmem:[#allocation2 + $0x70] sm:$0xff]
    %v651 = vld [vmem:[#allocation2 + $0x78] sm:$0xff]
    %v652 = vld [vmem:[#allocation2 + $0x80] sm:$0xff]
    %v653 = vld [vmem:[#allocation2 + $0x88] sm:$0xff]
    %v654 = vld [vmem:[#allocation2 + $0x90] sm:$0xff]
    %v655 = vld [vmem:[#allocation2 + $0x98] sm:$0xff]
    %v656 = vld [vmem:[#allocation2 + $0xa0] sm:$0xff]
    %v657 = vld [vmem:[#allocation2 + $0xa8] sm:$0xff]
    %v658 = vld [vmem:[#allocation2 + $0xb0] sm:$0xff]
    %v659 = vld [vmem:[#allocation2 + $0xb8] sm:$0xff]
    %v660 = vld [vmem:[#allocation2 + $0xc0] sm:$0xff]
    %v661 = vpack.c.bf16 %v588, %v586
    %v662 = vpack.c.bf16 %v589, %v587
    %v663 = vpack.c.bf16 %v592, %v590
    %v664 = vpack.c.bf16 %v593, %v591
    %v665 = vpack.c.bf16 %v596, %v594
    %v666 = vpack.c.bf16 %v597, %v595
    %v667 = vpack.c.bf16 %v600, %v598
    %v668 = vpack.c.bf16 %v601, %v599
    %v669 = vpack.c.bf16 %v604, %v602
    %v670 = vpack.c.bf16 %v605, %v603
    %v671 = vpack.c.bf16 %v608, %v606
    %v672 = vpack.c.bf16 %v609, %v607
    %v673 = vpack.c.bf16 %v612, %v610
    %v674 = vpack.c.bf16 %v613, %v611
    %v675 = vpack.c.bf16 %v616, %v614
    %v676 = vpack.c.bf16 %v617, %v615
    %v677 = vpack.c.bf16 %v620, %v618
    %v678 = vpack.c.bf16 %v621, %v619
    %v679 = vpack.c.bf16 %v624, %v622
    %v680 = vpack.c.bf16 %v625, %v623
    %v681 = vpack.c.bf16 %v628, %v626
    %v682 = vpack.c.bf16 %v629, %v627
    %v683 = vpack.c.bf16 %v632, %v630
    %v684 = vpack.c.bf16 %v633, %v631
    %v685 = vpack.c.bf16 %v634, %v634
    %v686 = vpack.c.bf16 %v635, %v635
    %v687 = vld [vmem:[%s2] sm:$0xf]
    %v688 = vld [vmem:[%s2 + $0x4] sm:$0xf]
    %v689 = vld [vmem:[%s2 + $0x8] sm:$0xf]
    %v690 = vld [vmem:[%s2 + $0xc] sm:$0xf]
    %v691 = vld [vmem:[%s2 + $0x10] sm:$0xf]
    %v692 = vld [vmem:[%s2 + $0x14] sm:$0xf]
    %v693 = vld [vmem:[%s2 + $0x18] sm:$0xf]
    %v694 = vld [vmem:[%s2 + $0x1c] sm:$0xf]
    %v695 = vld [vmem:[%s2 + $0x20] sm:$0xf]
    %v696 = vld [vmem:[%s2 + $0x24] sm:$0xf]
    %v697 = vld [vmem:[%s2 + $0x28] sm:$0xf]
    %v698 = vld [vmem:[%s2 + $0x2c] sm:$0xf]
    %v699 = vld [vmem:[%s2 + $0x30] sm:$0xf]
    %v700 = vld [vmem:[%s2 + $0x34] sm:$0xf]
    %v701 = vld [vmem:[%s2 + $0x38] sm:$0xf]
    %v702 = vld [vmem:[%s2 + $0x3c] sm:$0xf]
    %v703 = vld [vmem:[%s2 + $0x40] sm:$0xf]
    %v704 = vld [vmem:[%s2 + $0x44] sm:$0xf]
    %v705 = vld [vmem:[%s2 + $0x48] sm:$0xf]
    %v706 = vld [vmem:[%s2 + $0x4c] sm:$0xf]
    %v707 = vld [vmem:[%s2 + $0x50] sm:$0xf]
    %v708 = vld [vmem:[%s2 + $0x54] sm:$0xf]
    %v709 = vld [vmem:[%s2 + $0x58] sm:$0xf]
    %v710 = vld [vmem:[%s2 + $0x5c] sm:$0xf]
    %v711 = vld [vmem:[%s2 + $0x60] sm:$0xf]
    %v712 = vld [vmem:[%s2 + $0x64] sm:$0xf]
    %v713 = vld [vmem:[%s2 + $0x68] sm:$0xf]
    %v714 = vld [vmem:[%s2 + $0x6c] sm:$0xf]
    %v715 = vld [vmem:[%s2 + $0x70] sm:$0xf]
    %v716 = vld [vmem:[%s2 + $0x74] sm:$0xf]
    %v717 = vld [vmem:[%s2 + $0x78] sm:$0xf]
    %v718 = vld [vmem:[%s2 + $0x7c] sm:$0xf]
    %v751 = vunpack.c.l.b16 %v687
    %v752 = vunpack.c.l.b16 %v688
    %v753 = vunpack.c.l.b16 %v689
    %v754 = vunpack.c.l.b16 %v690
    %v755 = vunpack.c.l.b16 %v691
    %v756 = vunpack.c.l.b16 %v692
    %v757 = vunpack.c.l.b16 %v693
    %v758 = vunpack.c.l.b16 %v694
    %v759 = vunpack.c.l.b16 %v695
    %v760 = vunpack.c.l.b16 %v696
    %v761 = vunpack.c.l.b16 %v697
    %v762 = vunpack.c.l.b16 %v698
    %v763 = vunpack.c.l.b16 %v699
    %v764 = vunpack.c.l.b16 %v700
    %v765 = vunpack.c.l.b16 %v701
    %v766 = vunpack.c.l.b16 %v702
    %v767 = vunpack.c.l.b16 %v703
    %v768 = vunpack.c.l.b16 %v704
    %v769 = vunpack.c.l.b16 %v705
    %v770 = vunpack.c.l.b16 %v706
    %v771 = vunpack.c.l.b16 %v707
    %v772 = vunpack.c.l.b16 %v708
    %v773 = vunpack.c.l.b16 %v709
    %v774 = vunpack.c.l.b16 %v710
    %v775 = vunpack.c.l.b16 %v711
    %v776 = vunpack.c.l.b16 %v712
    %v777 = vunpack.c.l.b16 %v713
    %v778 = vunpack.c.l.b16 %v714
    %v779 = vunpack.c.l.b16 %v715
    %v780 = vunpack.c.l.b16 %v716
    %v781 = vunpack.c.l.b16 %v717
    %v782 = vunpack.c.l.b16 %v718
    %v783 = vpack.c.b16 %v752, %v751
    %v784 = vpack.c.b16 %v754, %v753
    %v785 = vpack.c.b16 %v756, %v755
    %v786 = vpack.c.b16 %v758, %v757
    %v787 = vpack.c.b16 %v760, %v759
    %v788 = vpack.c.b16 %v762, %v761
    %v789 = vpack.c.b16 %v764, %v763
    %v790 = vpack.c.b16 %v766, %v765
    %v791 = vpack.c.b16 %v768, %v767
    %v792 = vpack.c.b16 %v770, %v769
    %v793 = vpack.c.b16 %v772, %v771
    %v794 = vpack.c.b16 %v774, %v773
    %v795 = vpack.c.b16 %v776, %v775
    %v796 = vpack.c.b16 %v778, %v777
    %v797 = vpack.c.b16 %v780, %v779
    %v798 = vpack.c.b16 %v782, %v781
    %815 = vmatprep.subr.bf16.mxu0 0
    %816 = vmatpush1.bf16.msra.mxu0 %v783
    %817 = vmatprep.subr.bf16.mxu0 0
    %818 = vmatpush1.bf16.msra.mxu0 %v784
    %819 = vmatprep.subr.bf16.mxu0 0
    %820 = vmatpush1.bf16.msra.mxu0 %v785
    %821 = vmatprep.subr.bf16.mxu0 0
    %822 = vmatpush1.bf16.msra.mxu0 %v786
    %823 = vmatprep.subr.bf16.mxu0 0
    %824 = vmatpush1.bf16.msra.mxu0 %v787
    %825 = vmatprep.subr.bf16.mxu0 0
    %826 = vmatpush1.bf16.msra.mxu0 %v788
    %827 = vmatprep.subr.bf16.mxu0 0
    %828 = vmatpush1.bf16.msra.mxu0 %v789
    %829 = vmatprep.subr.bf16.mxu0 0
    %830 = vmatpush1.bf16.msra.mxu0 %v790
    %831 = vmatprep.subr.bf16.mxu0 0
    %832 = vmatpush1.bf16.msra.mxu0 %v791
    %833 = vmatprep.subr.bf16.mxu0 0
    %834 = vmatpush1.bf16.msra.mxu0 %v792
    %835 = vmatprep.subr.bf16.mxu0 0
    %836 = vmatpush1.bf16.msra.mxu0 %v793
    %837 = vmatprep.subr.bf16.mxu0 0
    %838 = vmatpush1.bf16.msra.mxu0 %v794
    %839 = vmatprep.subr.bf16.mxu0 0
    %840 = vmatpush1.bf16.msra.mxu0 %v795
    %841 = vmatprep.subr.bf16.mxu0 0
    %842 = vmatpush1.bf16.msra.mxu0 %v796
    %843 = vmatprep.subr.bf16.mxu0 0
    %844 = vmatpush1.bf16.msra.mxu0 %v797
    %845 = vmatprep.subr.bf16.mxu0 0
    %846 = vmatpush1.bf16.msra.mxu0 %v798
    %847 = vmatprep.mubr.bf16.mxu0 %v662
    %848 = vmatmul.mubr.bf16.gmra.mrb[0].mxu0 %v661
    %v849 = vpop.f32.mrb[0].mxu0
    %v850 = vadd.f32 0.0, %v849
    %v851 = vpop.f32.mrb[0].mxu0
    %v852 = vpop.f32.mrb[0].mxu0
    %v853 = vadd.f32 0.0, %v852
    %v854 = vpop.f32.mrb[0].mxu0
    %855 = vmatprep.mubr.bf16.mxu0 %v664
    %856 = vmatmul.mubr.bf16.gmra.mrb[0].mxu0 %v663
    %v857 = vpop.f32.mrb[0].mxu0
    %v858 = vadd.f32 0.0, %v857
    %v859 = vpop.f32.mrb[0].mxu0
    %v860 = vpop.f32.mrb[0].mxu0
    %v861 = vadd.f32 0.0, %v860
    %v862 = vpop.f32.mrb[0].mxu0
    %863 = vmatprep.mubr.bf16.mxu0 %v666
    %864 = vmatmul.mubr.bf16.gmra.mrb[0].mxu0 %v665
    %v865 = vpop.f32.mrb[0].mxu0
    %v866 = vadd.f32 0.0, %v865
    %v867 = vpop.f32.mrb[0].mxu0
    %v868 = vpop.f32.mrb[0].mxu0
    %v869 = vadd.f32 0.0, %v868
    %v870 = vpop.f32.mrb[0].mxu0
    %871 = vmatprep.mubr.bf16.mxu0 %v668
    %872 = vmatmul.mubr.bf16.gmra.mrb[0].mxu0 %v667
    %v873 = vpop.f32.mrb[0].mxu0
    %v874 = vadd.f32 0.0, %v873
    %v875 = vpop.f32.mrb[0].mxu0
    %v876 = vpop.f32.mrb[0].mxu0
    %v877 = vadd.f32 0.0, %v876
    %v878 = vpop.f32.mrb[0].mxu0
    %879 = vmatprep.mubr.bf16.mxu0 %v670
    %880 = vmatmul.mubr.bf16.gmra.mrb[0].mxu0 %v669
    %v881 = vpop.f32.mrb[0].mxu0
    %v882 = vadd.f32 0.0, %v881
    %v883 = vpop.f32.mrb[0].mxu0
    %v884 = vpop.f32.mrb[0].mxu0
    %v885 = vadd.f32 0.0, %v884
    %v886 = vpop.f32.mrb[0].mxu0
    %887 = vmatprep.mubr.bf16.mxu0 %v672
    %888 = vmatmul.mubr.bf16.gmra.mrb[0].mxu0 %v671
    %v889 = vpop.f32.mrb[0].mxu0
    %v890 = vadd.f32 0.0, %v889
    %v891 = vpop.f32.mrb[0].mxu0
    %v892 = vpop.f32.mrb[0].mxu0
    %v893 = vadd.f32 0.0, %v892
    %v894 = vpop.f32.mrb[0].mxu0
    %895 = vmatprep.mubr.bf16.mxu0 %v674
    %896 = vmatmul.mubr.bf16.gmra.mrb[0].mxu0 %v673
    %v897 = vpop.f32.mrb[0].mxu0
    %v898 = vadd.f32 0.0, %v897
    %v899 = vpop.f32.mrb[0].mxu0
    %v900 = vpop.f32.mrb[0].mxu0
    %v901 = vadd.f32 0.0, %v900
    %v902 = vpop.f32.mrb[0].mxu0
    %903 = vmatprep.mubr.bf16.mxu0 %v676
    %904 = vmatmul.mubr.bf16.gmra.mrb[0].mxu0 %v675
    %v905 = vpop.f32.mrb[0].mxu0
    %v906 = vadd.f32 0.0, %v905
    %v907 = vpop.f32.mrb[0].mxu0
    %v908 = vpop.f32.mrb[0].mxu0
    %v909 = vadd.f32 0.0, %v908
    %v910 = vpop.f32.mrb[0].mxu0
    %911 = vmatprep.mubr.bf16.mxu0 %v678
    %912 = vmatmul.mubr.bf16.gmra.mrb[0].mxu0 %v677
    %v913 = vpop.f32.mrb[0].mxu0
    %v914 = vadd.f32 0.0, %v913
    %v915 = vpop.f32.mrb[0].mxu0
    %v916 = vpop.f32.mrb[0].mxu0
    %v917 = vadd.f32 0.0, %v916
    %v918 = vpop.f32.mrb[0].mxu0
    %919 = vmatprep.mubr.bf16.mxu0 %v680
    %920 = vmatmul.mubr.bf16.gmra.mrb[0].mxu0 %v679
    %v921 = vpop.f32.mrb[0].mxu0
    %v922 = vadd.f32 0.0, %v921
    %v923 = vpop.f32.mrb[0].mxu0
    %v924 = vpop.f32.mrb[0].mxu0
    %v925 = vadd.f32 0.0, %v924
    %v926 = vpop.f32.mrb[0].mxu0
    %927 = vmatprep.mubr.bf16.mxu0 %v682
    %928 = vmatmul.mubr.bf16.gmra.mrb[0].mxu0 %v681
    %v929 = vpop.f32.mrb[0].mxu0
    %v930 = vadd.f32 0.0, %v929
    %v931 = vpop.f32.mrb[0].mxu0
    %v932 = vpop.f32.mrb[0].mxu0
    %v933 = vadd.f32 0.0, %v932
    %v934 = vpop.f32.mrb[0].mxu0
    %935 = vmatprep.mubr.bf16.mxu0 %v684
    %936 = vmatmul.mubr.bf16.gmra.mrb[0].mxu0 %v683
    %v937 = vpop.f32.mrb[0].mxu0
    %v938 = vadd.f32 0.0, %v937
    %v939 = vpop.f32.mrb[0].mxu0
    %v940 = vpop.f32.mrb[0].mxu0
    %v941 = vadd.f32 0.0, %v940
    %v942 = vpop.f32.mrb[0].mxu0
    %943 = vmatprep.mubr.bf16.mxu0 %v686
    %944 = vmatmul.mubr.bf16.gmra.mrb[0].mxu0 %v685
    %v945 = vpop.f32.mrb[0].mxu0
    %v946 = vadd.f32 0.0, %v945
    %v947 = vpop.f32.mrb[0].mxu0
    %v948 = vpop.f32.mrb[0].mxu0
    %v949 = vpop.f32.mrb[0].mxu0
    %950 = vdwg.mxu0
    %v951 = vadd.f32 %v636, %v850
    %v952 = vadd.f32 %v637, %v853
    %v953 = vadd.f32 %v638, %v858
    %v954 = vadd.f32 %v639, %v861
    %v955 = vadd.f32 %v640, %v866
    %v956 = vadd.f32 %v641, %v869
    %v957 = vadd.f32 %v642, %v874
    %v958 = vadd.f32 %v643, %v877
    %v959 = vadd.f32 %v644, %v882
    %v960 = vadd.f32 %v645, %v885
    %v961 = vadd.f32 %v646, %v890
    %v962 = vadd.f32 %v647, %v893
    %v963 = vadd.f32 %v648, %v898
    %v964 = vadd.f32 %v649, %v901
    %v965 = vadd.f32 %v650, %v906
    %v966 = vadd.f32 %v651, %v909
    %v967 = vadd.f32 %v652, %v914
    %v968 = vadd.f32 %v653, %v917
    %v969 = vadd.f32 %v654, %v922
    %v970 = vadd.f32 %v655, %v925
    %v971 = vadd.f32 %v656, %v930
    %v972 = vadd.f32 %v657, %v933
    %v973 = vadd.f32 %v658, %v938
    %v974 = vadd.f32 %v659, %v941
    %v975 = vadd.f32 %v660, %v946
    %976 = vst.msk [vmem:[#allocation2] sm:$0xff] %vm78, %v951
    %977 = vst.msk [vmem:[#allocation2 + $0x8] sm:$0xff] %vm78, %v952
    %978 = vst.msk [vmem:[#allocation2 + $0x10] sm:$0xff] %vm78, %v953
    %979 = vst.msk [vmem:[#allocation2 + $0x18] sm:$0xff] %vm78, %v954
    %980 = vst.msk [vmem:[#allocation2 + $0x20] sm:$0xff] %vm78, %v955
    %981 = vst.msk [vmem:[#allocation2 + $0x28] sm:$0xff] %vm78, %v956
    %982 = vst.msk [vmem:[#allocation2 + $0x30] sm:$0xff] %vm78, %v957
    %983 = vst.msk [vmem:[#allocation2 + $0x38] sm:$0xff] %vm78, %v958
    %984 = vst.msk [vmem:[#allocation2 + $0x40] sm:$0xff] %vm78, %v959
    %985 = vst.msk [vmem:[#allocation2 + $0x48] sm:$0xff] %vm78, %v960
    %986 = vst.msk [vmem:[#allocation2 + $0x50] sm:$0xff] %vm78, %v961
    %987 = vst.msk [vmem:[#allocation2 + $0x58] sm:$0xff] %vm78, %v962
    %988 = vst.msk [vmem:[#allocation2 + $0x60] sm:$0xff] %vm78, %v963
    %989 = vst.msk [vmem:[#allocation2 + $0x68] sm:$0xff] %vm78, %v964
    %990 = vst.msk [vmem:[#allocation2 + $0x70] sm:$0xff] %vm78, %v965
    %991 = vst.msk [vmem:[#allocation2 + $0x78] sm:$0xff] %vm78, %v966
    %992 = vst.msk [vmem:[#allocation2 + $0x80] sm:$0xff] %vm78, %v967
    %993 = vst.msk [vmem:[#allocation2 + $0x88] sm:$0xff] %vm78, %v968
    %994 = vst.msk [vmem:[#allocation2 + $0x90] sm:$0xff] %vm78, %v969
    %995 = vst.msk [vmem:[#allocation2 + $0x98] sm:$0xff] %vm78, %v970
    %996 = vst.msk [vmem:[#allocation2 + $0xa0] sm:$0xff] %vm78, %v971
    %997 = vst.msk [vmem:[#allocation2 + $0xa8] sm:$0xff] %vm78, %v972
    %998 = vst.msk [vmem:[#allocation2 + $0xb0] sm:$0xff] %vm78, %v973
    %999 = vst.msk [vmem:[#allocation2 + $0xb8] sm:$0xff] %vm78, %v974
    %1000 = vst.msk [vmem:[#allocation2 + $0xc0] sm:$0xff] %vm78, %v975
    // Predicated region
    $region22: #{tpu_custom_call.1} parent=1 // pred_check
      %p1001 = pneg %p19
    $region23: #{tpu_custom_call.1} parent=1 // pred_check_branch
      %1003 = sbr.rel (%p1001) target = $region25
    $region24: #{tpu_custom_call.1} parent=1 // pred_region
      %v1004 = vld [vmem:[#allocation2] sm:$0xff]
      %v1005 = vld [vmem:[#allocation2 + $0x8] sm:$0xff]
      %v1006 = vld [vmem:[#allocation2 + $0x10] sm:$0xff]
      %v1007 = vld [vmem:[#allocation2 + $0x18] sm:$0xff]
      %v1008 = vld [vmem:[#allocation2 + $0x20] sm:$0xff]
      %v1009 = vld [vmem:[#allocation2 + $0x28] sm:$0xff]
      %v1010 = vld [vmem:[#allocation2 + $0x30] sm:$0xff]
      %v1011 = vld [vmem:[#allocation2 + $0x38] sm:$0xff]
      %v1012 = vld [vmem:[#allocation2 + $0x40] sm:$0xff]
      %v1013 = vld [vmem:[#allocation2 + $0x48] sm:$0xff]
      %v1014 = vld [vmem:[#allocation2 + $0x50] sm:$0xff]
      %v1015 = vld [vmem:[#allocation2 + $0x58] sm:$0xff]
      %v1016 = vld [vmem:[#allocation2 + $0x60] sm:$0xff]
      %v1017 = vld [vmem:[#allocation2 + $0x68] sm:$0xff]
      %v1018 = vld [vmem:[#allocation2 + $0x70] sm:$0xff]
      %v1019 = vld [vmem:[#allocation2 + $0x78] sm:$0xff]
      %v1020 = vld [vmem:[#allocation2 + $0x80] sm:$0xff]
      %v1021 = vld [vmem:[#allocation2 + $0x88] sm:$0xff]
      %v1022 = vld [vmem:[#allocation2 + $0x90] sm:$0xff]
      %v1023 = vld [vmem:[#allocation2 + $0x98] sm:$0xff]
      %v1024 = vld [vmem:[#allocation2 + $0xa0] sm:$0xff]
      %v1025 = vld [vmem:[#allocation2 + $0xa8] sm:$0xff]
      %v1026 = vld [vmem:[#allocation2 + $0xb0] sm:$0xff]
      %v1027 = vld [vmem:[#allocation2 + $0xb8] sm:$0xff]
      %v1028 = vld [vmem:[#allocation2 + $0xc0] sm:$0xff]
      %v1029 = vmax.f32 %v1004, 1e-10
      %v1030 = vmax.f32 %v1005, 1e-10
      %v1031 = vmax.f32 %v1006, 1e-10
      %v1032 = vmax.f32 %v1007, 1e-10
      %v1033 = vmax.f32 %v1008, 1e-10
      %v1034 = vmax.f32 %v1009, 1e-10
      %v1035 = vmax.f32 %v1010, 1e-10
      %v1036 = vmax.f32 %v1011, 1e-10
      %v1037 = vmax.f32 %v1012, 1e-10
      %v1038 = vmax.f32 %v1013, 1e-10
      %v1039 = vmax.f32 %v1014, 1e-10
      %v1040 = vmax.f32 %v1015, 1e-10
      %v1041 = vmax.f32 %v1016, 1e-10
      %v1042 = vmax.f32 %v1017, 1e-10
      %v1043 = vmax.f32 %v1018, 1e-10
      %v1044 = vmax.f32 %v1019, 1e-10
      %v1045 = vmax.f32 %v1020, 1e-10
      %v1046 = vmax.f32 %v1021, 1e-10
      %v1047 = vmax.f32 %v1022, 1e-10
      %v1048 = vmax.f32 %v1023, 1e-10
      %v1049 = vmax.f32 %v1024, 1e-10
      %v1050 = vmax.f32 %v1025, 1e-10
      %v1051 = vmax.f32 %v1026, 1e-10
      %v1052 = vmax.f32 %v1027, 1e-10
      %v1053 = vmax.f32 %v1028, 1e-10
      %1055 = vset.pattern.permute.xlu0 8
      %1056 = vperm.xlu0 %1055, %v1029
      %v1057 = vpop.permute.xlu0 %1056
      %1060 = vset.pattern.permute.xlu0 8
      %1061 = vperm.xlu0 %1060, %v1030
      %v1062 = vpop.permute.xlu0 %1061
      %1065 = vset.pattern.permute.xlu0 8
      %1066 = vperm.xlu0 %1065, %v1031
      %v1067 = vpop.permute.xlu0 %1066
      %1070 = vset.pattern.permute.xlu0 8
      %1071 = vperm.xlu0 %1070, %v1032
      %v1072 = vpop.permute.xlu0 %1071
      %1075 = vset.pattern.permute.xlu0 8
      %1076 = vperm.xlu0 %1075, %v1033
      %v1077 = vpop.permute.xlu0 %1076
      %1080 = vset.pattern.permute.xlu0 8
      %1081 = vperm.xlu0 %1080, %v1034
      %v1082 = vpop.permute.xlu0 %1081
      %1085 = vset.pattern.permute.xlu0 8
      %1086 = vperm.xlu0 %1085, %v1035
      %v1087 = vpop.permute.xlu0 %1086
      %1090 = vset.pattern.permute.xlu0 8
      %1091 = vperm.xlu0 %1090, %v1036
      %v1092 = vpop.permute.xlu0 %1091
      %1095 = vset.pattern.permute.xlu0 8
      %1096 = vperm.xlu0 %1095, %v1037
      %v1097 = vpop.permute.xlu0 %1096
      %1100 = vset.pattern.permute.xlu0 8
      %1101 = vperm.xlu0 %1100, %v1038
      %v1102 = vpop.permute.xlu0 %1101
      %1105 = vset.pattern.permute.xlu0 8
      %1106 = vperm.xlu0 %1105, %v1039
      %v1107 = vpop.permute.xlu0 %1106
      %1110 = vset.pattern.permute.xlu0 8
      %1111 = vperm.xlu0 %1110, %v1040
      %v1112 = vpop.permute.xlu0 %1111
      %1115 = vset.pattern.permute.xlu0 8
      %1116 = vperm.xlu0 %1115, %v1041
      %v1117 = vpop.permute.xlu0 %1116
      %1120 = vset.pattern.permute.xlu0 8
      %1121 = vperm.xlu0 %1120, %v1042
      %v1122 = vpop.permute.xlu0 %1121
      %1125 = vset.pattern.permute.xlu0 8
      %1126 = vperm.xlu0 %1125, %v1043
      %v1127 = vpop.permute.xlu0 %1126
      %1130 = vset.pattern.permute.xlu0 8
      %1131 = vperm.xlu0 %1130, %v1044
      %v1132 = vpop.permute.xlu0 %1131
      %1135 = vset.pattern.permute.xlu0 8
      %1136 = vperm.xlu0 %1135, %v1045
      %v1137 = vpop.permute.xlu0 %1136
      %1140 = vset.pattern.permute.xlu0 8
      %1141 = vperm.xlu0 %1140, %v1046
      %v1142 = vpop.permute.xlu0 %1141
      %1145 = vset.pattern.permute.xlu0 8
      %1146 = vperm.xlu0 %1145, %v1047
      %v1147 = vpop.permute.xlu0 %1146
      %1150 = vset.pattern.permute.xlu0 8
      %1151 = vperm.xlu0 %1150, %v1048
      %v1152 = vpop.permute.xlu0 %1151
      %1155 = vset.pattern.permute.xlu0 8
      %1156 = vperm.xlu0 %1155, %v1049
      %v1157 = vpop.permute.xlu0 %1156
      %1160 = vset.pattern.permute.xlu0 8
      %1161 = vperm.xlu0 %1160, %v1050
      %v1162 = vpop.permute.xlu0 %1161
      %1165 = vset.pattern.permute.xlu0 8
      %1166 = vperm.xlu0 %1165, %v1051
      %v1167 = vpop.permute.xlu0 %1166
      %1170 = vset.pattern.permute.xlu0 8
      %1171 = vperm.xlu0 %1170, %v1052
      %v1172 = vpop.permute.xlu0 %1171
      %1175 = vset.pattern.permute.xlu0 8
      %1176 = vperm.xlu0 %1175, %v1053
      %v1177 = vpop.permute.xlu0 %1176
      %v1179 = vrcp.pop %v1057
      %v1180 = vmul.f32 %v1004, %v1179
      %v1181 = vrcp.pop %v1062
      %v1182 = vmul.f32 %v1005, %v1181
      %v1183 = vrcp.pop %v1067
      %v1184 = vmul.f32 %v1006, %v1183
      %v1185 = vrcp.pop %v1072
      %v1186 = vmul.f32 %v1007, %v1185
      %v1187 = vrcp.pop %v1077
      %v1188 = vmul.f32 %v1008, %v1187
      %v1189 = vrcp.pop %v1082
      %v1190 = vmul.f32 %v1009, %v1189
      %v1191 = vrcp.pop %v1087
      %v1192 = vmul.f32 %v1010, %v1191
      %v1193 = vrcp.pop %v1092
      %v1194 = vmul.f32 %v1011, %v1193
      %v1195 = vrcp.pop %v1097
      %v1196 = vmul.f32 %v1012, %v1195
      %v1197 = vrcp.pop %v1102
      %v1198 = vmul.f32 %v1013, %v1197
      %v1199 = vrcp.pop %v1107
      %v1200 = vmul.f32 %v1014, %v1199
      %v1201 = vrcp.pop %v1112
      %v1202 = vmul.f32 %v1015, %v1201
      %v1203 = vrcp.pop %v1117
      %v1204 = vmul.f32 %v1016, %v1203
      %v1205 = vrcp.pop %v1122
      %v1206 = vmul.f32 %v1017, %v1205
      %v1207 = vrcp.pop %v1127
      %v1208 = vmul.f32 %v1018, %v1207
      %v1209 = vrcp.pop %v1132
      %v1210 = vmul.f32 %v1019, %v1209
      %v1211 = vrcp.pop %v1137
      %v1212 = vmul.f32 %v1020, %v1211
      %v1213 = vrcp.pop %v1142
      %v1214 = vmul.f32 %v1021, %v1213
      %v1215 = vrcp.pop %v1147
      %v1216 = vmul.f32 %v1022, %v1215
      %v1217 = vrcp.pop %v1152
      %v1218 = vmul.f32 %v1023, %v1217
      %v1219 = vrcp.pop %v1157
      %v1220 = vmul.f32 %v1024, %v1219
      %v1221 = vrcp.pop %v1162
      %v1222 = vmul.f32 %v1025, %v1221
      %v1223 = vrcp.pop %v1167
      %v1224 = vmul.f32 %v1026, %v1223
      %v1225 = vrcp.pop %v1172
      %v1226 = vmul.f32 %v1027, %v1225
      %v1227 = vrcp.pop %v1177
      %v1228 = vmul.f32 %v1028, %v1227
      %v1229 = vld [vmem:[%s3] sm:$0xff]
      %v1230 = vld [vmem:[%s3 + $0x8] sm:$0xff]
      %v1231 = vld [vmem:[%s3 + $0x10] sm:$0xff]
      %v1232 = vld [vmem:[%s3 + $0x18] sm:$0xff]
      %v1233 = vld [vmem:[%s3 + $0x20] sm:$0xff]
      %v1234 = vld [vmem:[%s3 + $0x28] sm:$0xff]
      %v1235 = vld [vmem:[%s3 + $0x30] sm:$0xff]
      %v1236 = vld [vmem:[%s3 + $0x38] sm:$0xff]
      %v1237 = vld [vmem:[%s3 + $0x40] sm:$0xff]
      %v1238 = vld [vmem:[%s3 + $0x48] sm:$0xff]
      %v1239 = vld [vmem:[%s3 + $0x50] sm:$0xff]
      %v1240 = vld [vmem:[%s3 + $0x58] sm:$0xff]
      %v1241 = vld [vmem:[%s3 + $0x60] sm:$0xff]
      %v1242 = vld [vmem:[%s3 + $0x68] sm:$0xff]
      %v1243 = vld [vmem:[%s3 + $0x70] sm:$0xff]
      %v1244 = vld [vmem:[%s3 + $0x78] sm:$0xff]
      %v1245 = vld [vmem:[%s3 + $0x80] sm:$0xff]
      %v1246 = vld [vmem:[%s3 + $0x88] sm:$0xff]
      %v1247 = vld [vmem:[%s3 + $0x90] sm:$0xff]
      %v1248 = vld [vmem:[%s3 + $0x98] sm:$0xff]
      %v1249 = vld [vmem:[%s3 + $0xa0] sm:$0xff]
      %v1250 = vld [vmem:[%s3 + $0xa8] sm:$0xff]
      %v1251 = vld [vmem:[%s3 + $0xb0] sm:$0xff]
      %v1252 = vld [vmem:[%s3 + $0xb8] sm:$0xff]
      %v1253 = vld [vmem:[%s3 + $0xc0] sm:$0xff]
      %v1254 = vsub.f32 %v1180, %v1229
      %v1255 = vsub.f32 %v1182, %v1230
      %v1256 = vsub.f32 %v1184, %v1231
      %v1257 = vsub.f32 %v1186, %v1232
      %v1258 = vsub.f32 %v1188, %v1233
      %v1259 = vsub.f32 %v1190, %v1234
      %v1260 = vsub.f32 %v1192, %v1235
      %v1261 = vsub.f32 %v1194, %v1236
      %v1262 = vsub.f32 %v1196, %v1237
      %v1263 = vsub.f32 %v1198, %v1238
      %v1264 = vsub.f32 %v1200, %v1239
      %v1265 = vsub.f32 %v1202, %v1240
      %v1266 = vsub.f32 %v1204, %v1241
      %v1267 = vsub.f32 %v1206, %v1242
      %v1268 = vsub.f32 %v1208, %v1243
      %v1269 = vsub.f32 %v1210, %v1244
      %v1270 = vsub.f32 %v1212, %v1245
      %v1271 = vsub.f32 %v1214, %v1246
      %v1272 = vsub.f32 %v1216, %v1247
      %v1273 = vsub.f32 %v1218, %v1248
      %v1274 = vsub.f32 %v1220, %v1249
      %v1275 = vsub.f32 %v1222, %v1250
      %v1276 = vsub.f32 %v1224, %v1251
      %v1277 = vsub.f32 %v1226, %v1252
      %v1278 = vsub.f32 %v1228, %v1253
      %v1279 = vand.u32 2147483647, %v1254
      %v1280 = vand.u32 2147483647, %v1255
      %v1281 = vand.u32 2147483647, %v1256
      %v1282 = vand.u32 2147483647, %v1257
      %v1283 = vand.u32 2147483647, %v1258
      %v1284 = vand.u32 2147483647, %v1259
      %v1285 = vand.u32 2147483647, %v1260
      %v1286 = vand.u32 2147483647, %v1261
      %v1287 = vand.u32 2147483647, %v1262
      %v1288 = vand.u32 2147483647, %v1263
      %v1289 = vand.u32 2147483647, %v1264
      %v1290 = vand.u32 2147483647, %v1265
      %v1291 = vand.u32 2147483647, %v1266
      %v1292 = vand.u32 2147483647, %v1267
      %v1293 = vand.u32 2147483647, %v1268
      %v1294 = vand.u32 2147483647, %v1269
      %v1295 = vand.u32 2147483647, %v1270
      %v1296 = vand.u32 2147483647, %v1271
      %v1297 = vand.u32 2147483647, %v1272
      %v1298 = vand.u32 2147483647, %v1273
      %v1299 = vand.u32 2147483647, %v1274
      %v1300 = vand.u32 2147483647, %v1275
      %v1301 = vand.u32 2147483647, %v1276
      %v1302 = vand.u32 2147483647, %v1277
      %v1303 = vand.u32 2147483647, %v1278
      %v1304 = vmul.f32 %v1279, %v1279
      %v1305 = vmul.f32 %v1280, %v1280
      %v1306 = vmul.f32 %v1281, %v1281
      %v1307 = vmul.f32 %v1282, %v1282
      %v1308 = vmul.f32 %v1283, %v1283
      %v1309 = vmul.f32 %v1284, %v1284
      %v1310 = vmul.f32 %v1285, %v1285
      %v1311 = vmul.f32 %v1286, %v1286
      %v1312 = vmul.f32 %v1287, %v1287
      %v1313 = vmul.f32 %v1288, %v1288
      %v1314 = vmul.f32 %v1289, %v1289
      %v1315 = vmul.f32 %v1290, %v1290
      %v1316 = vmul.f32 %v1291, %v1291
      %v1317 = vmul.f32 %v1292, %v1292
      %v1318 = vmul.f32 %v1293, %v1293
      %v1319 = vmul.f32 %v1294, %v1294
      %v1320 = vmul.f32 %v1295, %v1295
      %v1321 = vmul.f32 %v1296, %v1296
      %v1322 = vmul.f32 %v1297, %v1297
      %v1323 = vmul.f32 %v1298, %v1298
      %v1324 = vmul.f32 %v1299, %v1299
      %v1325 = vmul.f32 %v1300, %v1300
      %v1326 = vmul.f32 %v1301, %v1301
      %v1327 = vmul.f32 %v1302, %v1302
      %v1328 = vmul.f32 %v1303, %v1303
      %vm1329 = vcmask 64512
      %v1330 = vsel %vm1329, %v1304, 0.0
      %1331 = vadd.xlane.f32.xlu0 %v1330
      %v1332 = vpop.xlane.xlu0 %1331
      %v1333 = vsel %vm1329, %v1305, 0.0
      %1334 = vadd.xlane.f32.xlu0 %v1333
      %v1335 = vpop.xlane.xlu0 %1334
      %v1336 = vsel %vm1329, %v1306, 0.0
      %1337 = vadd.xlane.f32.xlu0 %v1336
      %v1338 = vpop.xlane.xlu0 %1337
      %v1339 = vsel %vm1329, %v1307, 0.0
      %1340 = vadd.xlane.f32.xlu0 %v1339
      %v1341 = vpop.xlane.xlu0 %1340
      %v1342 = vsel %vm1329, %v1308, 0.0
      %1343 = vadd.xlane.f32.xlu0 %v1342
      %v1344 = vpop.xlane.xlu0 %1343
      %v1345 = vsel %vm1329, %v1309, 0.0
      %1346 = vadd.xlane.f32.xlu0 %v1345
      %v1347 = vpop.xlane.xlu0 %1346
      %v1348 = vsel %vm1329, %v1310, 0.0
      %1349 = vadd.xlane.f32.xlu0 %v1348
      %v1350 = vpop.xlane.xlu0 %1349
      %v1351 = vsel %vm1329, %v1311, 0.0
      %1352 = vadd.xlane.f32.xlu0 %v1351
      %v1353 = vpop.xlane.xlu0 %1352
      %v1354 = vsel %vm1329, %v1312, 0.0
      %1355 = vadd.xlane.f32.xlu0 %v1354
      %v1356 = vpop.xlane.xlu0 %1355
      %v1357 = vsel %vm1329, %v1313, 0.0
      %1358 = vadd.xlane.f32.xlu0 %v1357
      %v1359 = vpop.xlane.xlu0 %1358
      %v1360 = vsel %vm1329, %v1314, 0.0
      %1361 = vadd.xlane.f32.xlu0 %v1360
      %v1362 = vpop.xlane.xlu0 %1361
      %v1363 = vsel %vm1329, %v1315, 0.0
      %1364 = vadd.xlane.f32.xlu0 %v1363
      %v1365 = vpop.xlane.xlu0 %1364
      %v1366 = vsel %vm1329, %v1316, 0.0
      %1367 = vadd.xlane.f32.xlu0 %v1366
      %v1368 = vpop.xlane.xlu0 %1367
      %v1369 = vsel %vm1329, %v1317, 0.0
      %1370 = vadd.xlane.f32.xlu0 %v1369
      %v1371 = vpop.xlane.xlu0 %1370
      %v1372 = vsel %vm1329, %v1318, 0.0
      %1373 = vadd.xlane.f32.xlu0 %v1372
      %v1374 = vpop.xlane.xlu0 %1373
      %v1375 = vsel %vm1329, %v1319, 0.0
      %1376 = vadd.xlane.f32.xlu0 %v1375
      %v1377 = vpop.xlane.xlu0 %1376
      %v1378 = vsel %vm1329, %v1320, 0.0
      %1379 = vadd.xlane.f32.xlu0 %v1378
      %v1380 = vpop.xlane.xlu0 %1379
      %v1381 = vsel %vm1329, %v1321, 0.0
      %1382 = vadd.xlane.f32.xlu0 %v1381
      %v1383 = vpop.xlane.xlu0 %1382
      %v1384 = vsel %vm1329, %v1322, 0.0
      %1385 = vadd.xlane.f32.xlu0 %v1384
      %v1386 = vpop.xlane.xlu0 %1385
      %v1387 = vsel %vm1329, %v1323, 0.0
      %1388 = vadd.xlane.f32.xlu0 %v1387
      %v1389 = vpop.xlane.xlu0 %1388
      %v1390 = vsel %vm1329, %v1324, 0.0
      %1391 = vadd.xlane.f32.xlu0 %v1390
      %v1392 = vpop.xlane.xlu0 %1391
      %v1393 = vsel %vm1329, %v1325, 0.0
      %1394 = vadd.xlane.f32.xlu0 %v1393
      %v1395 = vpop.xlane.xlu0 %1394
      %v1396 = vsel %vm1329, %v1326, 0.0
      %1397 = vadd.xlane.f32.xlu0 %v1396
      %v1398 = vpop.xlane.xlu0 %1397
      %v1399 = vsel %vm1329, %v1327, 0.0
      %1400 = vadd.xlane.f32.xlu0 %v1399
      %v1401 = vpop.xlane.xlu0 %1400
      %v1402 = vsel %vm1329, %v1328, 0.0
      %1403 = vadd.xlane.f32.xlu0 %v1402
      %v1404 = vpop.xlane.xlu0 %1403
      %v1430 = vlaneseq
      %v1431 = vshrl.u32 %v1430, 7
      %v1432 = vsub.s32 0, %v1431
      %v1433 = vrot.slane %v1332, %v1432
      %v1434 = vlaneseq
      %v1435 = vshrl.u32 %v1434, 7
      %v1436 = vsub.s32 1, %v1435
      %v1437 = vrot.slane %v1332, %v1436
      %v1438 = vlaneseq
      %v1439 = vshrl.u32 %v1438, 7
      %v1440 = vsub.s32 2, %v1439
      %v1441 = vrot.slane %v1332, %v1440
      %v1442 = vlaneseq
      %v1443 = vshrl.u32 %v1442, 7
      %v1444 = vsub.s32 3, %v1443
      %v1445 = vrot.slane %v1332, %v1444
      %v1446 = vlaneseq
      %v1447 = vshrl.u32 %v1446, 7
      %v1448 = vsub.s32 4, %v1447
      %v1449 = vrot.slane %v1332, %v1448
      %v1450 = vlaneseq
      %v1451 = vshrl.u32 %v1450, 7
      %v1452 = vsub.s32 5, %v1451
      %v1453 = vrot.slane %v1332, %v1452
      %v1454 = vlaneseq
      %v1455 = vshrl.u32 %v1454, 7
      %v1456 = vsub.s32 6, %v1455
      %v1457 = vrot.slane %v1332, %v1456
      %v1458 = vlaneseq
      %v1459 = vshrl.u32 %v1458, 7
      %v1460 = vsub.s32 7, %v1459
      %v1461 = vrot.slane %v1332, %v1460
      %v1462 = vlaneseq
      %v1463 = vshrl.u32 %v1462, 7
      %v1464 = vsub.s32 0, %v1463
      %v1465 = vrot.slane %v1335, %v1464
      %v1466 = vlaneseq
      %v1467 = vshrl.u32 %v1466, 7
      %v1468 = vsub.s32 1, %v1467
      %v1469 = vrot.slane %v1335, %v1468
      %v1470 = vlaneseq
      %v1471 = vshrl.u32 %v1470, 7
      %v1472 = vsub.s32 2, %v1471
      %v1473 = vrot.slane %v1335, %v1472
      %v1474 = vlaneseq
      %v1475 = vshrl.u32 %v1474, 7
      %v1476 = vsub.s32 3, %v1475
      %v1477 = vrot.slane %v1335, %v1476
      %v1478 = vlaneseq
      %v1479 = vshrl.u32 %v1478, 7
      %v1480 = vsub.s32 4, %v1479
      %v1481 = vrot.slane %v1335, %v1480
      %v1482 = vlaneseq
      %v1483 = vshrl.u32 %v1482, 7
      %v1484 = vsub.s32 5, %v1483
      %v1485 = vrot.slane %v1335, %v1484
      %v1486 = vlaneseq
      %v1487 = vshrl.u32 %v1486, 7
      %v1488 = vsub.s32 6, %v1487
      %v1489 = vrot.slane %v1335, %v1488
      %v1490 = vlaneseq
      %v1491 = vshrl.u32 %v1490, 7
      %v1492 = vsub.s32 7, %v1491
      %v1493 = vrot.slane %v1335, %v1492
      %v1494 = vlaneseq
      %v1495 = vshrl.u32 %v1494, 7
      %v1496 = vsub.s32 0, %v1495
      %v1497 = vrot.slane %v1338, %v1496
      %v1498 = vlaneseq
      %v1499 = vshrl.u32 %v1498, 7
      %v1500 = vsub.s32 1, %v1499
      %v1501 = vrot.slane %v1338, %v1500
      %v1502 = vlaneseq
      %v1503 = vshrl.u32 %v1502, 7
      %v1504 = vsub.s32 2, %v1503
      %v1505 = vrot.slane %v1338, %v1504
      %v1506 = vlaneseq
      %v1507 = vshrl.u32 %v1506, 7
      %v1508 = vsub.s32 3, %v1507
      %v1509 = vrot.slane %v1338, %v1508
      %v1510 = vlaneseq
      %v1511 = vshrl.u32 %v1510, 7
      %v1512 = vsub.s32 4, %v1511
      %v1513 = vrot.slane %v1338, %v1512
      %v1514 = vlaneseq
      %v1515 = vshrl.u32 %v1514, 7
      %v1516 = vsub.s32 5, %v1515
      %v1517 = vrot.slane %v1338, %v1516
      %v1518 = vlaneseq
      %v1519 = vshrl.u32 %v1518, 7
      %v1520 = vsub.s32 6, %v1519
      %v1521 = vrot.slane %v1338, %v1520
      %v1522 = vlaneseq
      %v1523 = vshrl.u32 %v1522, 7
      %v1524 = vsub.s32 7, %v1523
      %v1525 = vrot.slane %v1338, %v1524
      %v1526 = vlaneseq
      %v1527 = vshrl.u32 %v1526, 7
      %v1528 = vsub.s32 0, %v1527
      %v1529 = vrot.slane %v1341, %v1528
      %v1530 = vlaneseq
      %v1531 = vshrl.u32 %v1530, 7
      %v1532 = vsub.s32 1, %v1531
      %v1533 = vrot.slane %v1341, %v1532
      %v1534 = vlaneseq
      %v1535 = vshrl.u32 %v1534, 7
      %v1536 = vsub.s32 2, %v1535
      %v1537 = vrot.slane %v1341, %v1536
      %v1538 = vlaneseq
      %v1539 = vshrl.u32 %v1538, 7
      %v1540 = vsub.s32 3, %v1539
      %v1541 = vrot.slane %v1341, %v1540
      %v1542 = vlaneseq
      %v1543 = vshrl.u32 %v1542, 7
      %v1544 = vsub.s32 4, %v1543
      %v1545 = vrot.slane %v1341, %v1544
      %v1546 = vlaneseq
      %v1547 = vshrl.u32 %v1546, 7
      %v1548 = vsub.s32 5, %v1547
      %v1549 = vrot.slane %v1341, %v1548
      %v1550 = vlaneseq
      %v1551 = vshrl.u32 %v1550, 7
      %v1552 = vsub.s32 6, %v1551
      %v1553 = vrot.slane %v1341, %v1552
      %v1554 = vlaneseq
      %v1555 = vshrl.u32 %v1554, 7
      %v1556 = vsub.s32 7, %v1555
      %v1557 = vrot.slane %v1341, %v1556
      %v1558 = vlaneseq
      %v1559 = vshrl.u32 %v1558, 7
      %v1560 = vsub.s32 0, %v1559
      %v1561 = vrot.slane %v1344, %v1560
      %v1562 = vlaneseq
      %v1563 = vshrl.u32 %v1562, 7
      %v1564 = vsub.s32 1, %v1563
      %v1565 = vrot.slane %v1344, %v1564
      %v1566 = vlaneseq
      %v1567 = vshrl.u32 %v1566, 7
      %v1568 = vsub.s32 2, %v1567
      %v1569 = vrot.slane %v1344, %v1568
      %v1570 = vlaneseq
      %v1571 = vshrl.u32 %v1570, 7
      %v1572 = vsub.s32 3, %v1571
      %v1573 = vrot.slane %v1344, %v1572
      %v1574 = vlaneseq
      %v1575 = vshrl.u32 %v1574, 7
      %v1576 = vsub.s32 4, %v1575
      %v1577 = vrot.slane %v1344, %v1576
      %v1578 = vlaneseq
      %v1579 = vshrl.u32 %v1578, 7
      %v1580 = vsub.s32 5, %v1579
      %v1581 = vrot.slane %v1344, %v1580
      %v1582 = vlaneseq
      %v1583 = vshrl.u32 %v1582, 7
      %v1584 = vsub.s32 6, %v1583
      %v1585 = vrot.slane %v1344, %v1584
      %v1586 = vlaneseq
      %v1587 = vshrl.u32 %v1586, 7
      %v1588 = vsub.s32 7, %v1587
      %v1589 = vrot.slane %v1344, %v1588
      %v1590 = vlaneseq
      %v1591 = vshrl.u32 %v1590, 7
      %v1592 = vsub.s32 0, %v1591
      %v1593 = vrot.slane %v1347, %v1592
      %v1594 = vlaneseq
      %v1595 = vshrl.u32 %v1594, 7
      %v1596 = vsub.s32 1, %v1595
      %v1597 = vrot.slane %v1347, %v1596
      %v1598 = vlaneseq
      %v1599 = vshrl.u32 %v1598, 7
      %v1600 = vsub.s32 2, %v1599
      %v1601 = vrot.slane %v1347, %v1600
      %v1602 = vlaneseq
      %v1603 = vshrl.u32 %v1602, 7
      %v1604 = vsub.s32 3, %v1603
      %v1605 = vrot.slane %v1347, %v1604
      %v1606 = vlaneseq
      %v1607 = vshrl.u32 %v1606, 7
      %v1608 = vsub.s32 4, %v1607
      %v1609 = vrot.slane %v1347, %v1608
      %v1610 = vlaneseq
      %v1611 = vshrl.u32 %v1610, 7
      %v1612 = vsub.s32 5, %v1611
      %v1613 = vrot.slane %v1347, %v1612
      %v1614 = vlaneseq
      %v1615 = vshrl.u32 %v1614, 7
      %v1616 = vsub.s32 6, %v1615
      %v1617 = vrot.slane %v1347, %v1616
      %v1618 = vlaneseq
      %v1619 = vshrl.u32 %v1618, 7
      %v1620 = vsub.s32 7, %v1619
      %v1621 = vrot.slane %v1347, %v1620
      %v1622 = vlaneseq
      %v1623 = vshrl.u32 %v1622, 7
      %v1624 = vsub.s32 0, %v1623
      %v1625 = vrot.slane %v1350, %v1624
      %v1626 = vlaneseq
      %v1627 = vshrl.u32 %v1626, 7
      %v1628 = vsub.s32 1, %v1627
      %v1629 = vrot.slane %v1350, %v1628
      %v1630 = vlaneseq
      %v1631 = vshrl.u32 %v1630, 7
      %v1632 = vsub.s32 2, %v1631
      %v1633 = vrot.slane %v1350, %v1632
      %v1634 = vlaneseq
      %v1635 = vshrl.u32 %v1634, 7
      %v1636 = vsub.s32 3, %v1635
      %v1637 = vrot.slane %v1350, %v1636
      %v1638 = vlaneseq
      %v1639 = vshrl.u32 %v1638, 7
      %v1640 = vsub.s32 4, %v1639
      %v1641 = vrot.slane %v1350, %v1640
      %v1642 = vlaneseq
      %v1643 = vshrl.u32 %v1642, 7
      %v1644 = vsub.s32 5, %v1643
      %v1645 = vrot.slane %v1350, %v1644
      %v1646 = vlaneseq
      %v1647 = vshrl.u32 %v1646, 7
      %v1648 = vsub.s32 6, %v1647
      %v1649 = vrot.slane %v1350, %v1648
      %v1650 = vlaneseq
      %v1651 = vshrl.u32 %v1650, 7
      %v1652 = vsub.s32 7, %v1651
      %v1653 = vrot.slane %v1350, %v1652
      %v1654 = vlaneseq
      %v1655 = vshrl.u32 %v1654, 7
      %v1656 = vsub.s32 0, %v1655
      %v1657 = vrot.slane %v1353, %v1656
      %v1658 = vlaneseq
      %v1659 = vshrl.u32 %v1658, 7
      %v1660 = vsub.s32 1, %v1659
      %v1661 = vrot.slane %v1353, %v1660
      %v1662 = vlaneseq
      %v1663 = vshrl.u32 %v1662, 7
      %v1664 = vsub.s32 2, %v1663
      %v1665 = vrot.slane %v1353, %v1664
      %v1666 = vlaneseq
      %v1667 = vshrl.u32 %v1666, 7
      %v1668 = vsub.s32 3, %v1667
      %v1669 = vrot.slane %v1353, %v1668
      %v1670 = vlaneseq
      %v1671 = vshrl.u32 %v1670, 7
      %v1672 = vsub.s32 4, %v1671
      %v1673 = vrot.slane %v1353, %v1672
      %v1674 = vlaneseq
      %v1675 = vshrl.u32 %v1674, 7
      %v1676 = vsub.s32 5, %v1675
      %v1677 = vrot.slane %v1353, %v1676
      %v1678 = vlaneseq
      %v1679 = vshrl.u32 %v1678, 7
      %v1680 = vsub.s32 6, %v1679
      %v1681 = vrot.slane %v1353, %v1680
      %v1682 = vlaneseq
      %v1683 = vshrl.u32 %v1682, 7
      %v1684 = vsub.s32 7, %v1683
      %v1685 = vrot.slane %v1353, %v1684
      %v1686 = vlaneseq
      %v1687 = vshrl.u32 %v1686, 7
      %v1688 = vsub.s32 0, %v1687
      %v1689 = vrot.slane %v1356, %v1688
      %v1690 = vlaneseq
      %v1691 = vshrl.u32 %v1690, 7
      %v1692 = vsub.s32 1, %v1691
      %v1693 = vrot.slane %v1356, %v1692
      %v1694 = vlaneseq
      %v1695 = vshrl.u32 %v1694, 7
      %v1696 = vsub.s32 2, %v1695
      %v1697 = vrot.slane %v1356, %v1696
      %v1698 = vlaneseq
      %v1699 = vshrl.u32 %v1698, 7
      %v1700 = vsub.s32 3, %v1699
      %v1701 = vrot.slane %v1356, %v1700
      %v1702 = vlaneseq
      %v1703 = vshrl.u32 %v1702, 7
      %v1704 = vsub.s32 4, %v1703
      %v1705 = vrot.slane %v1356, %v1704
      %v1706 = vlaneseq
      %v1707 = vshrl.u32 %v1706, 7
      %v1708 = vsub.s32 5, %v1707
      %v1709 = vrot.slane %v1356, %v1708
      %v1710 = vlaneseq
      %v1711 = vshrl.u32 %v1710, 7
      %v1712 = vsub.s32 6, %v1711
      %v1713 = vrot.slane %v1356, %v1712
      %v1714 = vlaneseq
      %v1715 = vshrl.u32 %v1714, 7
      %v1716 = vsub.s32 7, %v1715
      %v1717 = vrot.slane %v1356, %v1716
      %v1718 = vlaneseq
      %v1719 = vshrl.u32 %v1718, 7
      %v1720 = vsub.s32 0, %v1719
      %v1721 = vrot.slane %v1359, %v1720
      %v1722 = vlaneseq
      %v1723 = vshrl.u32 %v1722, 7
      %v1724 = vsub.s32 1, %v1723
      %v1725 = vrot.slane %v1359, %v1724
      %v1726 = vlaneseq
      %v1727 = vshrl.u32 %v1726, 7
      %v1728 = vsub.s32 2, %v1727
      %v1729 = vrot.slane %v1359, %v1728
      %v1730 = vlaneseq
      %v1731 = vshrl.u32 %v1730, 7
      %v1732 = vsub.s32 3, %v1731
      %v1733 = vrot.slane %v1359, %v1732
      %v1734 = vlaneseq
      %v1735 = vshrl.u32 %v1734, 7
      %v1736 = vsub.s32 4, %v1735
      %v1737 = vrot.slane %v1359, %v1736
      %v1738 = vlaneseq
      %v1739 = vshrl.u32 %v1738, 7
      %v1740 = vsub.s32 5, %v1739
      %v1741 = vrot.slane %v1359, %v1740
      %v1742 = vlaneseq
      %v1743 = vshrl.u32 %v1742, 7
      %v1744 = vsub.s32 6, %v1743
      %v1745 = vrot.slane %v1359, %v1744
      %v1746 = vlaneseq
      %v1747 = vshrl.u32 %v1746, 7
      %v1748 = vsub.s32 7, %v1747
      %v1749 = vrot.slane %v1359, %v1748
      %v1750 = vlaneseq
      %v1751 = vshrl.u32 %v1750, 7
      %v1752 = vsub.s32 0, %v1751
      %v1753 = vrot.slane %v1362, %v1752
      %v1754 = vlaneseq
      %v1755 = vshrl.u32 %v1754, 7
      %v1756 = vsub.s32 1, %v1755
      %v1757 = vrot.slane %v1362, %v1756
      %v1758 = vlaneseq
      %v1759 = vshrl.u32 %v1758, 7
      %v1760 = vsub.s32 2, %v1759
      %v1761 = vrot.slane %v1362, %v1760
      %v1762 = vlaneseq
      %v1763 = vshrl.u32 %v1762, 7
      %v1764 = vsub.s32 3, %v1763
      %v1765 = vrot.slane %v1362, %v1764
      %v1766 = vlaneseq
      %v1767 = vshrl.u32 %v1766, 7
      %v1768 = vsub.s32 4, %v1767
      %v1769 = vrot.slane %v1362, %v1768
      %v1770 = vlaneseq
      %v1771 = vshrl.u32 %v1770, 7
      %v1772 = vsub.s32 5, %v1771
      %v1773 = vrot.slane %v1362, %v1772
      %v1774 = vlaneseq
      %v1775 = vshrl.u32 %v1774, 7
      %v1776 = vsub.s32 6, %v1775
      %v1777 = vrot.slane %v1362, %v1776
      %v1778 = vlaneseq
      %v1779 = vshrl.u32 %v1778, 7
      %v1780 = vsub.s32 7, %v1779
      %v1781 = vrot.slane %v1362, %v1780
      %v1782 = vlaneseq
      %v1783 = vshrl.u32 %v1782, 7
      %v1784 = vsub.s32 0, %v1783
      %v1785 = vrot.slane %v1365, %v1784
      %v1786 = vlaneseq
      %v1787 = vshrl.u32 %v1786, 7
      %v1788 = vsub.s32 1, %v1787
      %v1789 = vrot.slane %v1365, %v1788
      %v1790 = vlaneseq
      %v1791 = vshrl.u32 %v1790, 7
      %v1792 = vsub.s32 2, %v1791
      %v1793 = vrot.slane %v1365, %v1792
      %v1794 = vlaneseq
      %v1795 = vshrl.u32 %v1794, 7
      %v1796 = vsub.s32 3, %v1795
      %v1797 = vrot.slane %v1365, %v1796
      %v1798 = vlaneseq
      %v1799 = vshrl.u32 %v1798, 7
      %v1800 = vsub.s32 4, %v1799
      %v1801 = vrot.slane %v1365, %v1800
      %v1802 = vlaneseq
      %v1803 = vshrl.u32 %v1802, 7
      %v1804 = vsub.s32 5, %v1803
      %v1805 = vrot.slane %v1365, %v1804
      %v1806 = vlaneseq
      %v1807 = vshrl.u32 %v1806, 7
      %v1808 = vsub.s32 6, %v1807
      %v1809 = vrot.slane %v1365, %v1808
      %v1810 = vlaneseq
      %v1811 = vshrl.u32 %v1810, 7
      %v1812 = vsub.s32 7, %v1811
      %v1813 = vrot.slane %v1365, %v1812
      %v1814 = vlaneseq
      %v1815 = vshrl.u32 %v1814, 7
      %v1816 = vsub.s32 0, %v1815
      %v1817 = vrot.slane %v1368, %v1816
      %v1818 = vlaneseq
      %v1819 = vshrl.u32 %v1818, 7
      %v1820 = vsub.s32 1, %v1819
      %v1821 = vrot.slane %v1368, %v1820
      %v1822 = vlaneseq
      %v1823 = vshrl.u32 %v1822, 7
      %v1824 = vsub.s32 2, %v1823
      %v1825 = vrot.slane %v1368, %v1824
      %v1826 = vlaneseq
      %v1827 = vshrl.u32 %v1826, 7
      %v1828 = vsub.s32 3, %v1827
      %v1829 = vrot.slane %v1368, %v1828
      %v1830 = vlaneseq
      %v1831 = vshrl.u32 %v1830, 7
      %v1832 = vsub.s32 4, %v1831
      %v1833 = vrot.slane %v1368, %v1832
      %v1834 = vlaneseq
      %v1835 = vshrl.u32 %v1834, 7
      %v1836 = vsub.s32 5, %v1835
      %v1837 = vrot.slane %v1368, %v1836
      %v1838 = vlaneseq
      %v1839 = vshrl.u32 %v1838, 7
      %v1840 = vsub.s32 6, %v1839
      %v1841 = vrot.slane %v1368, %v1840
      %v1842 = vlaneseq
      %v1843 = vshrl.u32 %v1842, 7
      %v1844 = vsub.s32 7, %v1843
      %v1845 = vrot.slane %v1368, %v1844
      %v1846 = vlaneseq
      %v1847 = vshrl.u32 %v1846, 7
      %v1848 = vsub.s32 0, %v1847
      %v1849 = vrot.slane %v1371, %v1848
      %v1850 = vlaneseq
      %v1851 = vshrl.u32 %v1850, 7
      %v1852 = vsub.s32 1, %v1851
      %v1853 = vrot.slane %v1371, %v1852
      %v1854 = vlaneseq
      %v1855 = vshrl.u32 %v1854, 7
      %v1856 = vsub.s32 2, %v1855
      %v1857 = vrot.slane %v1371, %v1856
      %v1858 = vlaneseq
      %v1859 = vshrl.u32 %v1858, 7
      %v1860 = vsub.s32 3, %v1859
      %v1861 = vrot.slane %v1371, %v1860
      %v1862 = vlaneseq
      %v1863 = vshrl.u32 %v1862, 7
      %v1864 = vsub.s32 4, %v1863
      %v1865 = vrot.slane %v1371, %v1864
      %v1866 = vlaneseq
      %v1867 = vshrl.u32 %v1866, 7
      %v1868 = vsub.s32 5, %v1867
      %v1869 = vrot.slane %v1371, %v1868
      %v1870 = vlaneseq
      %v1871 = vshrl.u32 %v1870, 7
      %v1872 = vsub.s32 6, %v1871
      %v1873 = vrot.slane %v1371, %v1872
      %v1874 = vlaneseq
      %v1875 = vshrl.u32 %v1874, 7
      %v1876 = vsub.s32 7, %v1875
      %v1877 = vrot.slane %v1371, %v1876
      %v1878 = vlaneseq
      %v1879 = vshrl.u32 %v1878, 7
      %v1880 = vsub.s32 0, %v1879
      %v1881 = vrot.slane %v1374, %v1880
      %v1882 = vlaneseq
      %v1883 = vshrl.u32 %v1882, 7
      %v1884 = vsub.s32 1, %v1883
      %v1885 = vrot.slane %v1374, %v1884
      %v1886 = vlaneseq
      %v1887 = vshrl.u32 %v1886, 7
      %v1888 = vsub.s32 2, %v1887
      %v1889 = vrot.slane %v1374, %v1888
      %v1890 = vlaneseq
      %v1891 = vshrl.u32 %v1890, 7
      %v1892 = vsub.s32 3, %v1891
      %v1893 = vrot.slane %v1374, %v1892
      %v1894 = vlaneseq
      %v1895 = vshrl.u32 %v1894, 7
      %v1896 = vsub.s32 4, %v1895
      %v1897 = vrot.slane %v1374, %v1896
      %v1898 = vlaneseq
      %v1899 = vshrl.u32 %v1898, 7
      %v1900 = vsub.s32 5, %v1899
      %v1901 = vrot.slane %v1374, %v1900
      %v1902 = vlaneseq
      %v1903 = vshrl.u32 %v1902, 7
      %v1904 = vsub.s32 6, %v1903
      %v1905 = vrot.slane %v1374, %v1904
      %v1906 = vlaneseq
      %v1907 = vshrl.u32 %v1906, 7
      %v1908 = vsub.s32 7, %v1907
      %v1909 = vrot.slane %v1374, %v1908
      %v1910 = vlaneseq
      %v1911 = vshrl.u32 %v1910, 7
      %v1912 = vsub.s32 0, %v1911
      %v1913 = vrot.slane %v1377, %v1912
      %v1914 = vlaneseq
      %v1915 = vshrl.u32 %v1914, 7
      %v1916 = vsub.s32 1, %v1915
      %v1917 = vrot.slane %v1377, %v1916
      %v1918 = vlaneseq
      %v1919 = vshrl.u32 %v1918, 7
      %v1920 = vsub.s32 2, %v1919
      %v1921 = vrot.slane %v1377, %v1920
      %v1922 = vlaneseq
      %v1923 = vshrl.u32 %v1922, 7
      %v1924 = vsub.s32 3, %v1923
      %v1925 = vrot.slane %v1377, %v1924
      %v1926 = vlaneseq
      %v1927 = vshrl.u32 %v1926, 7
      %v1928 = vsub.s32 4, %v1927
      %v1929 = vrot.slane %v1377, %v1928
      %v1930 = vlaneseq
      %v1931 = vshrl.u32 %v1930, 7
      %v1932 = vsub.s32 5, %v1931
      %v1933 = vrot.slane %v1377, %v1932
      %v1934 = vlaneseq
      %v1935 = vshrl.u32 %v1934, 7
      %v1936 = vsub.s32 6, %v1935
      %v1937 = vrot.slane %v1377, %v1936
      %v1938 = vlaneseq
      %v1939 = vshrl.u32 %v1938, 7
      %v1940 = vsub.s32 7, %v1939
      %v1941 = vrot.slane %v1377, %v1940
      %v1942 = vlaneseq
      %v1943 = vshrl.u32 %v1942, 7
      %v1944 = vsub.s32 0, %v1943
      %v1945 = vrot.slane %v1380, %v1944
      %v1946 = vlaneseq
      %v1947 = vshrl.u32 %v1946, 7
      %v1948 = vsub.s32 1, %v1947
      %v1949 = vrot.slane %v1380, %v1948
      %v1950 = vlaneseq
      %v1951 = vshrl.u32 %v1950, 7
      %v1952 = vsub.s32 2, %v1951
      %v1953 = vrot.slane %v1380, %v1952
      %v1954 = vlaneseq
      %v1955 = vshrl.u32 %v1954, 7
      %v1956 = vsub.s32 3, %v1955
      %v1957 = vrot.slane %v1380, %v1956
      %v1958 = vlaneseq
      %v1959 = vshrl.u32 %v1958, 7
      %v1960 = vsub.s32 4, %v1959
      %v1961 = vrot.slane %v1380, %v1960
      %v1962 = vlaneseq
      %v1963 = vshrl.u32 %v1962, 7
      %v1964 = vsub.s32 5, %v1963
      %v1965 = vrot.slane %v1380, %v1964
      %v1966 = vlaneseq
      %v1967 = vshrl.u32 %v1966, 7
      %v1968 = vsub.s32 6, %v1967
      %v1969 = vrot.slane %v1380, %v1968
      %v1970 = vlaneseq
      %v1971 = vshrl.u32 %v1970, 7
      %v1972 = vsub.s32 7, %v1971
      %v1973 = vrot.slane %v1380, %v1972
      %v1974 = vlaneseq
      %v1975 = vshrl.u32 %v1974, 7
      %v1976 = vsub.s32 0, %v1975
      %v1977 = vrot.slane %v1383, %v1976
      %v1978 = vlaneseq
      %v1979 = vshrl.u32 %v1978, 7
      %v1980 = vsub.s32 1, %v1979
      %v1981 = vrot.slane %v1383, %v1980
      %v1982 = vlaneseq
      %v1983 = vshrl.u32 %v1982, 7
      %v1984 = vsub.s32 2, %v1983
      %v1985 = vrot.slane %v1383, %v1984
      %v1986 = vlaneseq
      %v1987 = vshrl.u32 %v1986, 7
      %v1988 = vsub.s32 3, %v1987
      %v1989 = vrot.slane %v1383, %v1988
      %v1990 = vlaneseq
      %v1991 = vshrl.u32 %v1990, 7
      %v1992 = vsub.s32 4, %v1991
      %v1993 = vrot.slane %v1383, %v1992
      %v1994 = vlaneseq
      %v1995 = vshrl.u32 %v1994, 7
      %v1996 = vsub.s32 5, %v1995
      %v1997 = vrot.slane %v1383, %v1996
      %v1998 = vlaneseq
      %v1999 = vshrl.u32 %v1998, 7
      %v2000 = vsub.s32 6, %v1999
      %v2001 = vrot.slane %v1383, %v2000
      %v2002 = vlaneseq
      %v2003 = vshrl.u32 %v2002, 7
      %v2004 = vsub.s32 7, %v2003
      %v2005 = vrot.slane %v1383, %v2004
      %v2006 = vlaneseq
      %v2007 = vshrl.u32 %v2006, 7
      %v2008 = vsub.s32 0, %v2007
      %v2009 = vrot.slane %v1386, %v2008
      %v2010 = vlaneseq
      %v2011 = vshrl.u32 %v2010, 7
      %v2012 = vsub.s32 1, %v2011
      %v2013 = vrot.slane %v1386, %v2012
      %v2014 = vlaneseq
      %v2015 = vshrl.u32 %v2014, 7
      %v2016 = vsub.s32 2, %v2015
      %v2017 = vrot.slane %v1386, %v2016
      %v2018 = vlaneseq
      %v2019 = vshrl.u32 %v2018, 7
      %v2020 = vsub.s32 3, %v2019
      %v2021 = vrot.slane %v1386, %v2020
      %v2022 = vlaneseq
      %v2023 = vshrl.u32 %v2022, 7
      %v2024 = vsub.s32 4, %v2023
      %v2025 = vrot.slane %v1386, %v2024
      %v2026 = vlaneseq
      %v2027 = vshrl.u32 %v2026, 7
      %v2028 = vsub.s32 5, %v2027
      %v2029 = vrot.slane %v1386, %v2028
      %v2030 = vlaneseq
      %v2031 = vshrl.u32 %v2030, 7
      %v2032 = vsub.s32 6, %v2031
      %v2033 = vrot.slane %v1386, %v2032
      %v2034 = vlaneseq
      %v2035 = vshrl.u32 %v2034, 7
      %v2036 = vsub.s32 7, %v2035
      %v2037 = vrot.slane %v1386, %v2036
      %v2038 = vlaneseq
      %v2039 = vshrl.u32 %v2038, 7
      %v2040 = vsub.s32 0, %v2039
      %v2041 = vrot.slane %v1389, %v2040
      %v2042 = vlaneseq
      %v2043 = vshrl.u32 %v2042, 7
      %v2044 = vsub.s32 1, %v2043
      %v2045 = vrot.slane %v1389, %v2044
      %v2046 = vlaneseq
      %v2047 = vshrl.u32 %v2046, 7
      %v2048 = vsub.s32 2, %v2047
      %v2049 = vrot.slane %v1389, %v2048
      %v2050 = vlaneseq
      %v2051 = vshrl.u32 %v2050, 7
      %v2052 = vsub.s32 3, %v2051
      %v2053 = vrot.slane %v1389, %v2052
      %v2054 = vlaneseq
      %v2055 = vshrl.u32 %v2054, 7
      %v2056 = vsub.s32 4, %v2055
      %v2057 = vrot.slane %v1389, %v2056
      %v2058 = vlaneseq
      %v2059 = vshrl.u32 %v2058, 7
      %v2060 = vsub.s32 5, %v2059
      %v2061 = vrot.slane %v1389, %v2060
      %v2062 = vlaneseq
      %v2063 = vshrl.u32 %v2062, 7
      %v2064 = vsub.s32 6, %v2063
      %v2065 = vrot.slane %v1389, %v2064
      %v2066 = vlaneseq
      %v2067 = vshrl.u32 %v2066, 7
      %v2068 = vsub.s32 7, %v2067
      %v2069 = vrot.slane %v1389, %v2068
      %v2070 = vlaneseq
      %v2071 = vshrl.u32 %v2070, 7
      %v2072 = vsub.s32 0, %v2071
      %v2073 = vrot.slane %v1392, %v2072
      %v2074 = vlaneseq
      %v2075 = vshrl.u32 %v2074, 7
      %v2076 = vsub.s32 1, %v2075
      %v2077 = vrot.slane %v1392, %v2076
      %v2078 = vlaneseq
      %v2079 = vshrl.u32 %v2078, 7
      %v2080 = vsub.s32 2, %v2079
      %v2081 = vrot.slane %v1392, %v2080
      %v2082 = vlaneseq
      %v2083 = vshrl.u32 %v2082, 7
      %v2084 = vsub.s32 3, %v2083
      %v2085 = vrot.slane %v1392, %v2084
      %v2086 = vlaneseq
      %v2087 = vshrl.u32 %v2086, 7
      %v2088 = vsub.s32 4, %v2087
      %v2089 = vrot.slane %v1392, %v2088
      %v2090 = vlaneseq
      %v2091 = vshrl.u32 %v2090, 7
      %v2092 = vsub.s32 5, %v2091
      %v2093 = vrot.slane %v1392, %v2092
      %v2094 = vlaneseq
      %v2095 = vshrl.u32 %v2094, 7
      %v2096 = vsub.s32 6, %v2095
      %v2097 = vrot.slane %v1392, %v2096
      %v2098 = vlaneseq
      %v2099 = vshrl.u32 %v2098, 7
      %v2100 = vsub.s32 7, %v2099
      %v2101 = vrot.slane %v1392, %v2100
      %v2102 = vlaneseq
      %v2103 = vshrl.u32 %v2102, 7
      %v2104 = vsub.s32 0, %v2103
      %v2105 = vrot.slane %v1395, %v2104
      %v2106 = vlaneseq
      %v2107 = vshrl.u32 %v2106, 7
      %v2108 = vsub.s32 1, %v2107
      %v2109 = vrot.slane %v1395, %v2108
      %v2110 = vlaneseq
      %v2111 = vshrl.u32 %v2110, 7
      %v2112 = vsub.s32 2, %v2111
      %v2113 = vrot.slane %v1395, %v2112
      %v2114 = vlaneseq
      %v2115 = vshrl.u32 %v2114, 7
      %v2116 = vsub.s32 3, %v2115
      %v2117 = vrot.slane %v1395, %v2116
      %v2118 = vlaneseq
      %v2119 = vshrl.u32 %v2118, 7
      %v2120 = vsub.s32 4, %v2119
      %v2121 = vrot.slane %v1395, %v2120
      %v2122 = vlaneseq
      %v2123 = vshrl.u32 %v2122, 7
      %v2124 = vsub.s32 5, %v2123
      %v2125 = vrot.slane %v1395, %v2124
      %v2126 = vlaneseq
      %v2127 = vshrl.u32 %v2126, 7
      %v2128 = vsub.s32 6, %v2127
      %v2129 = vrot.slane %v1395, %v2128
      %v2130 = vlaneseq
      %v2131 = vshrl.u32 %v2130, 7
      %v2132 = vsub.s32 7, %v2131
      %v2133 = vrot.slane %v1395, %v2132
      %v2134 = vlaneseq
      %v2135 = vshrl.u32 %v2134, 7
      %v2136 = vsub.s32 0, %v2135
      %v2137 = vrot.slane %v1398, %v2136
      %v2138 = vlaneseq
      %v2139 = vshrl.u32 %v2138, 7
      %v2140 = vsub.s32 1, %v2139
      %v2141 = vrot.slane %v1398, %v2140
      %v2142 = vlaneseq
      %v2143 = vshrl.u32 %v2142, 7
      %v2144 = vsub.s32 2, %v2143
      %v2145 = vrot.slane %v1398, %v2144
      %v2146 = vlaneseq
      %v2147 = vshrl.u32 %v2146, 7
      %v2148 = vsub.s32 3, %v2147
      %v2149 = vrot.slane %v1398, %v2148
      %v2150 = vlaneseq
      %v2151 = vshrl.u32 %v2150, 7
      %v2152 = vsub.s32 4, %v2151
      %v2153 = vrot.slane %v1398, %v2152
      %v2154 = vlaneseq
      %v2155 = vshrl.u32 %v2154, 7
      %v2156 = vsub.s32 5, %v2155
      %v2157 = vrot.slane %v1398, %v2156
      %v2158 = vlaneseq
      %v2159 = vshrl.u32 %v2158, 7
      %v2160 = vsub.s32 6, %v2159
      %v2161 = vrot.slane %v1398, %v2160
      %v2162 = vlaneseq
      %v2163 = vshrl.u32 %v2162, 7
      %v2164 = vsub.s32 7, %v2163
      %v2165 = vrot.slane %v1398, %v2164
      %v2166 = vlaneseq
      %v2167 = vshrl.u32 %v2166, 7
      %v2168 = vsub.s32 0, %v2167
      %v2169 = vrot.slane %v1401, %v2168
      %v2170 = vlaneseq
      %v2171 = vshrl.u32 %v2170, 7
      %v2172 = vsub.s32 1, %v2171
      %v2173 = vrot.slane %v1401, %v2172
      %v2174 = vlaneseq
      %v2175 = vshrl.u32 %v2174, 7
      %v2176 = vsub.s32 2, %v2175
      %v2177 = vrot.slane %v1401, %v2176
      %v2178 = vlaneseq
      %v2179 = vshrl.u32 %v2178, 7
      %v2180 = vsub.s32 3, %v2179
      %v2181 = vrot.slane %v1401, %v2180
      %v2182 = vlaneseq
      %v2183 = vshrl.u32 %v2182, 7
      %v2184 = vsub.s32 4, %v2183
      %v2185 = vrot.slane %v1401, %v2184
      %v2186 = vlaneseq
      %v2187 = vshrl.u32 %v2186, 7
      %v2188 = vsub.s32 5, %v2187
      %v2189 = vrot.slane %v1401, %v2188
      %v2190 = vlaneseq
      %v2191 = vshrl.u32 %v2190, 7
      %v2192 = vsub.s32 6, %v2191
      %v2193 = vrot.slane %v1401, %v2192
      %v2194 = vlaneseq
      %v2195 = vshrl.u32 %v2194, 7
      %v2196 = vsub.s32 7, %v2195
      %v2197 = vrot.slane %v1401, %v2196
      %v2198 = vlaneseq
      %v2199 = vshrl.u32 %v2198, 7
      %v2200 = vsub.s32 0, %v2199
      %v2201 = vrot.slane %v1404, %v2200
      %v2202 = vlaneseq
      %v2203 = vshrl.u32 %v2202, 7
      %v2204 = vsub.s32 1, %v2203
      %v2205 = vrot.slane %v1404, %v2204
      %v2206 = vlaneseq
      %v2207 = vshrl.u32 %v2206, 7
      %v2208 = vsub.s32 2, %v2207
      %v2209 = vrot.slane %v1404, %v2208
      %v2210 = vlaneseq
      %v2211 = vshrl.u32 %v2210, 7
      %v2212 = vsub.s32 3, %v2211
      %v2213 = vrot.slane %v1404, %v2212
      %v2214 = vlaneseq
      %v2215 = vshrl.u32 %v2214, 7
      %v2216 = vsub.s32 4, %v2215
      %v2217 = vrot.slane %v1404, %v2216
      %v2218 = vlaneseq
      %v2219 = vshrl.u32 %v2218, 7
      %v2220 = vsub.s32 5, %v2219
      %v2221 = vrot.slane %v1404, %v2220
      %v2222 = vlaneseq
      %v2223 = vshrl.u32 %v2222, 7
      %v2224 = vsub.s32 6, %v2223
      %v2225 = vrot.slane %v1404, %v2224
      %v2226 = vlaneseq
      %v2227 = vshrl.u32 %v2226, 7
      %v2228 = vsub.s32 7, %v2227
      %v2229 = vrot.slane %v1404, %v2228
      %v2230 = vcombine.low %v1433, %v1437
      %v2231 = vcombine.low %v1441, %v1445
      %v2232 = vcombine.low %v1449, %v1453
      %v2233 = vcombine.low %v1457, %v1461
      %v2235 = vunpack.c.l.s4 1966171168
      %v2236 = vunpack.c.0.s8 %v2235
      %v2237 = vlaneseq
      %v2238 = vshrl.u32 %v2237, 7
      %v2239 = vsub.s32 %v2236, %v2238
      %v2240 = vrot.slane %v2230, %v2239
      %v2242 = vunpack.c.l.s4 1966171168
      %v2243 = vunpack.c.0.s8 %v2242
      %v2244 = vlaneseq
      %v2245 = vshrl.u32 %v2244, 7
      %v2246 = vsub.s32 %v2243, %v2245
      %v2247 = vrot.slane %v2231, %v2246
      %v2249 = vunpack.c.l.s4 1966171168
      %v2250 = vunpack.c.0.s8 %v2249
      %v2251 = vlaneseq
      %v2252 = vshrl.u32 %v2251, 7
      %v2253 = vsub.s32 %v2250, %v2252
      %v2254 = vrot.slane %v2232, %v2253
      %v2256 = vunpack.c.l.s4 1966171168
      %v2257 = vunpack.c.0.s8 %v2256
      %v2258 = vlaneseq
      %v2259 = vshrl.u32 %v2258, 7
      %v2260 = vsub.s32 %v2257, %v2259
      %v2261 = vrot.slane %v2233, %v2260
      %v2262 = vcombine.low %v2240, %v2247
      %v2263 = vcombine.low %v2254, %v2261
      %v2265 = vunpack.c.l.s4 1966171168
      %v2266 = vunpack.c.0.s8 %v2265
      %v2267 = vlaneseq
      %v2268 = vshrl.u32 %v2267, 7
      %v2269 = vsub.s32 %v2266, %v2268
      %v2270 = vrot.slane %v2262, %v2269
      %v2272 = vunpack.c.l.s4 1966171168
      %v2273 = vunpack.c.0.s8 %v2272
      %v2274 = vlaneseq
      %v2275 = vshrl.u32 %v2274, 7
      %v2276 = vsub.s32 %v2273, %v2275
      %v2277 = vrot.slane %v2263, %v2276
      %v2278 = vcombine.low %v2270, %v2277
      %v2279 = vcombine.low %v1465, %v1469
      %v2280 = vcombine.low %v1473, %v1477
      %v2281 = vcombine.low %v1481, %v1485
      %v2282 = vcombine.low %v1489, %v1493
      %v2284 = vunpack.c.l.s4 1966171168
      %v2285 = vunpack.c.0.s8 %v2284
      %v2286 = vlaneseq
      %v2287 = vshrl.u32 %v2286, 7
      %v2288 = vsub.s32 %v2285, %v2287
      %v2289 = vrot.slane %v2279, %v2288
      %v2291 = vunpack.c.l.s4 1966171168
      %v2292 = vunpack.c.0.s8 %v2291
      %v2293 = vlaneseq
      %v2294 = vshrl.u32 %v2293, 7
      %v2295 = vsub.s32 %v2292, %v2294
      %v2296 = vrot.slane %v2280, %v2295
      %v2298 = vunpack.c.l.s4 1966171168
      %v2299 = vunpack.c.0.s8 %v2298
      %v2300 = vlaneseq
      %v2301 = vshrl.u32 %v2300, 7
      %v2302 = vsub.s32 %v2299, %v2301
      %v2303 = vrot.slane %v2281, %v2302
      %v2305 = vunpack.c.l.s4 1966171168
      %v2306 = vunpack.c.0.s8 %v2305
      %v2307 = vlaneseq
      %v2308 = vshrl.u32 %v2307, 7
      %v2309 = vsub.s32 %v2306, %v2308
      %v2310 = vrot.slane %v2282, %v2309
      %v2311 = vcombine.low %v2289, %v2296
      %v2312 = vcombine.low %v2303, %v2310
      %v2314 = vunpack.c.l.s4 1966171168
      %v2315 = vunpack.c.0.s8 %v2314
      %v2316 = vlaneseq
      %v2317 = vshrl.u32 %v2316, 7
      %v2318 = vsub.s32 %v2315, %v2317
      %v2319 = vrot.slane %v2311, %v2318
      %v2321 = vunpack.c.l.s4 1966171168
      %v2322 = vunpack.c.0.s8 %v2321
      %v2323 = vlaneseq
      %v2324 = vshrl.u32 %v2323, 7
      %v2325 = vsub.s32 %v2322, %v2324
      %v2326 = vrot.slane %v2312, %v2325
      %v2327 = vcombine.low %v2319, %v2326
      %v2328 = vcombine.low %v1497, %v1501
      %v2329 = vcombine.low %v1505, %v1509
      %v2330 = vcombine.low %v1513, %v1517
      %v2331 = vcombine.low %v1521, %v1525
      %v2333 = vunpack.c.l.s4 1966171168
      %v2334 = vunpack.c.0.s8 %v2333
      %v2335 = vlaneseq
      %v2336 = vshrl.u32 %v2335, 7
      %v2337 = vsub.s32 %v2334, %v2336
      %v2338 = vrot.slane %v2328, %v2337
      %v2340 = vunpack.c.l.s4 1966171168
      %v2341 = vunpack.c.0.s8 %v2340
      %v2342 = vlaneseq
      %v2343 = vshrl.u32 %v2342, 7
      %v2344 = vsub.s32 %v2341, %v2343
      %v2345 = vrot.slane %v2329, %v2344
      %v2347 = vunpack.c.l.s4 1966171168
      %v2348 = vunpack.c.0.s8 %v2347
      %v2349 = vlaneseq
      %v2350 = vshrl.u32 %v2349, 7
      %v2351 = vsub.s32 %v2348, %v2350
      %v2352 = vrot.slane %v2330, %v2351
      %v2354 = vunpack.c.l.s4 1966171168
      %v2355 = vunpack.c.0.s8 %v2354
      %v2356 = vlaneseq
      %v2357 = vshrl.u32 %v2356, 7
      %v2358 = vsub.s32 %v2355, %v2357
      %v2359 = vrot.slane %v2331, %v2358
      %v2360 = vcombine.low %v2338, %v2345
      %v2361 = vcombine.low %v2352, %v2359
      %v2363 = vunpack.c.l.s4 1966171168
      %v2364 = vunpack.c.0.s8 %v2363
      %v2365 = vlaneseq
      %v2366 = vshrl.u32 %v2365, 7
      %v2367 = vsub.s32 %v2364, %v2366
      %v2368 = vrot.slane %v2360, %v2367
      %v2370 = vunpack.c.l.s4 1966171168
      %v2371 = vunpack.c.0.s8 %v2370
      %v2372 = vlaneseq
      %v2373 = vshrl.u32 %v2372, 7
      %v2374 = vsub.s32 %v2371, %v2373
      %v2375 = vrot.slane %v2361, %v2374
      %v2376 = vcombine.low %v2368, %v2375
      %v2377 = vcombine.low %v1529, %v1533
      %v2378 = vcombine.low %v1537, %v1541
      %v2379 = vcombine.low %v1545, %v1549
      %v2380 = vcombine.low %v1553, %v1557
      %v2382 = vunpack.c.l.s4 1966171168
      %v2383 = vunpack.c.0.s8 %v2382
      %v2384 = vlaneseq
      %v2385 = vshrl.u32 %v2384, 7
      %v2386 = vsub.s32 %v2383, %v2385
      %v2387 = vrot.slane %v2377, %v2386
      %v2389 = vunpack.c.l.s4 1966171168
      %v2390 = vunpack.c.0.s8 %v2389
      %v2391 = vlaneseq
      %v2392 = vshrl.u32 %v2391, 7
      %v2393 = vsub.s32 %v2390, %v2392
      %v2394 = vrot.slane %v2378, %v2393
      %v2396 = vunpack.c.l.s4 1966171168
      %v2397 = vunpack.c.0.s8 %v2396
      %v2398 = vlaneseq
      %v2399 = vshrl.u32 %v2398, 7
      %v2400 = vsub.s32 %v2397, %v2399
      %v2401 = vrot.slane %v2379, %v2400
      %v2403 = vunpack.c.l.s4 1966171168
      %v2404 = vunpack.c.0.s8 %v2403
      %v2405 = vlaneseq
      %v2406 = vshrl.u32 %v2405, 7
      %v2407 = vsub.s32 %v2404, %v2406
      %v2408 = vrot.slane %v2380, %v2407
      %v2409 = vcombine.low %v2387, %v2394
      %v2410 = vcombine.low %v2401, %v2408
      %v2412 = vunpack.c.l.s4 1966171168
      %v2413 = vunpack.c.0.s8 %v2412
      %v2414 = vlaneseq
      %v2415 = vshrl.u32 %v2414, 7
      %v2416 = vsub.s32 %v2413, %v2415
      %v2417 = vrot.slane %v2409, %v2416
      %v2419 = vunpack.c.l.s4 1966171168
      %v2420 = vunpack.c.0.s8 %v2419
      %v2421 = vlaneseq
      %v2422 = vshrl.u32 %v2421, 7
      %v2423 = vsub.s32 %v2420, %v2422
      %v2424 = vrot.slane %v2410, %v2423
      %v2425 = vcombine.low %v2417, %v2424
      %v2426 = vcombine.low %v1561, %v1565
      %v2427 = vcombine.low %v1569, %v1573
      %v2428 = vcombine.low %v1577, %v1581
      %v2429 = vcombine.low %v1585, %v1589
      %v2431 = vunpack.c.l.s4 1966171168
      %v2432 = vunpack.c.0.s8 %v2431
      %v2433 = vlaneseq
      %v2434 = vshrl.u32 %v2433, 7
      %v2435 = vsub.s32 %v2432, %v2434
      %v2436 = vrot.slane %v2426, %v2435
      %v2438 = vunpack.c.l.s4 1966171168
      %v2439 = vunpack.c.0.s8 %v2438
      %v2440 = vlaneseq
      %v2441 = vshrl.u32 %v2440, 7
      %v2442 = vsub.s32 %v2439, %v2441
      %v2443 = vrot.slane %v2427, %v2442
      %v2445 = vunpack.c.l.s4 1966171168
      %v2446 = vunpack.c.0.s8 %v2445
      %v2447 = vlaneseq
      %v2448 = vshrl.u32 %v2447, 7
      %v2449 = vsub.s32 %v2446, %v2448
      %v2450 = vrot.slane %v2428, %v2449
      %v2452 = vunpack.c.l.s4 1966171168
      %v2453 = vunpack.c.0.s8 %v2452
      %v2454 = vlaneseq
      %v2455 = vshrl.u32 %v2454, 7
      %v2456 = vsub.s32 %v2453, %v2455
      %v2457 = vrot.slane %v2429, %v2456
      %v2458 = vcombine.low %v2436, %v2443
      %v2459 = vcombine.low %v2450, %v2457
      %v2461 = vunpack.c.l.s4 1966171168
      %v2462 = vunpack.c.0.s8 %v2461
      %v2463 = vlaneseq
      %v2464 = vshrl.u32 %v2463, 7
      %v2465 = vsub.s32 %v2462, %v2464
      %v2466 = vrot.slane %v2458, %v2465
      %v2468 = vunpack.c.l.s4 1966171168
      %v2469 = vunpack.c.0.s8 %v2468
      %v2470 = vlaneseq
      %v2471 = vshrl.u32 %v2470, 7
      %v2472 = vsub.s32 %v2469, %v2471
      %v2473 = vrot.slane %v2459, %v2472
      %v2474 = vcombine.low %v2466, %v2473
      %v2475 = vcombine.low %v1593, %v1597
      %v2476 = vcombine.low %v1601, %v1605
      %v2477 = vcombine.low %v1609, %v1613
      %v2478 = vcombine.low %v1617, %v1621
      %v2480 = vunpack.c.l.s4 1966171168
      %v2481 = vunpack.c.0.s8 %v2480
      %v2482 = vlaneseq
      %v2483 = vshrl.u32 %v2482, 7
      %v2484 = vsub.s32 %v2481, %v2483
      %v2485 = vrot.slane %v2475, %v2484
      %v2487 = vunpack.c.l.s4 1966171168
      %v2488 = vunpack.c.0.s8 %v2487
      %v2489 = vlaneseq
      %v2490 = vshrl.u32 %v2489, 7
      %v2491 = vsub.s32 %v2488, %v2490
      %v2492 = vrot.slane %v2476, %v2491
      %v2494 = vunpack.c.l.s4 1966171168
      %v2495 = vunpack.c.0.s8 %v2494
      %v2496 = vlaneseq
      %v2497 = vshrl.u32 %v2496, 7
      %v2498 = vsub.s32 %v2495, %v2497
      %v2499 = vrot.slane %v2477, %v2498
      %v2501 = vunpack.c.l.s4 1966171168
      %v2502 = vunpack.c.0.s8 %v2501
      %v2503 = vlaneseq
      %v2504 = vshrl.u32 %v2503, 7
      %v2505 = vsub.s32 %v2502, %v2504
      %v2506 = vrot.slane %v2478, %v2505
      %v2507 = vcombine.low %v2485, %v2492
      %v2508 = vcombine.low %v2499, %v2506
      %v2510 = vunpack.c.l.s4 1966171168
      %v2511 = vunpack.c.0.s8 %v2510
      %v2512 = vlaneseq
      %v2513 = vshrl.u32 %v2512, 7
      %v2514 = vsub.s32 %v2511, %v2513
      %v2515 = vrot.slane %v2507, %v2514
      %v2517 = vunpack.c.l.s4 1966171168
      %v2518 = vunpack.c.0.s8 %v2517
      %v2519 = vlaneseq
      %v2520 = vshrl.u32 %v2519, 7
      %v2521 = vsub.s32 %v2518, %v2520
      %v2522 = vrot.slane %v2508, %v2521
      %v2523 = vcombine.low %v2515, %v2522
      %v2524 = vcombine.low %v1625, %v1629
      %v2525 = vcombine.low %v1633, %v1637
      %v2526 = vcombine.low %v1641, %v1645
      %v2527 = vcombine.low %v1649, %v1653
      %v2529 = vunpack.c.l.s4 1966171168
      %v2530 = vunpack.c.0.s8 %v2529
      %v2531 = vlaneseq
      %v2532 = vshrl.u32 %v2531, 7
      %v2533 = vsub.s32 %v2530, %v2532
      %v2534 = vrot.slane %v2524, %v2533
      %v2536 = vunpack.c.l.s4 1966171168
      %v2537 = vunpack.c.0.s8 %v2536
      %v2538 = vlaneseq
      %v2539 = vshrl.u32 %v2538, 7
      %v2540 = vsub.s32 %v2537, %v2539
      %v2541 = vrot.slane %v2525, %v2540
      %v2543 = vunpack.c.l.s4 1966171168
      %v2544 = vunpack.c.0.s8 %v2543
      %v2545 = vlaneseq
      %v2546 = vshrl.u32 %v2545, 7
      %v2547 = vsub.s32 %v2544, %v2546
      %v2548 = vrot.slane %v2526, %v2547
      %v2550 = vunpack.c.l.s4 1966171168
      %v2551 = vunpack.c.0.s8 %v2550
      %v2552 = vlaneseq
      %v2553 = vshrl.u32 %v2552, 7
      %v2554 = vsub.s32 %v2551, %v2553
      %v2555 = vrot.slane %v2527, %v2554
      %v2556 = vcombine.low %v2534, %v2541
      %v2557 = vcombine.low %v2548, %v2555
      %v2559 = vunpack.c.l.s4 1966171168
      %v2560 = vunpack.c.0.s8 %v2559
      %v2561 = vlaneseq
      %v2562 = vshrl.u32 %v2561, 7
      %v2563 = vsub.s32 %v2560, %v2562
      %v2564 = vrot.slane %v2556, %v2563
      %v2566 = vunpack.c.l.s4 1966171168
      %v2567 = vunpack.c.0.s8 %v2566
      %v2568 = vlaneseq
      %v2569 = vshrl.u32 %v2568, 7
      %v2570 = vsub.s32 %v2567, %v2569
      %v2571 = vrot.slane %v2557, %v2570
      %v2572 = vcombine.low %v2564, %v2571
      %v2573 = vcombine.low %v1657, %v1661
      %v2574 = vcombine.low %v1665, %v1669
      %v2575 = vcombine.low %v1673, %v1677
      %v2576 = vcombine.low %v1681, %v1685
      %v2578 = vunpack.c.l.s4 1966171168
      %v2579 = vunpack.c.0.s8 %v2578
      %v2580 = vlaneseq
      %v2581 = vshrl.u32 %v2580, 7
      %v2582 = vsub.s32 %v2579, %v2581
      %v2583 = vrot.slane %v2573, %v2582
      %v2585 = vunpack.c.l.s4 1966171168
      %v2586 = vunpack.c.0.s8 %v2585
      %v2587 = vlaneseq
      %v2588 = vshrl.u32 %v2587, 7
      %v2589 = vsub.s32 %v2586, %v2588
      %v2590 = vrot.slane %v2574, %v2589
      %v2592 = vunpack.c.l.s4 1966171168
      %v2593 = vunpack.c.0.s8 %v2592
      %v2594 = vlaneseq
      %v2595 = vshrl.u32 %v2594, 7
      %v2596 = vsub.s32 %v2593, %v2595
      %v2597 = vrot.slane %v2575, %v2596
      %v2599 = vunpack.c.l.s4 1966171168
      %v2600 = vunpack.c.0.s8 %v2599
      %v2601 = vlaneseq
      %v2602 = vshrl.u32 %v2601, 7
      %v2603 = vsub.s32 %v2600, %v2602
      %v2604 = vrot.slane %v2576, %v2603
      %v2605 = vcombine.low %v2583, %v2590
      %v2606 = vcombine.low %v2597, %v2604
      %v2608 = vunpack.c.l.s4 1966171168
      %v2609 = vunpack.c.0.s8 %v2608
      %v2610 = vlaneseq
      %v2611 = vshrl.u32 %v2610, 7
      %v2612 = vsub.s32 %v2609, %v2611
      %v2613 = vrot.slane %v2605, %v2612
      %v2615 = vunpack.c.l.s4 1966171168
      %v2616 = vunpack.c.0.s8 %v2615
      %v2617 = vlaneseq
      %v2618 = vshrl.u32 %v2617, 7
      %v2619 = vsub.s32 %v2616, %v2618
      %v2620 = vrot.slane %v2606, %v2619
      %v2621 = vcombine.low %v2613, %v2620
      %v2622 = vcombine.low %v1689, %v1693
      %v2623 = vcombine.low %v1697, %v1701
      %v2624 = vcombine.low %v1705, %v1709
      %v2625 = vcombine.low %v1713, %v1717
      %v2627 = vunpack.c.l.s4 1966171168
      %v2628 = vunpack.c.0.s8 %v2627
      %v2629 = vlaneseq
      %v2630 = vshrl.u32 %v2629, 7
      %v2631 = vsub.s32 %v2628, %v2630
      %v2632 = vrot.slane %v2622, %v2631
      %v2634 = vunpack.c.l.s4 1966171168
      %v2635 = vunpack.c.0.s8 %v2634
      %v2636 = vlaneseq
      %v2637 = vshrl.u32 %v2636, 7
      %v2638 = vsub.s32 %v2635, %v2637
      %v2639 = vrot.slane %v2623, %v2638
      %v2641 = vunpack.c.l.s4 1966171168
      %v2642 = vunpack.c.0.s8 %v2641
      %v2643 = vlaneseq
      %v2644 = vshrl.u32 %v2643, 7
      %v2645 = vsub.s32 %v2642, %v2644
      %v2646 = vrot.slane %v2624, %v2645
      %v2648 = vunpack.c.l.s4 1966171168
      %v2649 = vunpack.c.0.s8 %v2648
      %v2650 = vlaneseq
      %v2651 = vshrl.u32 %v2650, 7
      %v2652 = vsub.s32 %v2649, %v2651
      %v2653 = vrot.slane %v2625, %v2652
      %v2654 = vcombine.low %v2632, %v2639
      %v2655 = vcombine.low %v2646, %v2653
      %v2657 = vunpack.c.l.s4 1966171168
      %v2658 = vunpack.c.0.s8 %v2657
      %v2659 = vlaneseq
      %v2660 = vshrl.u32 %v2659, 7
      %v2661 = vsub.s32 %v2658, %v2660
      %v2662 = vrot.slane %v2654, %v2661
      %v2664 = vunpack.c.l.s4 1966171168
      %v2665 = vunpack.c.0.s8 %v2664
      %v2666 = vlaneseq
      %v2667 = vshrl.u32 %v2666, 7
      %v2668 = vsub.s32 %v2665, %v2667
      %v2669 = vrot.slane %v2655, %v2668
      %v2670 = vcombine.low %v2662, %v2669
      %v2671 = vcombine.low %v1721, %v1725
      %v2672 = vcombine.low %v1729, %v1733
      %v2673 = vcombine.low %v1737, %v1741
      %v2674 = vcombine.low %v1745, %v1749
      %v2676 = vunpack.c.l.s4 1966171168
      %v2677 = vunpack.c.0.s8 %v2676
      %v2678 = vlaneseq
      %v2679 = vshrl.u32 %v2678, 7
      %v2680 = vsub.s32 %v2677, %v2679
      %v2681 = vrot.slane %v2671, %v2680
      %v2683 = vunpack.c.l.s4 1966171168
      %v2684 = vunpack.c.0.s8 %v2683
      %v2685 = vlaneseq
      %v2686 = vshrl.u32 %v2685, 7
      %v2687 = vsub.s32 %v2684, %v2686
      %v2688 = vrot.slane %v2672, %v2687
      %v2690 = vunpack.c.l.s4 1966171168
      %v2691 = vunpack.c.0.s8 %v2690
      %v2692 = vlaneseq
      %v2693 = vshrl.u32 %v2692, 7
      %v2694 = vsub.s32 %v2691, %v2693
      %v2695 = vrot.slane %v2673, %v2694
      %v2697 = vunpack.c.l.s4 1966171168
      %v2698 = vunpack.c.0.s8 %v2697
      %v2699 = vlaneseq
      %v2700 = vshrl.u32 %v2699, 7
      %v2701 = vsub.s32 %v2698, %v2700
      %v2702 = vrot.slane %v2674, %v2701
      %v2703 = vcombine.low %v2681, %v2688
      %v2704 = vcombine.low %v2695, %v2702
      %v2706 = vunpack.c.l.s4 1966171168
      %v2707 = vunpack.c.0.s8 %v2706
      %v2708 = vlaneseq
      %v2709 = vshrl.u32 %v2708, 7
      %v2710 = vsub.s32 %v2707, %v2709
      %v2711 = vrot.slane %v2703, %v2710
      %v2713 = vunpack.c.l.s4 1966171168
      %v2714 = vunpack.c.0.s8 %v2713
      %v2715 = vlaneseq
      %v2716 = vshrl.u32 %v2715, 7
      %v2717 = vsub.s32 %v2714, %v2716
      %v2718 = vrot.slane %v2704, %v2717
      %v2719 = vcombine.low %v2711, %v2718
      %v2720 = vcombine.low %v1753, %v1757
      %v2721 = vcombine.low %v1761, %v1765
      %v2722 = vcombine.low %v1769, %v1773
      %v2723 = vcombine.low %v1777, %v1781
      %v2725 = vunpack.c.l.s4 1966171168
      %v2726 = vunpack.c.0.s8 %v2725
      %v2727 = vlaneseq
      %v2728 = vshrl.u32 %v2727, 7
      %v2729 = vsub.s32 %v2726, %v2728
      %v2730 = vrot.slane %v2720, %v2729
      %v2732 = vunpack.c.l.s4 1966171168
      %v2733 = vunpack.c.0.s8 %v2732
      %v2734 = vlaneseq
      %v2735 = vshrl.u32 %v2734, 7
      %v2736 = vsub.s32 %v2733, %v2735
      %v2737 = vrot.slane %v2721, %v2736
      %v2739 = vunpack.c.l.s4 1966171168
      %v2740 = vunpack.c.0.s8 %v2739
      %v2741 = vlaneseq
      %v2742 = vshrl.u32 %v2741, 7
      %v2743 = vsub.s32 %v2740, %v2742
      %v2744 = vrot.slane %v2722, %v2743
      %v2746 = vunpack.c.l.s4 1966171168
      %v2747 = vunpack.c.0.s8 %v2746
      %v2748 = vlaneseq
      %v2749 = vshrl.u32 %v2748, 7
      %v2750 = vsub.s32 %v2747, %v2749
      %v2751 = vrot.slane %v2723, %v2750
      %v2752 = vcombine.low %v2730, %v2737
      %v2753 = vcombine.low %v2744, %v2751
      %v2755 = vunpack.c.l.s4 1966171168
      %v2756 = vunpack.c.0.s8 %v2755
      %v2757 = vlaneseq
      %v2758 = vshrl.u32 %v2757, 7
      %v2759 = vsub.s32 %v2756, %v2758
      %v2760 = vrot.slane %v2752, %v2759
      %v2762 = vunpack.c.l.s4 1966171168
      %v2763 = vunpack.c.0.s8 %v2762
      %v2764 = vlaneseq
      %v2765 = vshrl.u32 %v2764, 7
      %v2766 = vsub.s32 %v2763, %v2765
      %v2767 = vrot.slane %v2753, %v2766
      %v2768 = vcombine.low %v2760, %v2767
      %v2769 = vcombine.low %v1785, %v1789
      %v2770 = vcombine.low %v1793, %v1797
      %v2771 = vcombine.low %v1801, %v1805
      %v2772 = vcombine.low %v1809, %v1813
      %v2774 = vunpack.c.l.s4 1966171168
      %v2775 = vunpack.c.0.s8 %v2774
      %v2776 = vlaneseq
      %v2777 = vshrl.u32 %v2776, 7
      %v2778 = vsub.s32 %v2775, %v2777
      %v2779 = vrot.slane %v2769, %v2778
      %v2781 = vunpack.c.l.s4 1966171168
      %v2782 = vunpack.c.0.s8 %v2781
      %v2783 = vlaneseq
      %v2784 = vshrl.u32 %v2783, 7
      %v2785 = vsub.s32 %v2782, %v2784
      %v2786 = vrot.slane %v2770, %v2785
      %v2788 = vunpack.c.l.s4 1966171168
      %v2789 = vunpack.c.0.s8 %v2788
      %v2790 = vlaneseq
      %v2791 = vshrl.u32 %v2790, 7
      %v2792 = vsub.s32 %v2789, %v2791
      %v2793 = vrot.slane %v2771, %v2792
      %v2795 = vunpack.c.l.s4 1966171168
      %v2796 = vunpack.c.0.s8 %v2795
      %v2797 = vlaneseq
      %v2798 = vshrl.u32 %v2797, 7
      %v2799 = vsub.s32 %v2796, %v2798
      %v2800 = vrot.slane %v2772, %v2799
      %v2801 = vcombine.low %v2779, %v2786
      %v2802 = vcombine.low %v2793, %v2800
      %v2804 = vunpack.c.l.s4 1966171168
      %v2805 = vunpack.c.0.s8 %v2804
      %v2806 = vlaneseq
      %v2807 = vshrl.u32 %v2806, 7
      %v2808 = vsub.s32 %v2805, %v2807
      %v2809 = vrot.slane %v2801, %v2808
      %v2811 = vunpack.c.l.s4 1966171168
      %v2812 = vunpack.c.0.s8 %v2811
      %v2813 = vlaneseq
      %v2814 = vshrl.u32 %v2813, 7
      %v2815 = vsub.s32 %v2812, %v2814
      %v2816 = vrot.slane %v2802, %v2815
      %v2817 = vcombine.low %v2809, %v2816
      %v2818 = vcombine.low %v1817, %v1821
      %v2819 = vcombine.low %v1825, %v1829
      %v2820 = vcombine.low %v1833, %v1837
      %v2821 = vcombine.low %v1841, %v1845
      %v2823 = vunpack.c.l.s4 1966171168
      %v2824 = vunpack.c.0.s8 %v2823
      %v2825 = vlaneseq
      %v2826 = vshrl.u32 %v2825, 7
      %v2827 = vsub.s32 %v2824, %v2826
      %v2828 = vrot.slane %v2818, %v2827
      %v2830 = vunpack.c.l.s4 1966171168
      %v2831 = vunpack.c.0.s8 %v2830
      %v2832 = vlaneseq
      %v2833 = vshrl.u32 %v2832, 7
      %v2834 = vsub.s32 %v2831, %v2833
      %v2835 = vrot.slane %v2819, %v2834
      %v2837 = vunpack.c.l.s4 1966171168
      %v2838 = vunpack.c.0.s8 %v2837
      %v2839 = vlaneseq
      %v2840 = vshrl.u32 %v2839, 7
      %v2841 = vsub.s32 %v2838, %v2840
      %v2842 = vrot.slane %v2820, %v2841
      %v2844 = vunpack.c.l.s4 1966171168
      %v2845 = vunpack.c.0.s8 %v2844
      %v2846 = vlaneseq
      %v2847 = vshrl.u32 %v2846, 7
      %v2848 = vsub.s32 %v2845, %v2847
      %v2849 = vrot.slane %v2821, %v2848
      %v2850 = vcombine.low %v2828, %v2835
      %v2851 = vcombine.low %v2842, %v2849
      %v2853 = vunpack.c.l.s4 1966171168
      %v2854 = vunpack.c.0.s8 %v2853
      %v2855 = vlaneseq
      %v2856 = vshrl.u32 %v2855, 7
      %v2857 = vsub.s32 %v2854, %v2856
      %v2858 = vrot.slane %v2850, %v2857
      %v2860 = vunpack.c.l.s4 1966171168
      %v2861 = vunpack.c.0.s8 %v2860
      %v2862 = vlaneseq
      %v2863 = vshrl.u32 %v2862, 7
      %v2864 = vsub.s32 %v2861, %v2863
      %v2865 = vrot.slane %v2851, %v2864
      %v2866 = vcombine.low %v2858, %v2865
      %v2867 = vcombine.low %v1849, %v1853
      %v2868 = vcombine.low %v1857, %v1861
      %v2869 = vcombine.low %v1865, %v1869
      %v2870 = vcombine.low %v1873, %v1877
      %v2872 = vunpack.c.l.s4 1966171168
      %v2873 = vunpack.c.0.s8 %v2872
      %v2874 = vlaneseq
      %v2875 = vshrl.u32 %v2874, 7
      %v2876 = vsub.s32 %v2873, %v2875
      %v2877 = vrot.slane %v2867, %v2876
      %v2879 = vunpack.c.l.s4 1966171168
      %v2880 = vunpack.c.0.s8 %v2879
      %v2881 = vlaneseq
      %v2882 = vshrl.u32 %v2881, 7
      %v2883 = vsub.s32 %v2880, %v2882
      %v2884 = vrot.slane %v2868, %v2883
      %v2886 = vunpack.c.l.s4 1966171168
      %v2887 = vunpack.c.0.s8 %v2886
      %v2888 = vlaneseq
      %v2889 = vshrl.u32 %v2888, 7
      %v2890 = vsub.s32 %v2887, %v2889
      %v2891 = vrot.slane %v2869, %v2890
      %v2893 = vunpack.c.l.s4 1966171168
      %v2894 = vunpack.c.0.s8 %v2893
      %v2895 = vlaneseq
      %v2896 = vshrl.u32 %v2895, 7
      %v2897 = vsub.s32 %v2894, %v2896
      %v2898 = vrot.slane %v2870, %v2897
      %v2899 = vcombine.low %v2877, %v2884
      %v2900 = vcombine.low %v2891, %v2898
      %v2902 = vunpack.c.l.s4 1966171168
      %v2903 = vunpack.c.0.s8 %v2902
      %v2904 = vlaneseq
      %v2905 = vshrl.u32 %v2904, 7
      %v2906 = vsub.s32 %v2903, %v2905
      %v2907 = vrot.slane %v2899, %v2906
      %v2909 = vunpack.c.l.s4 1966171168
      %v2910 = vunpack.c.0.s8 %v2909
      %v2911 = vlaneseq
      %v2912 = vshrl.u32 %v2911, 7
      %v2913 = vsub.s32 %v2910, %v2912
      %v2914 = vrot.slane %v2900, %v2913
      %v2915 = vcombine.low %v2907, %v2914
      %v2916 = vcombine.low %v1881, %v1885
      %v2917 = vcombine.low %v1889, %v1893
      %v2918 = vcombine.low %v1897, %v1901
      %v2919 = vcombine.low %v1905, %v1909
      %v2921 = vunpack.c.l.s4 1966171168
      %v2922 = vunpack.c.0.s8 %v2921
      %v2923 = vlaneseq
      %v2924 = vshrl.u32 %v2923, 7
      %v2925 = vsub.s32 %v2922, %v2924
      %v2926 = vrot.slane %v2916, %v2925
      %v2928 = vunpack.c.l.s4 1966171168
      %v2929 = vunpack.c.0.s8 %v2928
      %v2930 = vlaneseq
      %v2931 = vshrl.u32 %v2930, 7
      %v2932 = vsub.s32 %v2929, %v2931
      %v2933 = vrot.slane %v2917, %v2932
      %v2935 = vunpack.c.l.s4 1966171168
      %v2936 = vunpack.c.0.s8 %v2935
      %v2937 = vlaneseq
      %v2938 = vshrl.u32 %v2937, 7
      %v2939 = vsub.s32 %v2936, %v2938
      %v2940 = vrot.slane %v2918, %v2939
      %v2942 = vunpack.c.l.s4 1966171168
      %v2943 = vunpack.c.0.s8 %v2942
      %v2944 = vlaneseq
      %v2945 = vshrl.u32 %v2944, 7
      %v2946 = vsub.s32 %v2943, %v2945
      %v2947 = vrot.slane %v2919, %v2946
      %v2948 = vcombine.low %v2926, %v2933
      %v2949 = vcombine.low %v2940, %v2947
      %v2951 = vunpack.c.l.s4 1966171168
      %v2952 = vunpack.c.0.s8 %v2951
      %v2953 = vlaneseq
      %v2954 = vshrl.u32 %v2953, 7
      %v2955 = vsub.s32 %v2952, %v2954
      %v2956 = vrot.slane %v2948, %v2955
      %v2958 = vunpack.c.l.s4 1966171168
      %v2959 = vunpack.c.0.s8 %v2958
      %v2960 = vlaneseq
      %v2961 = vshrl.u32 %v2960, 7
      %v2962 = vsub.s32 %v2959, %v2961
      %v2963 = vrot.slane %v2949, %v2962
      %v2964 = vcombine.low %v2956, %v2963
      %v2965 = vcombine.low %v1913, %v1917
      %v2966 = vcombine.low %v1921, %v1925
      %v2967 = vcombine.low %v1929, %v1933
      %v2968 = vcombine.low %v1937, %v1941
      %v2970 = vunpack.c.l.s4 1966171168
      %v2971 = vunpack.c.0.s8 %v2970
      %v2972 = vlaneseq
      %v2973 = vshrl.u32 %v2972, 7
      %v2974 = vsub.s32 %v2971, %v2973
      %v2975 = vrot.slane %v2965, %v2974
      %v2977 = vunpack.c.l.s4 1966171168
      %v2978 = vunpack.c.0.s8 %v2977
      %v2979 = vlaneseq
      %v2980 = vshrl.u32 %v2979, 7
      %v2981 = vsub.s32 %v2978, %v2980
      %v2982 = vrot.slane %v2966, %v2981
      %v2984 = vunpack.c.l.s4 1966171168
      %v2985 = vunpack.c.0.s8 %v2984
      %v2986 = vlaneseq
      %v2987 = vshrl.u32 %v2986, 7
      %v2988 = vsub.s32 %v2985, %v2987
      %v2989 = vrot.slane %v2967, %v2988
      %v2991 = vunpack.c.l.s4 1966171168
      %v2992 = vunpack.c.0.s8 %v2991
      %v2993 = vlaneseq
      %v2994 = vshrl.u32 %v2993, 7
      %v2995 = vsub.s32 %v2992, %v2994
      %v2996 = vrot.slane %v2968, %v2995
      %v2997 = vcombine.low %v2975, %v2982
      %v2998 = vcombine.low %v2989, %v2996
      %v3000 = vunpack.c.l.s4 1966171168
      %v3001 = vunpack.c.0.s8 %v3000
      %v3002 = vlaneseq
      %v3003 = vshrl.u32 %v3002, 7
      %v3004 = vsub.s32 %v3001, %v3003
      %v3005 = vrot.slane %v2997, %v3004
      %v3007 = vunpack.c.l.s4 1966171168
      %v3008 = vunpack.c.0.s8 %v3007
      %v3009 = vlaneseq
      %v3010 = vshrl.u32 %v3009, 7
      %v3011 = vsub.s32 %v3008, %v3010
      %v3012 = vrot.slane %v2998, %v3011
      %v3013 = vcombine.low %v3005, %v3012
      %v3014 = vcombine.low %v1945, %v1949
      %v3015 = vcombine.low %v1953, %v1957
      %v3016 = vcombine.low %v1961, %v1965
      %v3017 = vcombine.low %v1969, %v1973
      %v3019 = vunpack.c.l.s4 1966171168
      %v3020 = vunpack.c.0.s8 %v3019
      %v3021 = vlaneseq
      %v3022 = vshrl.u32 %v3021, 7
      %v3023 = vsub.s32 %v3020, %v3022
      %v3024 = vrot.slane %v3014, %v3023
      %v3026 = vunpack.c.l.s4 1966171168
      %v3027 = vunpack.c.0.s8 %v3026
      %v3028 = vlaneseq
      %v3029 = vshrl.u32 %v3028, 7
      %v3030 = vsub.s32 %v3027, %v3029
      %v3031 = vrot.slane %v3015, %v3030
      %v3033 = vunpack.c.l.s4 1966171168
      %v3034 = vunpack.c.0.s8 %v3033
      %v3035 = vlaneseq
      %v3036 = vshrl.u32 %v3035, 7
      %v3037 = vsub.s32 %v3034, %v3036
      %v3038 = vrot.slane %v3016, %v3037
      %v3040 = vunpack.c.l.s4 1966171168
      %v3041 = vunpack.c.0.s8 %v3040
      %v3042 = vlaneseq
      %v3043 = vshrl.u32 %v3042, 7
      %v3044 = vsub.s32 %v3041, %v3043
      %v3045 = vrot.slane %v3017, %v3044
      %v3046 = vcombine.low %v3024, %v3031
      %v3047 = vcombine.low %v3038, %v3045
      %v3049 = vunpack.c.l.s4 1966171168
      %v3050 = vunpack.c.0.s8 %v3049
      %v3051 = vlaneseq
      %v3052 = vshrl.u32 %v3051, 7
      %v3053 = vsub.s32 %v3050, %v3052
      %v3054 = vrot.slane %v3046, %v3053
      %v3056 = vunpack.c.l.s4 1966171168
      %v3057 = vunpack.c.0.s8 %v3056
      %v3058 = vlaneseq
      %v3059 = vshrl.u32 %v3058, 7
      %v3060 = vsub.s32 %v3057, %v3059
      %v3061 = vrot.slane %v3047, %v3060
      %v3062 = vcombine.low %v3054, %v3061
      %v3063 = vcombine.low %v1977, %v1981
      %v3064 = vcombine.low %v1985, %v1989
      %v3065 = vcombine.low %v1993, %v1997
      %v3066 = vcombine.low %v2001, %v2005
      %v3068 = vunpack.c.l.s4 1966171168
      %v3069 = vunpack.c.0.s8 %v3068
      %v3070 = vlaneseq
      %v3071 = vshrl.u32 %v3070, 7
      %v3072 = vsub.s32 %v3069, %v3071
      %v3073 = vrot.slane %v3063, %v3072
      %v3075 = vunpack.c.l.s4 1966171168
      %v3076 = vunpack.c.0.s8 %v3075
      %v3077 = vlaneseq
      %v3078 = vshrl.u32 %v3077, 7
      %v3079 = vsub.s32 %v3076, %v3078
      %v3080 = vrot.slane %v3064, %v3079
      %v3082 = vunpack.c.l.s4 1966171168
      %v3083 = vunpack.c.0.s8 %v3082
      %v3084 = vlaneseq
      %v3085 = vshrl.u32 %v3084, 7
      %v3086 = vsub.s32 %v3083, %v3085
      %v3087 = vrot.slane %v3065, %v3086
      %v3089 = vunpack.c.l.s4 1966171168
      %v3090 = vunpack.c.0.s8 %v3089
      %v3091 = vlaneseq
      %v3092 = vshrl.u32 %v3091, 7
      %v3093 = vsub.s32 %v3090, %v3092
      %v3094 = vrot.slane %v3066, %v3093
      %v3095 = vcombine.low %v3073, %v3080
      %v3096 = vcombine.low %v3087, %v3094
      %v3098 = vunpack.c.l.s4 1966171168
      %v3099 = vunpack.c.0.s8 %v3098
      %v3100 = vlaneseq
      %v3101 = vshrl.u32 %v3100, 7
      %v3102 = vsub.s32 %v3099, %v3101
      %v3103 = vrot.slane %v3095, %v3102
      %v3105 = vunpack.c.l.s4 1966171168
      %v3106 = vunpack.c.0.s8 %v3105
      %v3107 = vlaneseq
      %v3108 = vshrl.u32 %v3107, 7
      %v3109 = vsub.s32 %v3106, %v3108
      %v3110 = vrot.slane %v3096, %v3109
      %v3111 = vcombine.low %v3103, %v3110
      %v3112 = vcombine.low %v2009, %v2013
      %v3113 = vcombine.low %v2017, %v2021
      %v3114 = vcombine.low %v2025, %v2029
      %v3115 = vcombine.low %v2033, %v2037
      %v3117 = vunpack.c.l.s4 1966171168
      %v3118 = vunpack.c.0.s8 %v3117
      %v3119 = vlaneseq
      %v3120 = vshrl.u32 %v3119, 7
      %v3121 = vsub.s32 %v3118, %v3120
      %v3122 = vrot.slane %v3112, %v3121
      %v3124 = vunpack.c.l.s4 1966171168
      %v3125 = vunpack.c.0.s8 %v3124
      %v3126 = vlaneseq
      %v3127 = vshrl.u32 %v3126, 7
      %v3128 = vsub.s32 %v3125, %v3127
      %v3129 = vrot.slane %v3113, %v3128
      %v3131 = vunpack.c.l.s4 1966171168
      %v3132 = vunpack.c.0.s8 %v3131
      %v3133 = vlaneseq
      %v3134 = vshrl.u32 %v3133, 7
      %v3135 = vsub.s32 %v3132, %v3134
      %v3136 = vrot.slane %v3114, %v3135
      %v3138 = vunpack.c.l.s4 1966171168
      %v3139 = vunpack.c.0.s8 %v3138
      %v3140 = vlaneseq
      %v3141 = vshrl.u32 %v3140, 7
      %v3142 = vsub.s32 %v3139, %v3141
      %v3143 = vrot.slane %v3115, %v3142
      %v3144 = vcombine.low %v3122, %v3129
      %v3145 = vcombine.low %v3136, %v3143
      %v3147 = vunpack.c.l.s4 1966171168
      %v3148 = vunpack.c.0.s8 %v3147
      %v3149 = vlaneseq
      %v3150 = vshrl.u32 %v3149, 7
      %v3151 = vsub.s32 %v3148, %v3150
      %v3152 = vrot.slane %v3144, %v3151
      %v3154 = vunpack.c.l.s4 1966171168
      %v3155 = vunpack.c.0.s8 %v3154
      %v3156 = vlaneseq
      %v3157 = vshrl.u32 %v3156, 7
      %v3158 = vsub.s32 %v3155, %v3157
      %v3159 = vrot.slane %v3145, %v3158
      %v3160 = vcombine.low %v3152, %v3159
      %v3161 = vcombine.low %v2041, %v2045
      %v3162 = vcombine.low %v2049, %v2053
      %v3163 = vcombine.low %v2057, %v2061
      %v3164 = vcombine.low %v2065, %v2069
      %v3166 = vunpack.c.l.s4 1966171168
      %v3167 = vunpack.c.0.s8 %v3166
      %v3168 = vlaneseq
      %v3169 = vshrl.u32 %v3168, 7
      %v3170 = vsub.s32 %v3167, %v3169
      %v3171 = vrot.slane %v3161, %v3170
      %v3173 = vunpack.c.l.s4 1966171168
      %v3174 = vunpack.c.0.s8 %v3173
      %v3175 = vlaneseq
      %v3176 = vshrl.u32 %v3175, 7
      %v3177 = vsub.s32 %v3174, %v3176
      %v3178 = vrot.slane %v3162, %v3177
      %v3180 = vunpack.c.l.s4 1966171168
      %v3181 = vunpack.c.0.s8 %v3180
      %v3182 = vlaneseq
      %v3183 = vshrl.u32 %v3182, 7
      %v3184 = vsub.s32 %v3181, %v3183
      %v3185 = vrot.slane %v3163, %v3184
      %v3187 = vunpack.c.l.s4 1966171168
      %v3188 = vunpack.c.0.s8 %v3187
      %v3189 = vlaneseq
      %v3190 = vshrl.u32 %v3189, 7
      %v3191 = vsub.s32 %v3188, %v3190
      %v3192 = vrot.slane %v3164, %v3191
      %v3193 = vcombine.low %v3171, %v3178
      %v3194 = vcombine.low %v3185, %v3192
      %v3196 = vunpack.c.l.s4 1966171168
      %v3197 = vunpack.c.0.s8 %v3196
      %v3198 = vlaneseq
      %v3199 = vshrl.u32 %v3198, 7
      %v3200 = vsub.s32 %v3197, %v3199
      %v3201 = vrot.slane %v3193, %v3200
      %v3203 = vunpack.c.l.s4 1966171168
      %v3204 = vunpack.c.0.s8 %v3203
      %v3205 = vlaneseq
      %v3206 = vshrl.u32 %v3205, 7
      %v3207 = vsub.s32 %v3204, %v3206
      %v3208 = vrot.slane %v3194, %v3207
      %v3209 = vcombine.low %v3201, %v3208
      %v3210 = vcombine.low %v2073, %v2077
      %v3211 = vcombine.low %v2081, %v2085
      %v3212 = vcombine.low %v2089, %v2093
      %v3213 = vcombine.low %v2097, %v2101
      %v3215 = vunpack.c.l.s4 1966171168
      %v3216 = vunpack.c.0.s8 %v3215
      %v3217 = vlaneseq
      %v3218 = vshrl.u32 %v3217, 7
      %v3219 = vsub.s32 %v3216, %v3218
      %v3220 = vrot.slane %v3210, %v3219
      %v3222 = vunpack.c.l.s4 1966171168
      %v3223 = vunpack.c.0.s8 %v3222
      %v3224 = vlaneseq
      %v3225 = vshrl.u32 %v3224, 7
      %v3226 = vsub.s32 %v3223, %v3225
      %v3227 = vrot.slane %v3211, %v3226
      %v3229 = vunpack.c.l.s4 1966171168
      %v3230 = vunpack.c.0.s8 %v3229
      %v3231 = vlaneseq
      %v3232 = vshrl.u32 %v3231, 7
      %v3233 = vsub.s32 %v3230, %v3232
      %v3234 = vrot.slane %v3212, %v3233
      %v3236 = vunpack.c.l.s4 1966171168
      %v3237 = vunpack.c.0.s8 %v3236
      %v3238 = vlaneseq
      %v3239 = vshrl.u32 %v3238, 7
      %v3240 = vsub.s32 %v3237, %v3239
      %v3241 = vrot.slane %v3213, %v3240
      %v3242 = vcombine.low %v3220, %v3227
      %v3243 = vcombine.low %v3234, %v3241
      %v3245 = vunpack.c.l.s4 1966171168
      %v3246 = vunpack.c.0.s8 %v3245
      %v3247 = vlaneseq
      %v3248 = vshrl.u32 %v3247, 7
      %v3249 = vsub.s32 %v3246, %v3248
      %v3250 = vrot.slane %v3242, %v3249
      %v3252 = vunpack.c.l.s4 1966171168
      %v3253 = vunpack.c.0.s8 %v3252
      %v3254 = vlaneseq
      %v3255 = vshrl.u32 %v3254, 7
      %v3256 = vsub.s32 %v3253, %v3255
      %v3257 = vrot.slane %v3243, %v3256
      %v3258 = vcombine.low %v3250, %v3257
      %v3259 = vcombine.low %v2105, %v2109
      %v3260 = vcombine.low %v2113, %v2117
      %v3261 = vcombine.low %v2121, %v2125
      %v3262 = vcombine.low %v2129, %v2133
      %v3264 = vunpack.c.l.s4 1966171168
      %v3265 = vunpack.c.0.s8 %v3264
      %v3266 = vlaneseq
      %v3267 = vshrl.u32 %v3266, 7
      %v3268 = vsub.s32 %v3265, %v3267
      %v3269 = vrot.slane %v3259, %v3268
      %v3271 = vunpack.c.l.s4 1966171168
      %v3272 = vunpack.c.0.s8 %v3271
      %v3273 = vlaneseq
      %v3274 = vshrl.u32 %v3273, 7
      %v3275 = vsub.s32 %v3272, %v3274
      %v3276 = vrot.slane %v3260, %v3275
      %v3278 = vunpack.c.l.s4 1966171168
      %v3279 = vunpack.c.0.s8 %v3278
      %v3280 = vlaneseq
      %v3281 = vshrl.u32 %v3280, 7
      %v3282 = vsub.s32 %v3279, %v3281
      %v3283 = vrot.slane %v3261, %v3282
      %v3285 = vunpack.c.l.s4 1966171168
      %v3286 = vunpack.c.0.s8 %v3285
      %v3287 = vlaneseq
      %v3288 = vshrl.u32 %v3287, 7
      %v3289 = vsub.s32 %v3286, %v3288
      %v3290 = vrot.slane %v3262, %v3289
      %v3291 = vcombine.low %v3269, %v3276
      %v3292 = vcombine.low %v3283, %v3290
      %v3294 = vunpack.c.l.s4 1966171168
      %v3295 = vunpack.c.0.s8 %v3294
      %v3296 = vlaneseq
      %v3297 = vshrl.u32 %v3296, 7
      %v3298 = vsub.s32 %v3295, %v3297
      %v3299 = vrot.slane %v3291, %v3298
      %v3301 = vunpack.c.l.s4 1966171168
      %v3302 = vunpack.c.0.s8 %v3301
      %v3303 = vlaneseq
      %v3304 = vshrl.u32 %v3303, 7
      %v3305 = vsub.s32 %v3302, %v3304
      %v3306 = vrot.slane %v3292, %v3305
      %v3307 = vcombine.low %v3299, %v3306
      %v3308 = vcombine.low %v2137, %v2141
      %v3309 = vcombine.low %v2145, %v2149
      %v3310 = vcombine.low %v2153, %v2157
      %v3311 = vcombine.low %v2161, %v2165
      %v3313 = vunpack.c.l.s4 1966171168
      %v3314 = vunpack.c.0.s8 %v3313
      %v3315 = vlaneseq
      %v3316 = vshrl.u32 %v3315, 7
      %v3317 = vsub.s32 %v3314, %v3316
      %v3318 = vrot.slane %v3308, %v3317
      %v3320 = vunpack.c.l.s4 1966171168
      %v3321 = vunpack.c.0.s8 %v3320
      %v3322 = vlaneseq
      %v3323 = vshrl.u32 %v3322, 7
      %v3324 = vsub.s32 %v3321, %v3323
      %v3325 = vrot.slane %v3309, %v3324
      %v3327 = vunpack.c.l.s4 1966171168
      %v3328 = vunpack.c.0.s8 %v3327
      %v3329 = vlaneseq
      %v3330 = vshrl.u32 %v3329, 7
      %v3331 = vsub.s32 %v3328, %v3330
      %v3332 = vrot.slane %v3310, %v3331
      %v3334 = vunpack.c.l.s4 1966171168
      %v3335 = vunpack.c.0.s8 %v3334
      %v3336 = vlaneseq
      %v3337 = vshrl.u32 %v3336, 7
      %v3338 = vsub.s32 %v3335, %v3337
      %v3339 = vrot.slane %v3311, %v3338
      %v3340 = vcombine.low %v3318, %v3325
      %v3341 = vcombine.low %v3332, %v3339
      %v3343 = vunpack.c.l.s4 1966171168
      %v3344 = vunpack.c.0.s8 %v3343
      %v3345 = vlaneseq
      %v3346 = vshrl.u32 %v3345, 7
      %v3347 = vsub.s32 %v3344, %v3346
      %v3348 = vrot.slane %v3340, %v3347
      %v3350 = vunpack.c.l.s4 1966171168
      %v3351 = vunpack.c.0.s8 %v3350
      %v3352 = vlaneseq
      %v3353 = vshrl.u32 %v3352, 7
      %v3354 = vsub.s32 %v3351, %v3353
      %v3355 = vrot.slane %v3341, %v3354
      %v3356 = vcombine.low %v3348, %v3355
      %v3357 = vcombine.low %v2169, %v2173
      %v3358 = vcombine.low %v2177, %v2181
      %v3359 = vcombine.low %v2185, %v2189
      %v3360 = vcombine.low %v2193, %v2197
      %v3362 = vunpack.c.l.s4 1966171168
      %v3363 = vunpack.c.0.s8 %v3362
      %v3364 = vlaneseq
      %v3365 = vshrl.u32 %v3364, 7
      %v3366 = vsub.s32 %v3363, %v3365
      %v3367 = vrot.slane %v3357, %v3366
      %v3369 = vunpack.c.l.s4 1966171168
      %v3370 = vunpack.c.0.s8 %v3369
      %v3371 = vlaneseq
      %v3372 = vshrl.u32 %v3371, 7
      %v3373 = vsub.s32 %v3370, %v3372
      %v3374 = vrot.slane %v3358, %v3373
      %v3376 = vunpack.c.l.s4 1966171168
      %v3377 = vunpack.c.0.s8 %v3376
      %v3378 = vlaneseq
      %v3379 = vshrl.u32 %v3378, 7
      %v3380 = vsub.s32 %v3377, %v3379
      %v3381 = vrot.slane %v3359, %v3380
      %v3383 = vunpack.c.l.s4 1966171168
      %v3384 = vunpack.c.0.s8 %v3383
      %v3385 = vlaneseq
      %v3386 = vshrl.u32 %v3385, 7
      %v3387 = vsub.s32 %v3384, %v3386
      %v3388 = vrot.slane %v3360, %v3387
      %v3389 = vcombine.low %v3367, %v3374
      %v3390 = vcombine.low %v3381, %v3388
      %v3392 = vunpack.c.l.s4 1966171168
      %v3393 = vunpack.c.0.s8 %v3392
      %v3394 = vlaneseq
      %v3395 = vshrl.u32 %v3394, 7
      %v3396 = vsub.s32 %v3393, %v3395
      %v3397 = vrot.slane %v3389, %v3396
      %v3399 = vunpack.c.l.s4 1966171168
      %v3400 = vunpack.c.0.s8 %v3399
      %v3401 = vlaneseq
      %v3402 = vshrl.u32 %v3401, 7
      %v3403 = vsub.s32 %v3400, %v3402
      %v3404 = vrot.slane %v3390, %v3403
      %v3405 = vcombine.low %v3397, %v3404
      %v3406 = vcombine.low %v2201, %v2205
      %v3407 = vcombine.low %v2209, %v2213
      %v3408 = vcombine.low %v2217, %v2221
      %v3409 = vcombine.low %v2225, %v2229
      %v3411 = vunpack.c.l.s4 1966171168
      %v3412 = vunpack.c.0.s8 %v3411
      %v3413 = vlaneseq
      %v3414 = vshrl.u32 %v3413, 7
      %v3415 = vsub.s32 %v3412, %v3414
      %v3416 = vrot.slane %v3406, %v3415
      %v3418 = vunpack.c.l.s4 1966171168
      %v3419 = vunpack.c.0.s8 %v3418
      %v3420 = vlaneseq
      %v3421 = vshrl.u32 %v3420, 7
      %v3422 = vsub.s32 %v3419, %v3421
      %v3423 = vrot.slane %v3407, %v3422
      %v3425 = vunpack.c.l.s4 1966171168
      %v3426 = vunpack.c.0.s8 %v3425
      %v3427 = vlaneseq
      %v3428 = vshrl.u32 %v3427, 7
      %v3429 = vsub.s32 %v3426, %v3428
      %v3430 = vrot.slane %v3408, %v3429
      %v3432 = vunpack.c.l.s4 1966171168
      %v3433 = vunpack.c.0.s8 %v3432
      %v3434 = vlaneseq
      %v3435 = vshrl.u32 %v3434, 7
      %v3436 = vsub.s32 %v3433, %v3435
      %v3437 = vrot.slane %v3409, %v3436
      %v3438 = vcombine.low %v3416, %v3423
      %v3439 = vcombine.low %v3430, %v3437
      %v3441 = vunpack.c.l.s4 1966171168
      %v3442 = vunpack.c.0.s8 %v3441
      %v3443 = vlaneseq
      %v3444 = vshrl.u32 %v3443, 7
      %v3445 = vsub.s32 %v3442, %v3444
      %v3446 = vrot.slane %v3438, %v3445
      %v3448 = vunpack.c.l.s4 1966171168
      %v3449 = vunpack.c.0.s8 %v3448
      %v3450 = vlaneseq
      %v3451 = vshrl.u32 %v3450, 7
      %v3452 = vsub.s32 %v3449, %v3451
      %v3453 = vrot.slane %v3439, %v3452
      %v3454 = vcombine.low %v3446, %v3453
      %3455 = vset.pattern.permute.xlu0 0
      %3456 = vperm.xlu0 %3455, %v2278
      %v3457 = vpop.permute.xlu0 %3456
      %3458 = vset.pattern.permute.xlu0 0
      %3459 = vperm.xlu0 %3458, %v2327
      %v3460 = vpop.permute.xlu0 %3459
      %3461 = vset.pattern.permute.xlu0 0
      %3462 = vperm.xlu0 %3461, %v2376
      %v3463 = vpop.permute.xlu0 %3462
      %3464 = vset.pattern.permute.xlu0 0
      %3465 = vperm.xlu0 %3464, %v2425
      %v3466 = vpop.permute.xlu0 %3465
      %3467 = vset.pattern.permute.xlu0 0
      %3468 = vperm.xlu0 %3467, %v2474
      %v3469 = vpop.permute.xlu0 %3468
      %3470 = vset.pattern.permute.xlu0 0
      %3471 = vperm.xlu0 %3470, %v2523
      %v3472 = vpop.permute.xlu0 %3471
      %3473 = vset.pattern.permute.xlu0 0
      %3474 = vperm.xlu0 %3473, %v2572
      %v3475 = vpop.permute.xlu0 %3474
      %3476 = vset.pattern.permute.xlu0 0
      %3477 = vperm.xlu0 %3476, %v2621
      %v3478 = vpop.permute.xlu0 %3477
      %3479 = vset.pattern.permute.xlu0 0
      %3480 = vperm.xlu0 %3479, %v2670
      %v3481 = vpop.permute.xlu0 %3480
      %3482 = vset.pattern.permute.xlu0 0
      %3483 = vperm.xlu0 %3482, %v2719
      %v3484 = vpop.permute.xlu0 %3483
      %3485 = vset.pattern.permute.xlu0 0
      %3486 = vperm.xlu0 %3485, %v2768
      %v3487 = vpop.permute.xlu0 %3486
      %3488 = vset.pattern.permute.xlu0 0
      %3489 = vperm.xlu0 %3488, %v2817
      %v3490 = vpop.permute.xlu0 %3489
      %3491 = vset.pattern.permute.xlu0 0
      %3492 = vperm.xlu0 %3491, %v2866
      %v3493 = vpop.permute.xlu0 %3492
      %3494 = vset.pattern.permute.xlu0 0
      %3495 = vperm.xlu0 %3494, %v2915
      %v3496 = vpop.permute.xlu0 %3495
      %3497 = vset.pattern.permute.xlu0 0
      %3498 = vperm.xlu0 %3497, %v2964
      %v3499 = vpop.permute.xlu0 %3498
      %3500 = vset.pattern.permute.xlu0 0
      %3501 = vperm.xlu0 %3500, %v3013
      %v3502 = vpop.permute.xlu0 %3501
      %3503 = vset.pattern.permute.xlu0 0
      %3504 = vperm.xlu0 %3503, %v3062
      %v3505 = vpop.permute.xlu0 %3504
      %3506 = vset.pattern.permute.xlu0 0
      %3507 = vperm.xlu0 %3506, %v3111
      %v3508 = vpop.permute.xlu0 %3507
      %3509 = vset.pattern.permute.xlu0 0
      %3510 = vperm.xlu0 %3509, %v3160
      %v3511 = vpop.permute.xlu0 %3510
      %3512 = vset.pattern.permute.xlu0 0
      %3513 = vperm.xlu0 %3512, %v3209
      %v3514 = vpop.permute.xlu0 %3513
      %3515 = vset.pattern.permute.xlu0 0
      %3516 = vperm.xlu0 %3515, %v3258
      %v3517 = vpop.permute.xlu0 %3516
      %3518 = vset.pattern.permute.xlu0 0
      %3519 = vperm.xlu0 %3518, %v3307
      %v3520 = vpop.permute.xlu0 %3519
      %3521 = vset.pattern.permute.xlu0 0
      %3522 = vperm.xlu0 %3521, %v3356
      %v3523 = vpop.permute.xlu0 %3522
      %3524 = vset.pattern.permute.xlu0 0
      %3525 = vperm.xlu0 %3524, %v3405
      %v3526 = vpop.permute.xlu0 %3525
      %3527 = vset.pattern.permute.xlu0 0
      %3528 = vperm.xlu0 %3527, %v3454
      %v3529 = vpop.permute.xlu0 %3528
      %v3530 = vlaneseq
      %v3531 = vshrl.u32 %v3530, 7
      %v3532 = vsub.s32 %v531, %v3531
      %v3533 = vrot.slane %v3457, %v3532
      %v3534 = vadd.s32 %v531, 4294967288
      %v3535 = vlaneseq
      %v3536 = vshrl.u32 %v3535, 7
      %v3537 = vsub.s32 %v3534, %v3536
      %v3538 = vrot.slane %v3460, %v3537
      %vm3539 = vcmask 130112
      %v3540 = vsel %vm3539, %v3538, %v3533
      %v3541 = vadd.s32 %v531, 4294967280
      %v3542 = vlaneseq
      %v3543 = vshrl.u32 %v3542, 7
      %v3544 = vsub.s32 %v3541, %v3543
      %v3545 = vrot.slane %v3463, %v3544
      %vm3546 = vcmask 195712
      %v3547 = vsel %vm3546, %v3545, %v3540
      %v3548 = vadd.s32 %v531, 4294967272
      %v3549 = vlaneseq
      %v3550 = vshrl.u32 %v3549, 7
      %v3551 = vsub.s32 %v3548, %v3550
      %v3552 = vrot.slane %v3466, %v3551
      %vm3553 = vcmask 261312
      %v3554 = vsel %vm3553, %v3552, %v3547
      %v3555 = vadd.s32 %v531, 4294967264
      %v3556 = vlaneseq
      %v3557 = vshrl.u32 %v3556, 7
      %v3558 = vsub.s32 %v3555, %v3557
      %v3559 = vrot.slane %v3469, %v3558
      %vm3560 = vcmask 326912
      %v3561 = vsel %vm3560, %v3559, %v3554
      %v3562 = vadd.s32 %v531, 4294967256
      %v3563 = vlaneseq
      %v3564 = vshrl.u32 %v3563, 7
      %v3565 = vsub.s32 %v3562, %v3564
      %v3566 = vrot.slane %v3472, %v3565
      %vm3567 = vcmask 392512
      %v3568 = vsel %vm3567, %v3566, %v3561
      %v3569 = vadd.s32 %v531, 4294967248
      %v3570 = vlaneseq
      %v3571 = vshrl.u32 %v3570, 7
      %v3572 = vsub.s32 %v3569, %v3571
      %v3573 = vrot.slane %v3475, %v3572
      %vm3574 = vcmask 458112
      %v3575 = vsel %vm3574, %v3573, %v3568
      %v3576 = vadd.s32 %v531, 4294967240
      %v3577 = vlaneseq
      %v3578 = vshrl.u32 %v3577, 7
      %v3579 = vsub.s32 %v3576, %v3578
      %v3580 = vrot.slane %v3478, %v3579
      %vm3581 = vcmask 523712
      %v3582 = vsel %vm3581, %v3580, %v3575
      %v3583 = vadd.s32 %v531, 4294967232
      %v3584 = vlaneseq
      %v3585 = vshrl.u32 %v3584, 7
      %v3586 = vsub.s32 %v3583, %v3585
      %v3587 = vrot.slane %v3481, %v3586
      %vm3588 = vcmask 589312
      %v3589 = vsel %vm3588, %v3587, %v3582
      %v3590 = vadd.s32 %v531, 4294967224
      %v3591 = vlaneseq
      %v3592 = vshrl.u32 %v3591, 7
      %v3593 = vsub.s32 %v3590, %v3592
      %v3594 = vrot.slane %v3484, %v3593
      %vm3595 = vcmask 654912
      %v3596 = vsel %vm3595, %v3594, %v3589
      %v3597 = vadd.s32 %v531, 4294967216
      %v3598 = vlaneseq
      %v3599 = vshrl.u32 %v3598, 7
      %v3600 = vsub.s32 %v3597, %v3599
      %v3601 = vrot.slane %v3487, %v3600
      %vm3602 = vcmask 720512
      %v3603 = vsel %vm3602, %v3601, %v3596
      %v3604 = vadd.s32 %v531, 4294967208
      %v3605 = vlaneseq
      %v3606 = vshrl.u32 %v3605, 7
      %v3607 = vsub.s32 %v3604, %v3606
      %v3608 = vrot.slane %v3490, %v3607
      %vm3609 = vcmask 786112
      %v3610 = vsel %vm3609, %v3608, %v3603
      %v3611 = vadd.s32 %v531, 4294967200
      %v3612 = vlaneseq
      %v3613 = vshrl.u32 %v3612, 7
      %v3614 = vsub.s32 %v3611, %v3613
      %v3615 = vrot.slane %v3493, %v3614
      %vm3616 = vcmask 851712
      %v3617 = vsel %vm3616, %v3615, %v3610
      %v3618 = vadd.s32 %v531, 4294967192
      %v3619 = vlaneseq
      %v3620 = vshrl.u32 %v3619, 7
      %v3621 = vsub.s32 %v3618, %v3620
      %v3622 = vrot.slane %v3496, %v3621
      %vm3623 = vcmask 917312
      %v3624 = vsel %vm3623, %v3622, %v3617
      %v3625 = vadd.s32 %v531, 4294967184
      %v3626 = vlaneseq
      %v3627 = vshrl.u32 %v3626, 7
      %v3628 = vsub.s32 %v3625, %v3627
      %v3629 = vrot.slane %v3499, %v3628
      %vm3630 = vcmask 982912
      %v3631 = vsel %vm3630, %v3629, %v3624
      %v3632 = vadd.s32 %v531, 4294967176
      %v3633 = vlaneseq
      %v3634 = vshrl.u32 %v3633, 7
      %v3635 = vsub.s32 %v3632, %v3634
      %v3636 = vrot.slane %v3502, %v3635
      %vm3637 = vcmask 1048512
      %v3638 = vsel %vm3637, %v3636, %v3631
      %v3639 = vlaneseq
      %v3640 = vshrl.u32 %v3639, 7
      %v3641 = vsub.s32 %v531, %v3640
      %v3642 = vrot.slane %v3505, %v3641
      %v3643 = vlaneseq
      %v3644 = vshrl.u32 %v3643, 7
      %v3645 = vsub.s32 %v3534, %v3644
      %v3646 = vrot.slane %v3508, %v3645
      %v3647 = vsel %vm3539, %v3646, %v3642
      %v3648 = vlaneseq
      %v3649 = vshrl.u32 %v3648, 7
      %v3650 = vsub.s32 %v3541, %v3649
      %v3651 = vrot.slane %v3511, %v3650
      %v3652 = vsel %vm3546, %v3651, %v3647
      %v3653 = vlaneseq
      %v3654 = vshrl.u32 %v3653, 7
      %v3655 = vsub.s32 %v3548, %v3654
      %v3656 = vrot.slane %v3514, %v3655
      %v3657 = vsel %vm3553, %v3656, %v3652
      %v3658 = vlaneseq
      %v3659 = vshrl.u32 %v3658, 7
      %v3660 = vsub.s32 %v3555, %v3659
      %v3661 = vrot.slane %v3517, %v3660
      %v3662 = vsel %vm3560, %v3661, %v3657
      %v3663 = vlaneseq
      %v3664 = vshrl.u32 %v3663, 7
      %v3665 = vsub.s32 %v3562, %v3664
      %v3666 = vrot.slane %v3520, %v3665
      %v3667 = vsel %vm3567, %v3666, %v3662
      %v3668 = vlaneseq
      %v3669 = vshrl.u32 %v3668, 7
      %v3670 = vsub.s32 %v3569, %v3669
      %v3671 = vrot.slane %v3523, %v3670
      %v3672 = vsel %vm3574, %v3671, %v3667
      %v3673 = vlaneseq
      %v3674 = vshrl.u32 %v3673, 7
      %v3675 = vsub.s32 %v3576, %v3674
      %v3676 = vrot.slane %v3526, %v3675
      %v3677 = vsel %vm3581, %v3676, %v3672
      %v3678 = vlaneseq
      %v3679 = vshrl.u32 %v3678, 7
      %v3680 = vsub.s32 %v3583, %v3679
      %v3681 = vrot.slane %v3529, %v3680
      %v3682 = vsel %vm3588, %v3681, %v3677
      %v3683 = vcombine.low %v3638, %v3682
      %v3685 = vunpack.c.l.s4 1966171168
      %v3686 = vunpack.c.0.s8 %v3685
      %v3687 = vlaneseq
      %v3688 = vshrl.u32 %v3687, 7
      %v3689 = vsub.s32 %v3686, %v3688
      %v3690 = vrot.slane %v3683, %v3689
      %v3692 = vunpack.c.l.s4 1966171168
      %v3693 = vunpack.c.0.s8 %v3692
      %v3694 = vlaneseq
      %v3695 = vshrl.u32 %v3694, 7
      %v3696 = vsub.s32 %v3693, %v3695
      %v3697 = vrot.slane %v3690, %v3696
      %v3699 = vlaneseq
      %vm3700 = vcmp.ge.s32.totalorder %v3699, 0
      %vm3701 = vcmp.lt.s32.totalorder %v3699, 200
      %vm3702 = vmand %vm3700, %vm3701
      %3703 = vst.msk [vmem:[#allocation3] sm:$0x3] %vm3702, %v3697
    $region25: #{tpu_custom_call.1} parent=1 // pred_fallthru
      _
    // Predicated region
    $region26: #{tpu_custom_call.1} parent=1 // pred_check
      _
    $region27: #{tpu_custom_call.1} parent=1 // pred_check_branch
      %3705 = sbr.rel (0) target = $region29
    $region28: #{tpu_custom_call.1} parent=1 // pred_region
      %s3707 = ssub.s32 32, 32
      %3708 = vsyncadd [#allocation4], %s3707
      %s3710 = sshll.u32 [#allocation3], 4
      %s3711 = int_to_ptr.vmem [resolvable:$true] %s3710
      %3713 = dma.vmem_to_hbm [thread:$0]  %s3711, 32, %s4, [#allocation4]
    $region29: #{tpu_custom_call.1} parent=1 // pred_fallthru
      _
    // Predicated region
    $region30: #{tpu_custom_call.1} parent=1 // pred_check
      _
    $region31: #{tpu_custom_call.1} parent=1 // pred_check_branch
      %3715 = sbr.rel (0) target = $region33
    $region32: #{tpu_custom_call.1} parent=1 // pred_region
      %3716 = dma.done [#allocation4], 32
    $region33: #{tpu_custom_call.1} parent=1 // pred_fallthru
      _
    %3717 = vsyncpa [#allocation4], 1

</llo_original>
